<compile_context>
chip_gen: v7x
topology: tpu7x:2x2x1
jax: 0.10.0
libtpu: 0.0.40
codegen_flags: <defaults>
</compile_context>

<pallas_src>
import functools

import jax
import jax.numpy as jnp
from jax.experimental import pallas as pl
from jax.experimental.pallas import tpu as pltpu


def _round_up(x, m):
    return ((x + m - 1) // m) * m


# ----------------------------- fused Pallas kernel ---------------------------

def _make_fused_lstm_fc_kernel(n_layers, tc, b_pad, h_pad):
    """Fused LSTM(+FC+sigmoid) kernel for fixed (n_layers, time_chunk, B_pad, H_pad)."""
    B, H, TC = b_pad, h_pad, tc

    def kernel(*refs):
        # ---- unpack refs ----------------------------------------------------
        x_ref, h0_ref, c0_ref = refs[0:3]
        layer_refs = refs[3:3 + 3 * n_layers]                   # (w_ih, w_hh, b) / layer
        fcw_ref, fcb_ref = refs[3 + 3 * n_layers:5 + 3 * n_layers]
        sig_ref, hT_ref, cT_ref = refs[5 + 3 * n_layers:8 + 3 * n_layers]
        h_s, c_s, gx_s = refs[8 + 3 * n_layers:]

        step = pl.program_id(0)

        # ---- carry init (first chunk only) ----------------------------------
        @pl.when(step == 0)
        def _init():
            h_s[...] = h0_ref[...]
            c_s[...] = c0_ref[...]

        chunk_in = x_ref[...]                                   # (TC*B, E_pad) bf16

        for l in range(n_layers):
            w_ih_ref, w_hh_ref, b_ref = layer_refs[3 * l:3 * l + 3]

            # Hoisted input projection: one bf16 MXU matmul per (layer, chunk),
            # f32 accumulate, bias folded in; result parked in VMEM scratch.
            gx_s[...] = jnp.dot(chunk_in, w_ih_ref[...],
                                preferred_element_type=jnp.float32) + b_ref[...]
            w_hh = w_hh_ref[...]                                # (H, 4H) bf16, hoisted

            h = h_s[l]                                          # (B, H) f32
            c = c_s[l]
            last_layer = (l == n_layers - 1)
            outs = []

            # Short static time loop -> fully unrolled, static (aligned) slices.
            for t in range(TC):
                gates = gx_s[t * B:(t + 1) * B, :] + jnp.dot(
                    h.astype(jnp.bfloat16), w_hh,
                    preferred_element_type=jnp.float32)         # (B, 4H) f32
                i_g = jax.nn.sigmoid(gates[:, 0 * H:1 * H])
                f_g = jax.nn.sigmoid(gates[:, 1 * H:2 * H])
                g_g = jnp.tanh(gates[:, 2 * H:3 * H])
                o_g = jax.nn.sigmoid(gates[:, 3 * H:4 * H])
                c = f_g * c + i_g * g_g
                h = o_g * jnp.tanh(c)
                if not last_layer:
                    outs.append(h.astype(jnp.bfloat16))         # kept in registers

            h_s[l] = h
            c_s[l] = c
            if not last_layer:
                # inter-layer dropout is identity at inference time
                chunk_in = jnp.concatenate(outs, axis=0)        # (TC*B, H) bf16

        # ---- finalize (last chunk only): states + FC + sigmoid ---------------
        @pl.when(step == pl.num_programs(0) - 1)
        def _finalize():
            hT_ref[...] = h_s[...]
            cT_ref[...] = c_s[...]
            logits = jnp.dot(h_s[n_layers - 1].astype(jnp.bfloat16), fcw_ref[...],
                             preferred_element_type=jnp.float32) + fcb_ref[...]
            sig_ref[...] = jax.nn.sigmoid(logits)

    return kernel


# ------------------------------ params ---------------------------------------

def init_params(key, vocab_size, output_size, embedding_dim, hidden_dim, n_layers):
    """Logical (unpadded) f32 parameters, pre-transposed, PyTorch gate order [i,f,g,o]."""
    keys = jax.random.split(key, 3 + 4 * n_layers)
    kit = iter(keys)
    scale = 1.0 / float(hidden_dim) ** 0.5
    params = {
        "embedding": jax.random.normal(next(kit), (vocab_size, embedding_dim),
                                       jnp.float32),
    }
    for l in range(n_layers):
        d_in = embedding_dim if l == 0 else hidden_dim
        params[f"w_ih_{l}"] = jax.random.uniform(
            next(kit), (d_in, 4 * hidden_dim), jnp.float32, -scale, scale)
        params[f"w_hh_{l}"] = jax.random.uniform(
            next(kit), (hidden_dim, 4 * hidden_dim), jnp.float32, -scale, scale)
        b_ih = jax.random.uniform(next(kit), (4 * hidden_dim,), jnp.float32, -scale, scale)
        b_hh = jax.random.uniform(next(kit), (4 * hidden_dim,), jnp.float32, -scale, scale)
        params[f"b_{l}"] = (b_ih + b_hh)[None, :]               # combined once at init
    params["fc_w"] = jax.random.uniform(
        next(kit), (hidden_dim, output_size), jnp.float32, -scale, scale)
    params["fc_b"] = jax.random.uniform(
        next(kit), (output_size,), jnp.float32, -scale, scale)[None, :]
    return params


def _pad_gate_blocks(w, rows_pad, h, h_pad):
    """(rows, 4H) -> (rows_pad, 4*H_pad) keeping gate blocks [i,f,g,o] H_pad-aligned."""
    rows = w.shape[0]
    blocks = []
    for k in range(4):
        blk = w[:, k * h:(k + 1) * h]
        blocks.append(jnp.pad(blk, ((0, rows_pad - rows), (0, h_pad - h))))
    return jnp.concatenate(blocks, axis=1)


def pack_params(params, n_layers, embedding_dim, hidden_dim):
    """Pad to TPU tile-aligned shapes; MXU operands stored bf16, biases stay f32."""
    E, H = embedding_dim, hidden_dim
    Ep, Hp = _round_up(E, 128), _round_up(H, 128)
    packed = {
        "embedding": jnp.pad(params["embedding"],
                             ((0, 0), (0, Ep - E))).astype(jnp.bfloat16),
    }
    for l in range(n_layers):
        d_in, d_in_p = (E, Ep) if l == 0 else (H, Hp)
        packed[f"w_ih_{l}"] = _pad_gate_blocks(
            params[f"w_ih_{l}"], d_in_p, H, Hp).astype(jnp.bfloat16)
        packed[f"w_hh_{l}"] = _pad_gate_blocks(
            params[f"w_hh_{l}"], Hp, H, Hp).astype(jnp.bfloat16)
        packed[f"b_{l}"] = _pad_gate_blocks(params[f"b_{l}"], 1, H, Hp)       # f32
    packed["fc_w"] = jnp.pad(params["fc_w"], ((0, Hp - H), (0, 0))).astype(jnp.bfloat16)
    packed["fc_b"] = params["fc_b"]                                           # f32
    return packed


# ------------------------------ wrapper ---------------------------------------

def _pick_time_chunk(T, b_pad, e_pad, budget_bytes=4 << 20, max_unroll=16):
    """Largest divisor of T whose bf16 x-chunk fits the byte budget and unroll cap."""
    row_bytes = b_pad * e_pad * 2
    cap = max(1, min(max_unroll, budget_bytes // max(row_bytes, 1)))
    tc = 1
    for d in range(1, T + 1):
        if T % d == 0 and d <= cap:
            tc = d
    return tc


@functools.partial(jax.jit, static_argnames=("n_layers", "hidden_dim"))
def sentiment_rnn_forward(packed, x_ids, hidden, *, n_layers, hidden_dim):
    """Matches SentimentRNN.forward in eval mode (dropout = identity)."""
    B, T = x_ids.shape
    L, H = n_layers, hidden_dim
    Hp = packed["w_hh_0"].shape[0]
    Ep = packed["embedding"].shape[1]
    O = packed["fc_w"].shape[1]
    Bp = _round_up(B, 16)                                        # bf16 sublane tile

    # Time-major embedding gather straight from (padded) ids: no (B,T,E)->(T,B,E)
    # transpose pass over the activation tensor. Padded batch rows are sliced off later.
    ids_p = jnp.pad(x_ids, ((0, Bp - B), (0, 0)))                # (Bp, T) int32, tiny
    embeds_tm = jnp.take(packed["embedding"], ids_p.T, axis=0)   # (T, Bp, Ep) bf16
    x_flat = embeds_tm.reshape(T * Bp, Ep)                       # time-major (T*Bp, Ep)

    h0, c0 = hidden                                              # (L, B, H) f32
    h0p = jnp.pad(h0, ((0, 0), (0, Bp - B), (0, Hp - H)))
    c0p = jnp.pad(c0, ((0, 0), (0, Bp - B), (0, Hp - H)))

    tc = _pick_time_chunk(T, Bp, Ep)                             # divisor of T
    num_chunks = T // tc

    layer_args, layer_specs = [], []
    for l in range(L):
        d_in_p = Ep if l == 0 else Hp
        layer_args += [packed[f"w_ih_{l}"], packed[f"w_hh_{l}"], packed[f"b_{l}"]]
        layer_specs += [
            pl.BlockSpec((d_in_p, 4 * Hp), lambda t: (0, 0), pipeline_mode=pl.Buffered(1)),
            pl.BlockSpec((Hp, 4 * Hp), lambda t: (0, 0), pipeline_mode=pl.Buffered(1)),
            pl.BlockSpec((1, 4 * Hp), lambda t: (0, 0), pipeline_mode=pl.Buffered(1)),
        ]

    # Explicit VMEM budget (v7x 64-MiB safe): 2x x-chunk (double-buffered) + weights
    # (single-buffered) + carries + scratch + outputs, with 2x headroom.
    w_bytes = 0
    for l in range(L):
        d_in_p = Ep if l == 0 else Hp
        w_bytes += (d_in_p * 4 * Hp + Hp * 4 * Hp) * 2 + 4 * Hp * 4
    w_bytes += Hp * O * 2 + O * 4
    x_chunk_bytes = tc * Bp * Ep * 2
    scratch_bytes = 2 * L * Bp * Hp * 4 + tc * Bp * 4 * Hp * 4
    carry_bytes = 2 * L * Bp * Hp * 4
    out_bytes = 2 * (2 * L * Bp * Hp * 4 + Bp * O * 4)
    need = 2 * x_chunk_bytes + w_bytes + scratch_bytes + carry_bytes + out_bytes
    vmem_limit = int(min(64 << 20, max(8 << 20, 2 * need)))

    kernel = _make_fused_lstm_fc_kernel(L, tc, Bp, Hp)

    sig, hT, cT = pl.pallas_call(
        kernel,
        grid=(num_chunks,),
        in_specs=[
            pl.BlockSpec((tc * Bp, Ep), lambda t: (t, 0)),
            pl.BlockSpec((L, Bp, Hp), lambda t: (0, 0, 0), pipeline_mode=pl.Buffered(1)),
            pl.BlockSpec((L, Bp, Hp), lambda t: (0, 0, 0), pipeline_mode=pl.Buffered(1)),
            *layer_specs,
            pl.BlockSpec((Hp, O), lambda t: (0, 0), pipeline_mode=pl.Buffered(1)),
            pl.BlockSpec((1, O), lambda t: (0, 0), pipeline_mode=pl.Buffered(1)),
        ],
        out_specs=(
            pl.BlockSpec((Bp, O), lambda t: (0, 0)),
            pl.BlockSpec((L, Bp, Hp), lambda t: (0, 0, 0)),
            pl.BlockSpec((L, Bp, Hp), lambda t: (0, 0, 0)),
        ),
        out_shape=(
            jax.ShapeDtypeStruct((Bp, O), jnp.float32),
            jax.ShapeDtypeStruct((L, Bp, Hp), jnp.float32),
            jax.ShapeDtypeStruct((L, Bp, Hp), jnp.float32),
        ),
        scratch_shapes=[
            pltpu.VMEM((L, Bp, Hp), jnp.float32),                # h carry
            pltpu.VMEM((L, Bp, Hp), jnp.float32),                # c carry
            pltpu.VMEM((tc * Bp, 4 * Hp), jnp.float32),          # hoisted input projection
        ],
        compiler_params=pltpu.CompilerParams(
            dimension_semantics=("arbitrary",),
            vmem_limit_bytes=vmem_limit),
    )(x_flat, h0p, c0p, *layer_args, packed["fc_w"], packed["fc_b"])

    # PyTorch: sigmoid(fc(lstm_out)).view(B, -1)[:, -1] == sigmoid(fc(h_T))[:, -1]
    sig_out = sig[:B, O - 1]
    return sig_out, (hT[:, :B, :H], cT[:, :B, :H])


# ------------------------- pure-JAX f32 reference ------------------------------

def reference_forward(params, x_ids, hidden, n_layers, hidden_dim):
    H = hidden_dim
    embeds = jnp.take(params["embedding"], x_ids, axis=0)        # (B, T, E)
    T = embeds.shape[1]
    h = [hidden[0][l] for l in range(n_layers)]
    c = [hidden[1][l] for l in range(n_layers)]
    x = embeds
    for l in range(n_layers):
        w_ih, w_hh, b = params[f"w_ih_{l}"], params[f"w_hh_{l}"], params[f"b_{l}"]
        hl, cl = h[l], c[l]
        outs = []
        for t in range(T):
            gates = x[:, t] @ w_ih + hl @ w_hh + b
            i_g = jax.nn.sigmoid(gates[:, 0 * H:1 * H])
            f_g = jax.nn.sigmoid(gates[:, 1 * H:2 * H])
            g_g = jnp.tanh(gates[:, 2 * H:3 * H])
            o_g = jax.nn.sigmoid(gates[:, 3 * H:4 * H])
            cl = f_g * cl + i_g * g_g
            hl = o_g * jnp.tanh(cl)
            outs.append(hl)
        h[l], c[l] = hl, cl
        x = jnp.stack(outs, axis=1)
    sig = jax.nn.sigmoid(h[-1] @ params["fc_w"] + params["fc_b"])
    return sig[:, -1], (jnp.stack(h), jnp.stack(c))


# ------------------------------------ main ------------------------------------

if __name__ == "__main__":
    vocab_size = 50
    output_size = 1
    embedding_dim = 16
    hidden_dim = 32
    n_layers = 2
    batch = 2
    seq_len = 8

    key = jax.random.PRNGKey(0)
    k_params, k_tokens = jax.random.split(key)
    params = init_params(k_params, vocab_size, output_size,
                         embedding_dim, hidden_dim, n_layers)
    packed = pack_params(params, n_layers, embedding_dim, hidden_dim)

    x_ids = jax.random.randint(k_tokens, (batch, seq_len), 0, vocab_size,
                               dtype=jnp.int32)
    hidden = (jnp.zeros((n_layers, batch, hidden_dim), jnp.float32),
              jnp.zeros((n_layers, batch, hidden_dim), jnp.float32))

    sig_out, (hT, cT) = sentiment_rnn_forward(
        packed, x_ids, hidden, n_layers=n_layers, hidden_dim=hidden_dim)
    jax.block_until_ready((sig_out, hT, cT))

    assert sig_out.shape == (batch,)
    assert hT.shape == (n_layers, batch, hidden_dim)
    assert cT.shape == (n_layers, batch, hidden_dim)

    # Tolerance-based check vs f32 reference (bf16 MXU operands => small drift).
    ref_sig, (ref_h, ref_c) = reference_forward(params, x_ids, hidden,
                                                n_layers, hidden_dim)
    assert float(jnp.max(jnp.abs(sig_out - ref_sig))) < 5e-2
    assert float(jnp.max(jnp.abs(hT - ref_h))) < 5e-2
    assert float(jnp.max(jnp.abs(cT - ref_c))) < 5e-2

    print("KERNEL_OK")
</pallas_src>

<mosaic_0001>
module attributes {stable_mosaic.version = 11 : i64} {
  func.func @kernel(%arg0: i32, %arg1: memref<128x128xbf16, #tpu.memory_space<vmem>>, %arg2: memref<2x16x128xf32, #tpu.memory_space<vmem>>, %arg3: memref<2x16x128xf32, #tpu.memory_space<vmem>>, %arg4: memref<128x512xbf16, #tpu.memory_space<vmem>>, %arg5: memref<128x512xbf16, #tpu.memory_space<vmem>>, %arg6: memref<1x512xf32, #tpu.memory_space<vmem>>, %arg7: memref<128x512xbf16, #tpu.memory_space<vmem>>, %arg8: memref<128x512xbf16, #tpu.memory_space<vmem>>, %arg9: memref<1x512xf32, #tpu.memory_space<vmem>>, %arg10: memref<128x1xbf16, #tpu.memory_space<vmem>>, %arg11: memref<1x1xf32, #tpu.memory_space<vmem>>, %arg12: memref<16x1xf32, #tpu.memory_space<vmem>>, %arg13: memref<2x16x128xf32, #tpu.memory_space<vmem>>, %arg14: memref<2x16x128xf32, #tpu.memory_space<vmem>>, %arg15: memref<2x16x128xf32, #tpu.memory_space<vmem>>, %arg16: memref<2x16x128xf32, #tpu.memory_space<vmem>>, %arg17: memref<128x512xf32, #tpu.memory_space<vmem>>) attributes {dimension_semantics = [#tpu.dimension_semantics<arbitrary>], iteration_bounds = array<i64: 1>, scalar_prefetch = 0 : i64, scratch_operands = 3 : i64, tpu.core_type = #tpu.core_type<tc>, window_params = [{transform_indices = @transform_0, window_bounds = array<i64: 128, 128>}, {pipeline_mode = #tpu.pipeline_mode<synchronous>, transform_indices = @transform_1, window_bounds = array<i64: 2, 16, 128>}, {pipeline_mode = #tpu.pipeline_mode<synchronous>, transform_indices = @transform_2, window_bounds = array<i64: 2, 16, 128>}, {pipeline_mode = #tpu.pipeline_mode<synchronous>, transform_indices = @transform_3, window_bounds = array<i64: 128, 512>}, {pipeline_mode = #tpu.pipeline_mode<synchronous>, transform_indices = @transform_4, window_bounds = array<i64: 128, 512>}, {pipeline_mode = #tpu.pipeline_mode<synchronous>, transform_indices = @transform_5, window_bounds = array<i64: 1, 512>}, {pipeline_mode = #tpu.pipeline_mode<synchronous>, transform_indices = @transform_6, window_bounds = array<i64: 128, 512>}, {pipeline_mode = #tpu.pipeline_mode<synchronous>, transform_indices = @transform_7, window_bounds = array<i64: 128, 512>}, {pipeline_mode = #tpu.pipeline_mode<synchronous>, transform_indices = @transform_8, window_bounds = array<i64: 1, 512>}, {pipeline_mode = #tpu.pipeline_mode<synchronous>, transform_indices = @transform_9, window_bounds = array<i64: 128, 1>}, {pipeline_mode = #tpu.pipeline_mode<synchronous>, transform_indices = @transform_10, window_bounds = array<i64: 1, 1>}, {pipeline_mode = #tpu.pipeline_mode<synchronous>, transform_indices = @transform_11, window_bounds = array<i64: 16, 1>}, {pipeline_mode = #tpu.pipeline_mode<synchronous>, transform_indices = @transform_12, window_bounds = array<i64: 2, 16, 128>}, {pipeline_mode = #tpu.pipeline_mode<synchronous>, transform_indices = @transform_13, window_bounds = array<i64: 2, 16, 128>}]} {
    %c0_i32 = arith.constant 0 : i32
    %0 = arith.cmpi eq, %arg0, %c0_i32 : i32
    %1 = arith.extui %0 : i1 to i32
    %c0_i32_0 = arith.constant 0 : i32
    %2 = arith.cmpi ne, %1, %c0_i32_0 : i32
    scf.if %2 {
      %c0_133 = arith.constant 0 : index
      %c0_134 = arith.constant 0 : index
      %c0_135 = arith.constant 0 : index
      %514 = vector.load %arg2[%c0_133, %c0_134, %c0_135] : memref<2x16x128xf32, #tpu.memory_space<vmem>>, vector<2x16x128xf32>
      %c0_136 = arith.constant 0 : index
      %c0_137 = arith.constant 0 : index
      %c0_138 = arith.constant 0 : index
      %515 = vector.load %arg15[%c0_136, %c0_137, %c0_138] : memref<2x16x128xf32, #tpu.memory_space<vmem>>, vector<2x16x128xf32>
      tpu.vector_store %arg15[%c0_136, %c0_137, %c0_138], %514 {strides = array<i32>} : memref<2x16x128xf32, #tpu.memory_space<vmem>>, vector<2x16x128xf32>,
      %c0_139 = arith.constant 0 : index
      %c0_140 = arith.constant 0 : index
      %c0_141 = arith.constant 0 : index
      %516 = vector.load %arg3[%c0_139, %c0_140, %c0_141] : memref<2x16x128xf32, #tpu.memory_space<vmem>>, vector<2x16x128xf32>
      %c0_142 = arith.constant 0 : index
      %c0_143 = arith.constant 0 : index
      %c0_144 = arith.constant 0 : index
      %517 = vector.load %arg16[%c0_142, %c0_143, %c0_144] : memref<2x16x128xf32, #tpu.memory_space<vmem>>, vector<2x16x128xf32>
      tpu.vector_store %arg16[%c0_142, %c0_143, %c0_144], %516 {strides = array<i32>} : memref<2x16x128xf32, #tpu.memory_space<vmem>>, vector<2x16x128xf32>,
    } else {
    }
    %c0 = arith.constant 0 : index
    %c0_1 = arith.constant 0 : index
    %3 = vector.load %arg1[%c0, %c0_1] : memref<128x128xbf16, #tpu.memory_space<vmem>>, vector<128x128xbf16>
    %c0_2 = arith.constant 0 : index
    %c0_3 = arith.constant 0 : index
    %4 = vector.load %arg4[%c0_2, %c0_3] : memref<128x512xbf16, #tpu.memory_space<vmem>>, vector<128x512xbf16>
    %cst = arith.constant dense<0.000000e+00> : vector<128x512xf32>
    %5 = tpu.matmul %3, %4, %cst {dimension_numbers = #tpu.dot_dimension_numbers<[1], [0], [0], [1], [0, 0, 1, 1], [], []>} : vector<128x128xbf16>, vector<128x512xbf16>, vector<128x512xf32> -> vector<128x512xf32>
    %c0_4 = arith.constant 0 : index
    %c0_5 = arith.constant 0 : index
    %6 = vector.load %arg6[%c0_4, %c0_5] : memref<1x512xf32, #tpu.memory_space<vmem>>, vector<1x512xf32>
    %7 = vector.broadcast %6 : vector<1x512xf32> to vector<128x512xf32>
    %8 = arith.addf %5, %7 : vector<128x512xf32>
    %c0_6 = arith.constant 0 : index
    %c0_7 = arith.constant 0 : index
    %9 = vector.load %arg17[%c0_6, %c0_7] : memref<128x512xf32, #tpu.memory_space<vmem>>, vector<128x512xf32>
    tpu.vector_store %arg17[%c0_6, %c0_7], %8 {strides = array<i32>} : memref<128x512xf32, #tpu.memory_space<vmem>>, vector<128x512xf32>,
    %c0_8 = arith.constant 0 : index
    %c0_9 = arith.constant 0 : index
    %10 = vector.load %arg5[%c0_8, %c0_9] : memref<128x512xbf16, #tpu.memory_space<vmem>>, vector<128x512xbf16>
    %c0_10 = arith.constant 0 : index
    %c0_11 = arith.constant 0 : index
    %c0_12 = arith.constant 0 : index
    %11 = vector.load %arg15[%c0_10, %c0_11, %c0_12] : memref<2x16x128xf32, #tpu.memory_space<vmem>>, vector<1x16x128xf32>
    %12 = vector.shape_cast %11 : vector<1x16x128xf32> to vector<16x128xf32>
    %c0_13 = arith.constant 0 : index
    %c0_14 = arith.constant 0 : index
    %c0_15 = arith.constant 0 : index
    %13 = vector.load %arg16[%c0_13, %c0_14, %c0_15] : memref<2x16x128xf32, #tpu.memory_space<vmem>>, vector<1x16x128xf32>
    %14 = vector.shape_cast %13 : vector<1x16x128xf32> to vector<16x128xf32>
    %c0_16 = arith.constant 0 : index
    %c0_17 = arith.constant 0 : index
    %15 = vector.load %arg17[%c0_16, %c0_17] : memref<128x512xf32, #tpu.memory_space<vmem>>, vector<16x512xf32>
    %16 = arith.truncf %12 : vector<16x128xf32> to vector<16x128xbf16>
    %cst_18 = arith.constant dense<0.000000e+00> : vector<16x512xf32>
    %17 = tpu.matmul %16, %10, %cst_18 {dimension_numbers = #tpu.dot_dimension_numbers<[1], [0], [0], [1], [0, 0, 1, 1], [], []>} : vector<16x128xbf16>, vector<128x512xbf16>, vector<16x512xf32> -> vector<16x512xf32>
    %18 = arith.addf %15, %17 : vector<16x512xf32>
    %19 = vector.extract_strided_slice %18 {offsets = [0, 0], sizes = [16, 128], strides = [1, 1]} : vector<16x512xf32> to vector<16x128xf32>
    %20 = arith.negf %19 : vector<16x128xf32>
    %21 = math.exp %20 : vector<16x128xf32>
    %cst_19 = arith.constant 1.000000e+00 : f32
    %22 = vector.broadcast %cst_19 : f32 to vector<16x128xf32>
    %23 = arith.addf %22, %21 : vector<16x128xf32>
    %24 = arith.divf %22, %23 : vector<16x128xf32>
    %25 = vector.extract_strided_slice %18 {offsets = [0, 128], sizes = [16, 128], strides = [1, 1]} : vector<16x512xf32> to vector<16x128xf32>
    %26 = arith.negf %25 : vector<16x128xf32>
    %27 = math.exp %26 : vector<16x128xf32>
    %cst_20 = arith.constant 1.000000e+00 : f32
    %28 = vector.broadcast %cst_20 : f32 to vector<16x128xf32>
    %29 = arith.addf %28, %27 : vector<16x128xf32>
    %30 = arith.divf %28, %29 : vector<16x128xf32>
    %31 = vector.extract_strided_slice %18 {offsets = [0, 256], sizes = [16, 128], strides = [1, 1]} : vector<16x512xf32> to vector<16x128xf32>
    %32 = math.tanh %31 : vector<16x128xf32>
    %33 = vector.extract_strided_slice %18 {offsets = [0, 384], sizes = [16, 128], strides = [1, 1]} : vector<16x512xf32> to vector<16x128xf32>
    %34 = arith.negf %33 : vector<16x128xf32>
    %35 = math.exp %34 : vector<16x128xf32>
    %cst_21 = arith.constant 1.000000e+00 : f32
    %36 = vector.broadcast %cst_21 : f32 to vector<16x128xf32>
    %37 = arith.addf %36, %35 : vector<16x128xf32>
    %38 = arith.divf %36, %37 : vector<16x128xf32>
    %39 = arith.mulf %30, %14 : vector<16x128xf32>
    %40 = arith.mulf %24, %32 : vector<16x128xf32>
    %41 = arith.addf %39, %40 : vector<16x128xf32>
    %42 = math.tanh %41 : vector<16x128xf32>
    %43 = arith.mulf %38, %42 : vector<16x128xf32>
    %44 = arith.truncf %43 : vector<16x128xf32> to vector<16x128xbf16>
    %c16 = arith.constant 16 : index
    %c0_22 = arith.constant 0 : index
    %45 = vector.load %arg17[%c16, %c0_22] : memref<128x512xf32, #tpu.memory_space<vmem>>, vector<16x512xf32>
    %46 = arith.truncf %43 : vector<16x128xf32> to vector<16x128xbf16>
    %cst_23 = arith.constant dense<0.000000e+00> : vector<16x512xf32>
    %47 = tpu.matmul %46, %10, %cst_23 {dimension_numbers = #tpu.dot_dimension_numbers<[1], [0], [0], [1], [0, 0, 1, 1], [], []>} : vector<16x128xbf16>, vector<128x512xbf16>, vector<16x512xf32> -> vector<16x512xf32>
    %48 = arith.addf %45, %47 : vector<16x512xf32>
    %49 = vector.extract_strided_slice %48 {offsets = [0, 0], sizes = [16, 128], strides = [1, 1]} : vector<16x512xf32> to vector<16x128xf32>
    %50 = arith.negf %49 : vector<16x128xf32>
    %51 = math.exp %50 : vector<16x128xf32>
    %cst_24 = arith.constant 1.000000e+00 : f32
    %52 = vector.broadcast %cst_24 : f32 to vector<16x128xf32>
    %53 = arith.addf %52, %51 : vector<16x128xf32>
    %54 = arith.divf %52, %53 : vector<16x128xf32>
    %55 = vector.extract_strided_slice %48 {offsets = [0, 128], sizes = [16, 128], strides = [1, 1]} : vector<16x512xf32> to vector<16x128xf32>
    %56 = arith.negf %55 : vector<16x128xf32>
    %57 = math.exp %56 : vector<16x128xf32>
    %cst_25 = arith.constant 1.000000e+00 : f32
    %58 = vector.broadcast %cst_25 : f32 to vector<16x128xf32>
    %59 = arith.addf %58, %57 : vector<16x128xf32>
    %60 = arith.divf %58, %59 : vector<16x128xf32>
    %61 = vector.extract_strided_slice %48 {offsets = [0, 256], sizes = [16, 128], strides = [1, 1]} : vector<16x512xf32> to vector<16x128xf32>
    %62 = math.tanh %61 : vector<16x128xf32>
    %63 = vector.extract_strided_slice %48 {offsets = [0, 384], sizes = [16, 128], strides = [1, 1]} : vector<16x512xf32> to vector<16x128xf32>
    %64 = arith.negf %63 : vector<16x128xf32>
    %65 = math.exp %64 : vector<16x128xf32>
    %cst_26 = arith.constant 1.000000e+00 : f32
    %66 = vector.broadcast %cst_26 : f32 to vector<16x128xf32>
    %67 = arith.addf %66, %65 : vector<16x128xf32>
    %68 = arith.divf %66, %67 : vector<16x128xf32>
    %69 = arith.mulf %60, %41 : vector<16x128xf32>
    %70 = arith.mulf %54, %62 : vector<16x128xf32>
    %71 = arith.addf %69, %70 : vector<16x128xf32>
    %72 = math.tanh %71 : vector<16x128xf32>
    %73 = arith.mulf %68, %72 : vector<16x128xf32>
    %74 = arith.truncf %73 : vector<16x128xf32> to vector<16x128xbf16>
    %c32 = arith.constant 32 : index
    %c0_27 = arith.constant 0 : index
    %75 = vector.load %arg17[%c32, %c0_27] : memref<128x512xf32, #tpu.memory_space<vmem>>, vector<16x512xf32>
    %76 = arith.truncf %73 : vector<16x128xf32> to vector<16x128xbf16>
    %cst_28 = arith.constant dense<0.000000e+00> : vector<16x512xf32>
    %77 = tpu.matmul %76, %10, %cst_28 {dimension_numbers = #tpu.dot_dimension_numbers<[1], [0], [0], [1], [0, 0, 1, 1], [], []>} : vector<16x128xbf16>, vector<128x512xbf16>, vector<16x512xf32> -> vector<16x512xf32>
    %78 = arith.addf %75, %77 : vector<16x512xf32>
    %79 = vector.extract_strided_slice %78 {offsets = [0, 0], sizes = [16, 128], strides = [1, 1]} : vector<16x512xf32> to vector<16x128xf32>
    %80 = arith.negf %79 : vector<16x128xf32>
    %81 = math.exp %80 : vector<16x128xf32>
    %cst_29 = arith.constant 1.000000e+00 : f32
    %82 = vector.broadcast %cst_29 : f32 to vector<16x128xf32>
    %83 = arith.addf %82, %81 : vector<16x128xf32>
    %84 = arith.divf %82, %83 : vector<16x128xf32>
    %85 = vector.extract_strided_slice %78 {offsets = [0, 128], sizes = [16, 128], strides = [1, 1]} : vector<16x512xf32> to vector<16x128xf32>
    %86 = arith.negf %85 : vector<16x128xf32>
    %87 = math.exp %86 : vector<16x128xf32>
    %cst_30 = arith.constant 1.000000e+00 : f32
    %88 = vector.broadcast %cst_30 : f32 to vector<16x128xf32>
    %89 = arith.addf %88, %87 : vector<16x128xf32>
    %90 = arith.divf %88, %89 : vector<16x128xf32>
    %91 = vector.extract_strided_slice %78 {offsets = [0, 256], sizes = [16, 128], strides = [1, 1]} : vector<16x512xf32> to vector<16x128xf32>
    %92 = math.tanh %91 : vector<16x128xf32>
    %93 = vector.extract_strided_slice %78 {offsets = [0, 384], sizes = [16, 128], strides = [1, 1]} : vector<16x512xf32> to vector<16x128xf32>
    %94 = arith.negf %93 : vector<16x128xf32>
    %95 = math.exp %94 : vector<16x128xf32>
    %cst_31 = arith.constant 1.000000e+00 : f32
    %96 = vector.broadcast %cst_31 : f32 to vector<16x128xf32>
    %97 = arith.addf %96, %95 : vector<16x128xf32>
    %98 = arith.divf %96, %97 : vector<16x128xf32>
    %99 = arith.mulf %90, %71 : vector<16x128xf32>
    %100 = arith.mulf %84, %92 : vector<16x128xf32>
    %101 = arith.addf %99, %100 : vector<16x128xf32>
    %102 = math.tanh %101 : vector<16x128xf32>
    %103 = arith.mulf %98, %102 : vector<16x128xf32>
    %104 = arith.truncf %103 : vector<16x128xf32> to vector<16x128xbf16>
    %c48 = arith.constant 48 : index
    %c0_32 = arith.constant 0 : index
    %105 = vector.load %arg17[%c48, %c0_32] : memref<128x512xf32, #tpu.memory_space<vmem>>, vector<16x512xf32>
    %106 = arith.truncf %103 : vector<16x128xf32> to vector<16x128xbf16>
    %cst_33 = arith.constant dense<0.000000e+00> : vector<16x512xf32>
    %107 = tpu.matmul %106, %10, %cst_33 {dimension_numbers = #tpu.dot_dimension_numbers<[1], [0], [0], [1], [0, 0, 1, 1], [], []>} : vector<16x128xbf16>, vector<128x512xbf16>, vector<16x512xf32> -> vector<16x512xf32>
    %108 = arith.addf %105, %107 : vector<16x512xf32>
    %109 = vector.extract_strided_slice %108 {offsets = [0, 0], sizes = [16, 128], strides = [1, 1]} : vector<16x512xf32> to vector<16x128xf32>
    %110 = arith.negf %109 : vector<16x128xf32>
    %111 = math.exp %110 : vector<16x128xf32>
    %cst_34 = arith.constant 1.000000e+00 : f32
    %112 = vector.broadcast %cst_34 : f32 to vector<16x128xf32>
    %113 = arith.addf %112, %111 : vector<16x128xf32>
    %114 = arith.divf %112, %113 : vector<16x128xf32>
    %115 = vector.extract_strided_slice %108 {offsets = [0, 128], sizes = [16, 128], strides = [1, 1]} : vector<16x512xf32> to vector<16x128xf32>
    %116 = arith.negf %115 : vector<16x128xf32>
    %117 = math.exp %116 : vector<16x128xf32>
    %cst_35 = arith.constant 1.000000e+00 : f32
    %118 = vector.broadcast %cst_35 : f32 to vector<16x128xf32>
    %119 = arith.addf %118, %117 : vector<16x128xf32>
    %120 = arith.divf %118, %119 : vector<16x128xf32>
    %121 = vector.extract_strided_slice %108 {offsets = [0, 256], sizes = [16, 128], strides = [1, 1]} : vector<16x512xf32> to vector<16x128xf32>
    %122 = math.tanh %121 : vector<16x128xf32>
    %123 = vector.extract_strided_slice %108 {offsets = [0, 384], sizes = [16, 128], strides = [1, 1]} : vector<16x512xf32> to vector<16x128xf32>
    %124 = arith.negf %123 : vector<16x128xf32>
    %125 = math.exp %124 : vector<16x128xf32>
    %cst_36 = arith.constant 1.000000e+00 : f32
    %126 = vector.broadcast %cst_36 : f32 to vector<16x128xf32>
    %127 = arith.addf %126, %125 : vector<16x128xf32>
    %128 = arith.divf %126, %127 : vector<16x128xf32>
    %129 = arith.mulf %120, %101 : vector<16x128xf32>
    %130 = arith.mulf %114, %122 : vector<16x128xf32>
    %131 = arith.addf %129, %130 : vector<16x128xf32>
    %132 = math.tanh %131 : vector<16x128xf32>
    %133 = arith.mulf %128, %132 : vector<16x128xf32>
    %134 = arith.truncf %133 : vector<16x128xf32> to vector<16x128xbf16>
    %c64 = arith.constant 64 : index
    %c0_37 = arith.constant 0 : index
    %135 = vector.load %arg17[%c64, %c0_37] : memref<128x512xf32, #tpu.memory_space<vmem>>, vector<16x512xf32>
    %136 = arith.truncf %133 : vector<16x128xf32> to vector<16x128xbf16>
    %cst_38 = arith.constant dense<0.000000e+00> : vector<16x512xf32>
    %137 = tpu.matmul %136, %10, %cst_38 {dimension_numbers = #tpu.dot_dimension_numbers<[1], [0], [0], [1], [0, 0, 1, 1], [], []>} : vector<16x128xbf16>, vector<128x512xbf16>, vector<16x512xf32> -> vector<16x512xf32>
    %138 = arith.addf %135, %137 : vector<16x512xf32>
    %139 = vector.extract_strided_slice %138 {offsets = [0, 0], sizes = [16, 128], strides = [1, 1]} : vector<16x512xf32> to vector<16x128xf32>
    %140 = arith.negf %139 : vector<16x128xf32>
    %141 = math.exp %140 : vector<16x128xf32>
    %cst_39 = arith.constant 1.000000e+00 : f32
    %142 = vector.broadcast %cst_39 : f32 to vector<16x128xf32>
    %143 = arith.addf %142, %141 : vector<16x128xf32>
    %144 = arith.divf %142, %143 : vector<16x128xf32>
    %145 = vector.extract_strided_slice %138 {offsets = [0, 128], sizes = [16, 128], strides = [1, 1]} : vector<16x512xf32> to vector<16x128xf32>
    %146 = arith.negf %145 : vector<16x128xf32>
    %147 = math.exp %146 : vector<16x128xf32>
    %cst_40 = arith.constant 1.000000e+00 : f32
    %148 = vector.broadcast %cst_40 : f32 to vector<16x128xf32>
    %149 = arith.addf %148, %147 : vector<16x128xf32>
    %150 = arith.divf %148, %149 : vector<16x128xf32>
    %151 = vector.extract_strided_slice %138 {offsets = [0, 256], sizes = [16, 128], strides = [1, 1]} : vector<16x512xf32> to vector<16x128xf32>
    %152 = math.tanh %151 : vector<16x128xf32>
    %153 = vector.extract_strided_slice %138 {offsets = [0, 384], sizes = [16, 128], strides = [1, 1]} : vector<16x512xf32> to vector<16x128xf32>
    %154 = arith.negf %153 : vector<16x128xf32>
    %155 = math.exp %154 : vector<16x128xf32>
    %cst_41 = arith.constant 1.000000e+00 : f32
    %156 = vector.broadcast %cst_41 : f32 to vector<16x128xf32>
    %157 = arith.addf %156, %155 : vector<16x128xf32>
    %158 = arith.divf %156, %157 : vector<16x128xf32>
    %159 = arith.mulf %150, %131 : vector<16x128xf32>
    %160 = arith.mulf %144, %152 : vector<16x128xf32>
    %161 = arith.addf %159, %160 : vector<16x128xf32>
    %162 = math.tanh %161 : vector<16x128xf32>
    %163 = arith.mulf %158, %162 : vector<16x128xf32>
    %164 = arith.truncf %163 : vector<16x128xf32> to vector<16x128xbf16>
    %c80 = arith.constant 80 : index
    %c0_42 = arith.constant 0 : index
    %165 = vector.load %arg17[%c80, %c0_42] : memref<128x512xf32, #tpu.memory_space<vmem>>, vector<16x512xf32>
    %166 = arith.truncf %163 : vector<16x128xf32> to vector<16x128xbf16>
    %cst_43 = arith.constant dense<0.000000e+00> : vector<16x512xf32>
    %167 = tpu.matmul %166, %10, %cst_43 {dimension_numbers = #tpu.dot_dimension_numbers<[1], [0], [0], [1], [0, 0, 1, 1], [], []>} : vector<16x128xbf16>, vector<128x512xbf16>, vector<16x512xf32> -> vector<16x512xf32>
    %168 = arith.addf %165, %167 : vector<16x512xf32>
    %169 = vector.extract_strided_slice %168 {offsets = [0, 0], sizes = [16, 128], strides = [1, 1]} : vector<16x512xf32> to vector<16x128xf32>
    %170 = arith.negf %169 : vector<16x128xf32>
    %171 = math.exp %170 : vector<16x128xf32>
    %cst_44 = arith.constant 1.000000e+00 : f32
    %172 = vector.broadcast %cst_44 : f32 to vector<16x128xf32>
    %173 = arith.addf %172, %171 : vector<16x128xf32>
    %174 = arith.divf %172, %173 : vector<16x128xf32>
    %175 = vector.extract_strided_slice %168 {offsets = [0, 128], sizes = [16, 128], strides = [1, 1]} : vector<16x512xf32> to vector<16x128xf32>
    %176 = arith.negf %175 : vector<16x128xf32>
    %177 = math.exp %176 : vector<16x128xf32>
    %cst_45 = arith.constant 1.000000e+00 : f32
    %178 = vector.broadcast %cst_45 : f32 to vector<16x128xf32>
    %179 = arith.addf %178, %177 : vector<16x128xf32>
    %180 = arith.divf %178, %179 : vector<16x128xf32>
    %181 = vector.extract_strided_slice %168 {offsets = [0, 256], sizes = [16, 128], strides = [1, 1]} : vector<16x512xf32> to vector<16x128xf32>
    %182 = math.tanh %181 : vector<16x128xf32>
    %183 = vector.extract_strided_slice %168 {offsets = [0, 384], sizes = [16, 128], strides = [1, 1]} : vector<16x512xf32> to vector<16x128xf32>
    %184 = arith.negf %183 : vector<16x128xf32>
    %185 = math.exp %184 : vector<16x128xf32>
    %cst_46 = arith.constant 1.000000e+00 : f32
    %186 = vector.broadcast %cst_46 : f32 to vector<16x128xf32>
    %187 = arith.addf %186, %185 : vector<16x128xf32>
    %188 = arith.divf %186, %187 : vector<16x128xf32>
    %189 = arith.mulf %180, %161 : vector<16x128xf32>
    %190 = arith.mulf %174, %182 : vector<16x128xf32>
    %191 = arith.addf %189, %190 : vector<16x128xf32>
    %192 = math.tanh %191 : vector<16x128xf32>
    %193 = arith.mulf %188, %192 : vector<16x128xf32>
    %194 = arith.truncf %193 : vector<16x128xf32> to vector<16x128xbf16>
    %c96 = arith.constant 96 : index
    %c0_47 = arith.constant 0 : index
    %195 = vector.load %arg17[%c96, %c0_47] : memref<128x512xf32, #tpu.memory_space<vmem>>, vector<16x512xf32>
    %196 = arith.truncf %193 : vector<16x128xf32> to vector<16x128xbf16>
    %cst_48 = arith.constant dense<0.000000e+00> : vector<16x512xf32>
    %197 = tpu.matmul %196, %10, %cst_48 {dimension_numbers = #tpu.dot_dimension_numbers<[1], [0], [0], [1], [0, 0, 1, 1], [], []>} : vector<16x128xbf16>, vector<128x512xbf16>, vector<16x512xf32> -> vector<16x512xf32>
    %198 = arith.addf %195, %197 : vector<16x512xf32>
    %199 = vector.extract_strided_slice %198 {offsets = [0, 0], sizes = [16, 128], strides = [1, 1]} : vector<16x512xf32> to vector<16x128xf32>
    %200 = arith.negf %199 : vector<16x128xf32>
    %201 = math.exp %200 : vector<16x128xf32>
    %cst_49 = arith.constant 1.000000e+00 : f32
    %202 = vector.broadcast %cst_49 : f32 to vector<16x128xf32>
    %203 = arith.addf %202, %201 : vector<16x128xf32>
    %204 = arith.divf %202, %203 : vector<16x128xf32>
    %205 = vector.extract_strided_slice %198 {offsets = [0, 128], sizes = [16, 128], strides = [1, 1]} : vector<16x512xf32> to vector<16x128xf32>
    %206 = arith.negf %205 : vector<16x128xf32>
    %207 = math.exp %206 : vector<16x128xf32>
    %cst_50 = arith.constant 1.000000e+00 : f32
    %208 = vector.broadcast %cst_50 : f32 to vector<16x128xf32>
    %209 = arith.addf %208, %207 : vector<16x128xf32>
    %210 = arith.divf %208, %209 : vector<16x128xf32>
    %211 = vector.extract_strided_slice %198 {offsets = [0, 256], sizes = [16, 128], strides = [1, 1]} : vector<16x512xf32> to vector<16x128xf32>
    %212 = math.tanh %211 : vector<16x128xf32>
    %213 = vector.extract_strided_slice %198 {offsets = [0, 384], sizes = [16, 128], strides = [1, 1]} : vector<16x512xf32> to vector<16x128xf32>
    %214 = arith.negf %213 : vector<16x128xf32>
    %215 = math.exp %214 : vector<16x128xf32>
    %cst_51 = arith.constant 1.000000e+00 : f32
    %216 = vector.broadcast %cst_51 : f32 to vector<16x128xf32>
    %217 = arith.addf %216, %215 : vector<16x128xf32>
    %218 = arith.divf %216, %217 : vector<16x128xf32>
    %219 = arith.mulf %210, %191 : vector<16x128xf32>
    %220 = arith.mulf %204, %212 : vector<16x128xf32>
    %221 = arith.addf %219, %220 : vector<16x128xf32>
    %222 = math.tanh %221 : vector<16x128xf32>
    %223 = arith.mulf %218, %222 : vector<16x128xf32>
    %224 = arith.truncf %223 : vector<16x128xf32> to vector<16x128xbf16>
    %c112 = arith.constant 112 : index
    %c0_52 = arith.constant 0 : index
    %225 = vector.load %arg17[%c112, %c0_52] : memref<128x512xf32, #tpu.memory_space<vmem>>, vector<16x512xf32>
    %226 = arith.truncf %223 : vector<16x128xf32> to vector<16x128xbf16>
    %cst_53 = arith.constant dense<0.000000e+00> : vector<16x512xf32>
    %227 = tpu.matmul %226, %10, %cst_53 {dimension_numbers = #tpu.dot_dimension_numbers<[1], [0], [0], [1], [0, 0, 1, 1], [], []>} : vector<16x128xbf16>, vector<128x512xbf16>, vector<16x512xf32> -> vector<16x512xf32>
    %228 = arith.addf %225, %227 : vector<16x512xf32>
    %229 = vector.extract_strided_slice %228 {offsets = [0, 0], sizes = [16, 128], strides = [1, 1]} : vector<16x512xf32> to vector<16x128xf32>
    %230 = arith.negf %229 : vector<16x128xf32>
    %231 = math.exp %230 : vector<16x128xf32>
    %cst_54 = arith.constant 1.000000e+00 : f32
    %232 = vector.broadcast %cst_54 : f32 to vector<16x128xf32>
    %233 = arith.addf %232, %231 : vector<16x128xf32>
    %234 = arith.divf %232, %233 : vector<16x128xf32>
    %235 = vector.extract_strided_slice %228 {offsets = [0, 128], sizes = [16, 128], strides = [1, 1]} : vector<16x512xf32> to vector<16x128xf32>
    %236 = arith.negf %235 : vector<16x128xf32>
    %237 = math.exp %236 : vector<16x128xf32>
    %cst_55 = arith.constant 1.000000e+00 : f32
    %238 = vector.broadcast %cst_55 : f32 to vector<16x128xf32>
    %239 = arith.addf %238, %237 : vector<16x128xf32>
    %240 = arith.divf %238, %239 : vector<16x128xf32>
    %241 = vector.extract_strided_slice %228 {offsets = [0, 256], sizes = [16, 128], strides = [1, 1]} : vector<16x512xf32> to vector<16x128xf32>
    %242 = math.tanh %241 : vector<16x128xf32>
    %243 = vector.extract_strided_slice %228 {offsets = [0, 384], sizes = [16, 128], strides = [1, 1]} : vector<16x512xf32> to vector<16x128xf32>
    %244 = arith.negf %243 : vector<16x128xf32>
    %245 = math.exp %244 : vector<16x128xf32>
    %cst_56 = arith.constant 1.000000e+00 : f32
    %246 = vector.broadcast %cst_56 : f32 to vector<16x128xf32>
    %247 = arith.addf %246, %245 : vector<16x128xf32>
    %248 = arith.divf %246, %247 : vector<16x128xf32>
    %249 = arith.mulf %240, %221 : vector<16x128xf32>
    %250 = arith.mulf %234, %242 : vector<16x128xf32>
    %251 = arith.addf %249, %250 : vector<16x128xf32>
    %252 = math.tanh %251 : vector<16x128xf32>
    %253 = arith.mulf %248, %252 : vector<16x128xf32>
    %254 = arith.truncf %253 : vector<16x128xf32> to vector<16x128xbf16>
    %c0_57 = arith.constant 0 : index
    %c0_58 = arith.constant 0 : index
    %c0_59 = arith.constant 0 : index
    %255 = vector.load %arg15[%c0_57, %c0_58, %c0_59] : memref<2x16x128xf32, #tpu.memory_space<vmem>>, vector<1x16x128xf32>
    %256 = vector.shape_cast %255 : vector<1x16x128xf32> to vector<16x128xf32>
    %257 = vector.shape_cast %253 : vector<16x128xf32> to vector<1x16x128xf32>
    tpu.vector_store %arg15[%c0_57, %c0_58, %c0_59], %257 {strides = array<i32>} : memref<2x16x128xf32, #tpu.memory_space<vmem>>, vector<1x16x128xf32>,
    %c0_60 = arith.constant 0 : index
    %c0_61 = arith.constant 0 : index
    %c0_62 = arith.constant 0 : index
    %258 = vector.load %arg16[%c0_60, %c0_61, %c0_62] : memref<2x16x128xf32, #tpu.memory_space<vmem>>, vector<1x16x128xf32>
    %259 = vector.shape_cast %258 : vector<1x16x128xf32> to vector<16x128xf32>
    %260 = vector.shape_cast %251 : vector<16x128xf32> to vector<1x16x128xf32>
    tpu.vector_store %arg16[%c0_60, %c0_61, %c0_62], %260 {strides = array<i32>} : memref<2x16x128xf32, #tpu.memory_space<vmem>>, vector<1x16x128xf32>,
    %261 = tpu.concatenate %44, %74, %104, %134, %164, %194, %224, %254 in 0 : vector<16x128xbf16>, vector<16x128xbf16>, vector<16x128xbf16>, vector<16x128xbf16>, vector<16x128xbf16>, vector<16x128xbf16>, vector<16x128xbf16>, vector<16x128xbf16> -> vector<128x128xbf16>
    %c0_63 = arith.constant 0 : index
    %c0_64 = arith.constant 0 : index
    %262 = vector.load %arg7[%c0_63, %c0_64] : memref<128x512xbf16, #tpu.memory_space<vmem>>, vector<128x512xbf16>
    %cst_65 = arith.constant dense<0.000000e+00> : vector<128x512xf32>
    %263 = tpu.matmul %261, %262, %cst_65 {dimension_numbers = #tpu.dot_dimension_numbers<[1], [0], [0], [1], [0, 0, 1, 1], [], []>} : vector<128x128xbf16>, vector<128x512xbf16>, vector<128x512xf32> -> vector<128x512xf32>
    %c0_66 = arith.constant 0 : index
    %c0_67 = arith.constant 0 : index
    %264 = vector.load %arg9[%c0_66, %c0_67] : memref<1x512xf32, #tpu.memory_space<vmem>>, vector<1x512xf32>
    %265 = vector.broadcast %264 : vector<1x512xf32> to vector<128x512xf32>
    %266 = arith.addf %263, %265 : vector<128x512xf32>
    %c0_68 = arith.constant 0 : index
    %c0_69 = arith.constant 0 : index
    %267 = vector.load %arg17[%c0_68, %c0_69] : memref<128x512xf32, #tpu.memory_space<vmem>>, vector<128x512xf32>
    tpu.vector_store %arg17[%c0_68, %c0_69], %266 {strides = array<i32>} : memref<128x512xf32, #tpu.memory_space<vmem>>, vector<128x512xf32>,
    %c0_70 = arith.constant 0 : index
    %c0_71 = arith.constant 0 : index
    %268 = vector.load %arg8[%c0_70, %c0_71] : memref<128x512xbf16, #tpu.memory_space<vmem>>, vector<128x512xbf16>
    %c1 = arith.constant 1 : index
    %c0_72 = arith.constant 0 : index
    %c0_73 = arith.constant 0 : index
    %269 = vector.load %arg15[%c1, %c0_72, %c0_73] : memref<2x16x128xf32, #tpu.memory_space<vmem>>, vector<1x16x128xf32>
    %270 = vector.shape_cast %269 : vector<1x16x128xf32> to vector<16x128xf32>
    %c1_74 = arith.constant 1 : index
    %c0_75 = arith.constant 0 : index
    %c0_76 = arith.constant 0 : index
    %271 = vector.load %arg16[%c1_74, %c0_75, %c0_76] : memref<2x16x128xf32, #tpu.memory_space<vmem>>, vector<1x16x128xf32>
    %272 = vector.shape_cast %271 : vector<1x16x128xf32> to vector<16x128xf32>
    %c0_77 = arith.constant 0 : index
    %c0_78 = arith.constant 0 : index
    %273 = vector.load %arg17[%c0_77, %c0_78] : memref<128x512xf32, #tpu.memory_space<vmem>>, vector<16x512xf32>
    %274 = arith.truncf %270 : vector<16x128xf32> to vector<16x128xbf16>
    %cst_79 = arith.constant dense<0.000000e+00> : vector<16x512xf32>
    %275 = tpu.matmul %274, %268, %cst_79 {dimension_numbers = #tpu.dot_dimension_numbers<[1], [0], [0], [1], [0, 0, 1, 1], [], []>} : vector<16x128xbf16>, vector<128x512xbf16>, vector<16x512xf32> -> vector<16x512xf32>
    %276 = arith.addf %273, %275 : vector<16x512xf32>
    %277 = vector.extract_strided_slice %276 {offsets = [0, 0], sizes = [16, 128], strides = [1, 1]} : vector<16x512xf32> to vector<16x128xf32>
    %278 = arith.negf %277 : vector<16x128xf32>
    %279 = math.exp %278 : vector<16x128xf32>
    %cst_80 = arith.constant 1.000000e+00 : f32
    %280 = vector.broadcast %cst_80 : f32 to vector<16x128xf32>
    %281 = arith.addf %280, %279 : vector<16x128xf32>
    %282 = arith.divf %280, %281 : vector<16x128xf32>
    %283 = vector.extract_strided_slice %276 {offsets = [0, 128], sizes = [16, 128], strides = [1, 1]} : vector<16x512xf32> to vector<16x128xf32>
    %284 = arith.negf %283 : vector<16x128xf32>
    %285 = math.exp %284 : vector<16x128xf32>
    %cst_81 = arith.constant 1.000000e+00 : f32
    %286 = vector.broadcast %cst_81 : f32 to vector<16x128xf32>
    %287 = arith.addf %286, %285 : vector<16x128xf32>
    %288 = arith.divf %286, %287 : vector<16x128xf32>
    %289 = vector.extract_strided_slice %276 {offsets = [0, 256], sizes = [16, 128], strides = [1, 1]} : vector<16x512xf32> to vector<16x128xf32>
    %290 = math.tanh %289 : vector<16x128xf32>
    %291 = vector.extract_strided_slice %276 {offsets = [0, 384], sizes = [16, 128], strides = [1, 1]} : vector<16x512xf32> to vector<16x128xf32>
    %292 = arith.negf %291 : vector<16x128xf32>
    %293 = math.exp %292 : vector<16x128xf32>
    %cst_82 = arith.constant 1.000000e+00 : f32
    %294 = vector.broadcast %cst_82 : f32 to vector<16x128xf32>
    %295 = arith.addf %294, %293 : vector<16x128xf32>
    %296 = arith.divf %294, %295 : vector<16x128xf32>
    %297 = arith.mulf %288, %272 : vector<16x128xf32>
    %298 = arith.mulf %282, %290 : vector<16x128xf32>
    %299 = arith.addf %297, %298 : vector<16x128xf32>
    %300 = math.tanh %299 : vector<16x128xf32>
    %301 = arith.mulf %296, %300 : vector<16x128xf32>
    %c16_83 = arith.constant 16 : index
    %c0_84 = arith.constant 0 : index
    %302 = vector.load %arg17[%c16_83, %c0_84] : memref<128x512xf32, #tpu.memory_space<vmem>>, vector<16x512xf32>
    %303 = arith.truncf %301 : vector<16x128xf32> to vector<16x128xbf16>
    %cst_85 = arith.constant dense<0.000000e+00> : vector<16x512xf32>
    %304 = tpu.matmul %303, %268, %cst_85 {dimension_numbers = #tpu.dot_dimension_numbers<[1], [0], [0], [1], [0, 0, 1, 1], [], []>} : vector<16x128xbf16>, vector<128x512xbf16>, vector<16x512xf32> -> vector<16x512xf32>
    %305 = arith.addf %302, %304 : vector<16x512xf32>
    %306 = vector.extract_strided_slice %305 {offsets = [0, 0], sizes = [16, 128], strides = [1, 1]} : vector<16x512xf32> to vector<16x128xf32>
    %307 = arith.negf %306 : vector<16x128xf32>
    %308 = math.exp %307 : vector<16x128xf32>
    %cst_86 = arith.constant 1.000000e+00 : f32
    %309 = vector.broadcast %cst_86 : f32 to vector<16x128xf32>
    %310 = arith.addf %309, %308 : vector<16x128xf32>
    %311 = arith.divf %309, %310 : vector<16x128xf32>
    %312 = vector.extract_strided_slice %305 {offsets = [0, 128], sizes = [16, 128], strides = [1, 1]} : vector<16x512xf32> to vector<16x128xf32>
    %313 = arith.negf %312 : vector<16x128xf32>
    %314 = math.exp %313 : vector<16x128xf32>
    %cst_87 = arith.constant 1.000000e+00 : f32
    %315 = vector.broadcast %cst_87 : f32 to vector<16x128xf32>
    %316 = arith.addf %315, %314 : vector<16x128xf32>
    %317 = arith.divf %315, %316 : vector<16x128xf32>
    %318 = vector.extract_strided_slice %305 {offsets = [0, 256], sizes = [16, 128], strides = [1, 1]} : vector<16x512xf32> to vector<16x128xf32>
    %319 = math.tanh %318 : vector<16x128xf32>
    %320 = vector.extract_strided_slice %305 {offsets = [0, 384], sizes = [16, 128], strides = [1, 1]} : vector<16x512xf32> to vector<16x128xf32>
    %321 = arith.negf %320 : vector<16x128xf32>
    %322 = math.exp %321 : vector<16x128xf32>
    %cst_88 = arith.constant 1.000000e+00 : f32
    %323 = vector.broadcast %cst_88 : f32 to vector<16x128xf32>
    %324 = arith.addf %323, %322 : vector<16x128xf32>
    %325 = arith.divf %323, %324 : vector<16x128xf32>
    %326 = arith.mulf %317, %299 : vector<16x128xf32>
    %327 = arith.mulf %311, %319 : vector<16x128xf32>
    %328 = arith.addf %326, %327 : vector<16x128xf32>
    %329 = math.tanh %328 : vector<16x128xf32>
    %330 = arith.mulf %325, %329 : vector<16x128xf32>
    %c32_89 = arith.constant 32 : index
    %c0_90 = arith.constant 0 : index
    %331 = vector.load %arg17[%c32_89, %c0_90] : memref<128x512xf32, #tpu.memory_space<vmem>>, vector<16x512xf32>
    %332 = arith.truncf %330 : vector<16x128xf32> to vector<16x128xbf16>
    %cst_91 = arith.constant dense<0.000000e+00> : vector<16x512xf32>
    %333 = tpu.matmul %332, %268, %cst_91 {dimension_numbers = #tpu.dot_dimension_numbers<[1], [0], [0], [1], [0, 0, 1, 1], [], []>} : vector<16x128xbf16>, vector<128x512xbf16>, vector<16x512xf32> -> vector<16x512xf32>
    %334 = arith.addf %331, %333 : vector<16x512xf32>
    %335 = vector.extract_strided_slice %334 {offsets = [0, 0], sizes = [16, 128], strides = [1, 1]} : vector<16x512xf32> to vector<16x128xf32>
    %336 = arith.negf %335 : vector<16x128xf32>
    %337 = math.exp %336 : vector<16x128xf32>
    %cst_92 = arith.constant 1.000000e+00 : f32
    %338 = vector.broadcast %cst_92 : f32 to vector<16x128xf32>
    %339 = arith.addf %338, %337 : vector<16x128xf32>
    %340 = arith.divf %338, %339 : vector<16x128xf32>
    %341 = vector.extract_strided_slice %334 {offsets = [0, 128], sizes = [16, 128], strides = [1, 1]} : vector<16x512xf32> to vector<16x128xf32>
    %342 = arith.negf %341 : vector<16x128xf32>
    %343 = math.exp %342 : vector<16x128xf32>
    %cst_93 = arith.constant 1.000000e+00 : f32
    %344 = vector.broadcast %cst_93 : f32 to vector<16x128xf32>
    %345 = arith.addf %344, %343 : vector<16x128xf32>
    %346 = arith.divf %344, %345 : vector<16x128xf32>
    %347 = vector.extract_strided_slice %334 {offsets = [0, 256], sizes = [16, 128], strides = [1, 1]} : vector<16x512xf32> to vector<16x128xf32>
    %348 = math.tanh %347 : vector<16x128xf32>
    %349 = vector.extract_strided_slice %334 {offsets = [0, 384], sizes = [16, 128], strides = [1, 1]} : vector<16x512xf32> to vector<16x128xf32>
    %350 = arith.negf %349 : vector<16x128xf32>
    %351 = math.exp %350 : vector<16x128xf32>
    %cst_94 = arith.constant 1.000000e+00 : f32
    %352 = vector.broadcast %cst_94 : f32 to vector<16x128xf32>
    %353 = arith.addf %352, %351 : vector<16x128xf32>
    %354 = arith.divf %352, %353 : vector<16x128xf32>
    %355 = arith.mulf %346, %328 : vector<16x128xf32>
    %356 = arith.mulf %340, %348 : vector<16x128xf32>
    %357 = arith.addf %355, %356 : vector<16x128xf32>
    %358 = math.tanh %357 : vector<16x128xf32>
    %359 = arith.mulf %354, %358 : vector<16x128xf32>
    %c48_95 = arith.constant 48 : index
    %c0_96 = arith.constant 0 : index
    %360 = vector.load %arg17[%c48_95, %c0_96] : memref<128x512xf32, #tpu.memory_space<vmem>>, vector<16x512xf32>
    %361 = arith.truncf %359 : vector<16x128xf32> to vector<16x128xbf16>
    %cst_97 = arith.constant dense<0.000000e+00> : vector<16x512xf32>
    %362 = tpu.matmul %361, %268, %cst_97 {dimension_numbers = #tpu.dot_dimension_numbers<[1], [0], [0], [1], [0, 0, 1, 1], [], []>} : vector<16x128xbf16>, vector<128x512xbf16>, vector<16x512xf32> -> vector<16x512xf32>
    %363 = arith.addf %360, %362 : vector<16x512xf32>
    %364 = vector.extract_strided_slice %363 {offsets = [0, 0], sizes = [16, 128], strides = [1, 1]} : vector<16x512xf32> to vector<16x128xf32>
    %365 = arith.negf %364 : vector<16x128xf32>
    %366 = math.exp %365 : vector<16x128xf32>
    %cst_98 = arith.constant 1.000000e+00 : f32
    %367 = vector.broadcast %cst_98 : f32 to vector<16x128xf32>
    %368 = arith.addf %367, %366 : vector<16x128xf32>
    %369 = arith.divf %367, %368 : vector<16x128xf32>
    %370 = vector.extract_strided_slice %363 {offsets = [0, 128], sizes = [16, 128], strides = [1, 1]} : vector<16x512xf32> to vector<16x128xf32>
    %371 = arith.negf %370 : vector<16x128xf32>
    %372 = math.exp %371 : vector<16x128xf32>
    %cst_99 = arith.constant 1.000000e+00 : f32
    %373 = vector.broadcast %cst_99 : f32 to vector<16x128xf32>
    %374 = arith.addf %373, %372 : vector<16x128xf32>
    %375 = arith.divf %373, %374 : vector<16x128xf32>
    %376 = vector.extract_strided_slice %363 {offsets = [0, 256], sizes = [16, 128], strides = [1, 1]} : vector<16x512xf32> to vector<16x128xf32>
    %377 = math.tanh %376 : vector<16x128xf32>
    %378 = vector.extract_strided_slice %363 {offsets = [0, 384], sizes = [16, 128], strides = [1, 1]} : vector<16x512xf32> to vector<16x128xf32>
    %379 = arith.negf %378 : vector<16x128xf32>
    %380 = math.exp %379 : vector<16x128xf32>
    %cst_100 = arith.constant 1.000000e+00 : f32
    %381 = vector.broadcast %cst_100 : f32 to vector<16x128xf32>
    %382 = arith.addf %381, %380 : vector<16x128xf32>
    %383 = arith.divf %381, %382 : vector<16x128xf32>
    %384 = arith.mulf %375, %357 : vector<16x128xf32>
    %385 = arith.mulf %369, %377 : vector<16x128xf32>
    %386 = arith.addf %384, %385 : vector<16x128xf32>
    %387 = math.tanh %386 : vector<16x128xf32>
    %388 = arith.mulf %383, %387 : vector<16x128xf32>
    %c64_101 = arith.constant 64 : index
    %c0_102 = arith.constant 0 : index
    %389 = vector.load %arg17[%c64_101, %c0_102] : memref<128x512xf32, #tpu.memory_space<vmem>>, vector<16x512xf32>
    %390 = arith.truncf %388 : vector<16x128xf32> to vector<16x128xbf16>
    %cst_103 = arith.constant dense<0.000000e+00> : vector<16x512xf32>
    %391 = tpu.matmul %390, %268, %cst_103 {dimension_numbers = #tpu.dot_dimension_numbers<[1], [0], [0], [1], [0, 0, 1, 1], [], []>} : vector<16x128xbf16>, vector<128x512xbf16>, vector<16x512xf32> -> vector<16x512xf32>
    %392 = arith.addf %389, %391 : vector<16x512xf32>
    %393 = vector.extract_strided_slice %392 {offsets = [0, 0], sizes = [16, 128], strides = [1, 1]} : vector<16x512xf32> to vector<16x128xf32>
    %394 = arith.negf %393 : vector<16x128xf32>
    %395 = math.exp %394 : vector<16x128xf32>
    %cst_104 = arith.constant 1.000000e+00 : f32
    %396 = vector.broadcast %cst_104 : f32 to vector<16x128xf32>
    %397 = arith.addf %396, %395 : vector<16x128xf32>
    %398 = arith.divf %396, %397 : vector<16x128xf32>
    %399 = vector.extract_strided_slice %392 {offsets = [0, 128], sizes = [16, 128], strides = [1, 1]} : vector<16x512xf32> to vector<16x128xf32>
    %400 = arith.negf %399 : vector<16x128xf32>
    %401 = math.exp %400 : vector<16x128xf32>
    %cst_105 = arith.constant 1.000000e+00 : f32
    %402 = vector.broadcast %cst_105 : f32 to vector<16x128xf32>
    %403 = arith.addf %402, %401 : vector<16x128xf32>
    %404 = arith.divf %402, %403 : vector<16x128xf32>
    %405 = vector.extract_strided_slice %392 {offsets = [0, 256], sizes = [16, 128], strides = [1, 1]} : vector<16x512xf32> to vector<16x128xf32>
    %406 = math.tanh %405 : vector<16x128xf32>
    %407 = vector.extract_strided_slice %392 {offsets = [0, 384], sizes = [16, 128], strides = [1, 1]} : vector<16x512xf32> to vector<16x128xf32>
    %408 = arith.negf %407 : vector<16x128xf32>
    %409 = math.exp %408 : vector<16x128xf32>
    %cst_106 = arith.constant 1.000000e+00 : f32
    %410 = vector.broadcast %cst_106 : f32 to vector<16x128xf32>
    %411 = arith.addf %410, %409 : vector<16x128xf32>
    %412 = arith.divf %410, %411 : vector<16x128xf32>
    %413 = arith.mulf %404, %386 : vector<16x128xf32>
    %414 = arith.mulf %398, %406 : vector<16x128xf32>
    %415 = arith.addf %413, %414 : vector<16x128xf32>
    %416 = math.tanh %415 : vector<16x128xf32>
    %417 = arith.mulf %412, %416 : vector<16x128xf32>
    %c80_107 = arith.constant 80 : index
    %c0_108 = arith.constant 0 : index
    %418 = vector.load %arg17[%c80_107, %c0_108] : memref<128x512xf32, #tpu.memory_space<vmem>>, vector<16x512xf32>
    %419 = arith.truncf %417 : vector<16x128xf32> to vector<16x128xbf16>
    %cst_109 = arith.constant dense<0.000000e+00> : vector<16x512xf32>
    %420 = tpu.matmul %419, %268, %cst_109 {dimension_numbers = #tpu.dot_dimension_numbers<[1], [0], [0], [1], [0, 0, 1, 1], [], []>} : vector<16x128xbf16>, vector<128x512xbf16>, vector<16x512xf32> -> vector<16x512xf32>
    %421 = arith.addf %418, %420 : vector<16x512xf32>
    %422 = vector.extract_strided_slice %421 {offsets = [0, 0], sizes = [16, 128], strides = [1, 1]} : vector<16x512xf32> to vector<16x128xf32>
    %423 = arith.negf %422 : vector<16x128xf32>
    %424 = math.exp %423 : vector<16x128xf32>
    %cst_110 = arith.constant 1.000000e+00 : f32
    %425 = vector.broadcast %cst_110 : f32 to vector<16x128xf32>
    %426 = arith.addf %425, %424 : vector<16x128xf32>
    %427 = arith.divf %425, %426 : vector<16x128xf32>
    %428 = vector.extract_strided_slice %421 {offsets = [0, 128], sizes = [16, 128], strides = [1, 1]} : vector<16x512xf32> to vector<16x128xf32>
    %429 = arith.negf %428 : vector<16x128xf32>
    %430 = math.exp %429 : vector<16x128xf32>
    %cst_111 = arith.constant 1.000000e+00 : f32
    %431 = vector.broadcast %cst_111 : f32 to vector<16x128xf32>
    %432 = arith.addf %431, %430 : vector<16x128xf32>
    %433 = arith.divf %431, %432 : vector<16x128xf32>
    %434 = vector.extract_strided_slice %421 {offsets = [0, 256], sizes = [16, 128], strides = [1, 1]} : vector<16x512xf32> to vector<16x128xf32>
    %435 = math.tanh %434 : vector<16x128xf32>
    %436 = vector.extract_strided_slice %421 {offsets = [0, 384], sizes = [16, 128], strides = [1, 1]} : vector<16x512xf32> to vector<16x128xf32>
    %437 = arith.negf %436 : vector<16x128xf32>
    %438 = math.exp %437 : vector<16x128xf32>
    %cst_112 = arith.constant 1.000000e+00 : f32
    %439 = vector.broadcast %cst_112 : f32 to vector<16x128xf32>
    %440 = arith.addf %439, %438 : vector<16x128xf32>
    %441 = arith.divf %439, %440 : vector<16x128xf32>
    %442 = arith.mulf %433, %415 : vector<16x128xf32>
    %443 = arith.mulf %427, %435 : vector<16x128xf32>
    %444 = arith.addf %442, %443 : vector<16x128xf32>
    %445 = math.tanh %444 : vector<16x128xf32>
    %446 = arith.mulf %441, %445 : vector<16x128xf32>
    %c96_113 = arith.constant 96 : index
    %c0_114 = arith.constant 0 : index
    %447 = vector.load %arg17[%c96_113, %c0_114] : memref<128x512xf32, #tpu.memory_space<vmem>>, vector<16x512xf32>
    %448 = arith.truncf %446 : vector<16x128xf32> to vector<16x128xbf16>
    %cst_115 = arith.constant dense<0.000000e+00> : vector<16x512xf32>
    %449 = tpu.matmul %448, %268, %cst_115 {dimension_numbers = #tpu.dot_dimension_numbers<[1], [0], [0], [1], [0, 0, 1, 1], [], []>} : vector<16x128xbf16>, vector<128x512xbf16>, vector<16x512xf32> -> vector<16x512xf32>
    %450 = arith.addf %447, %449 : vector<16x512xf32>
    %451 = vector.extract_strided_slice %450 {offsets = [0, 0], sizes = [16, 128], strides = [1, 1]} : vector<16x512xf32> to vector<16x128xf32>
    %452 = arith.negf %451 : vector<16x128xf32>
    %453 = math.exp %452 : vector<16x128xf32>
    %cst_116 = arith.constant 1.000000e+00 : f32
    %454 = vector.broadcast %cst_116 : f32 to vector<16x128xf32>
    %455 = arith.addf %454, %453 : vector<16x128xf32>
    %456 = arith.divf %454, %455 : vector<16x128xf32>
    %457 = vector.extract_strided_slice %450 {offsets = [0, 128], sizes = [16, 128], strides = [1, 1]} : vector<16x512xf32> to vector<16x128xf32>
    %458 = arith.negf %457 : vector<16x128xf32>
    %459 = math.exp %458 : vector<16x128xf32>
    %cst_117 = arith.constant 1.000000e+00 : f32
    %460 = vector.broadcast %cst_117 : f32 to vector<16x128xf32>
    %461 = arith.addf %460, %459 : vector<16x128xf32>
    %462 = arith.divf %460, %461 : vector<16x128xf32>
    %463 = vector.extract_strided_slice %450 {offsets = [0, 256], sizes = [16, 128], strides = [1, 1]} : vector<16x512xf32> to vector<16x128xf32>
    %464 = math.tanh %463 : vector<16x128xf32>
    %465 = vector.extract_strided_slice %450 {offsets = [0, 384], sizes = [16, 128], strides = [1, 1]} : vector<16x512xf32> to vector<16x128xf32>
    %466 = arith.negf %465 : vector<16x128xf32>
    %467 = math.exp %466 : vector<16x128xf32>
    %cst_118 = arith.constant 1.000000e+00 : f32
    %468 = vector.broadcast %cst_118 : f32 to vector<16x128xf32>
    %469 = arith.addf %468, %467 : vector<16x128xf32>
    %470 = arith.divf %468, %469 : vector<16x128xf32>
    %471 = arith.mulf %462, %444 : vector<16x128xf32>
    %472 = arith.mulf %456, %464 : vector<16x128xf32>
    %473 = arith.addf %471, %472 : vector<16x128xf32>
    %474 = math.tanh %473 : vector<16x128xf32>
    %475 = arith.mulf %470, %474 : vector<16x128xf32>
    %c112_119 = arith.constant 112 : index
    %c0_120 = arith.constant 0 : index
    %476 = vector.load %arg17[%c112_119, %c0_120] : memref<128x512xf32, #tpu.memory_space<vmem>>, vector<16x512xf32>
    %477 = arith.truncf %475 : vector<16x128xf32> to vector<16x128xbf16>
    %cst_121 = arith.constant dense<0.000000e+00> : vector<16x512xf32>
    %478 = tpu.matmul %477, %268, %cst_121 {dimension_numbers = #tpu.dot_dimension_numbers<[1], [0], [0], [1], [0, 0, 1, 1], [], []>} : vector<16x128xbf16>, vector<128x512xbf16>, vector<16x512xf32> -> vector<16x512xf32>
    %479 = arith.addf %476, %478 : vector<16x512xf32>
    %480 = vector.extract_strided_slice %479 {offsets = [0, 0], sizes = [16, 128], strides = [1, 1]} : vector<16x512xf32> to vector<16x128xf32>
    %481 = arith.negf %480 : vector<16x128xf32>
    %482 = math.exp %481 : vector<16x128xf32>
    %cst_122 = arith.constant 1.000000e+00 : f32
    %483 = vector.broadcast %cst_122 : f32 to vector<16x128xf32>
    %484 = arith.addf %483, %482 : vector<16x128xf32>
    %485 = arith.divf %483, %484 : vector<16x128xf32>
    %486 = vector.extract_strided_slice %479 {offsets = [0, 128], sizes = [16, 128], strides = [1, 1]} : vector<16x512xf32> to vector<16x128xf32>
    %487 = arith.negf %486 : vector<16x128xf32>
    %488 = math.exp %487 : vector<16x128xf32>
    %cst_123 = arith.constant 1.000000e+00 : f32
    %489 = vector.broadcast %cst_123 : f32 to vector<16x128xf32>
    %490 = arith.addf %489, %488 : vector<16x128xf32>
    %491 = arith.divf %489, %490 : vector<16x128xf32>
    %492 = vector.extract_strided_slice %479 {offsets = [0, 256], sizes = [16, 128], strides = [1, 1]} : vector<16x512xf32> to vector<16x128xf32>
    %493 = math.tanh %492 : vector<16x128xf32>
    %494 = vector.extract_strided_slice %479 {offsets = [0, 384], sizes = [16, 128], strides = [1, 1]} : vector<16x512xf32> to vector<16x128xf32>
    %495 = arith.negf %494 : vector<16x128xf32>
    %496 = math.exp %495 : vector<16x128xf32>
    %cst_124 = arith.constant 1.000000e+00 : f32
    %497 = vector.broadcast %cst_124 : f32 to vector<16x128xf32>
    %498 = arith.addf %497, %496 : vector<16x128xf32>
    %499 = arith.divf %497, %498 : vector<16x128xf32>
    %500 = arith.mulf %491, %473 : vector<16x128xf32>
    %501 = arith.mulf %485, %493 : vector<16x128xf32>
    %502 = arith.addf %500, %501 : vector<16x128xf32>
    %503 = math.tanh %502 : vector<16x128xf32>
    %504 = arith.mulf %499, %503 : vector<16x128xf32>
    %c1_125 = arith.constant 1 : index
    %c0_126 = arith.constant 0 : index
    %c0_127 = arith.constant 0 : index
    %505 = vector.load %arg15[%c1_125, %c0_126, %c0_127] : memref<2x16x128xf32, #tpu.memory_space<vmem>>, vector<1x16x128xf32>
    %506 = vector.shape_cast %505 : vector<1x16x128xf32> to vector<16x128xf32>
    %507 = vector.shape_cast %504 : vector<16x128xf32> to vector<1x16x128xf32>
    tpu.vector_store %arg15[%c1_125, %c0_126, %c0_127], %507 {strides = array<i32>} : memref<2x16x128xf32, #tpu.memory_space<vmem>>, vector<1x16x128xf32>,
    %c1_128 = arith.constant 1 : index
    %c0_129 = arith.constant 0 : index
    %c0_130 = arith.constant 0 : index
    %508 = vector.load %arg16[%c1_128, %c0_129, %c0_130] : memref<2x16x128xf32, #tpu.memory_space<vmem>>, vector<1x16x128xf32>
    %509 = vector.shape_cast %508 : vector<1x16x128xf32> to vector<16x128xf32>
    %510 = vector.shape_cast %502 : vector<16x128xf32> to vector<1x16x128xf32>
    tpu.vector_store %arg16[%c1_128, %c0_129, %c0_130], %510 {strides = array<i32>} : memref<2x16x128xf32, #tpu.memory_space<vmem>>, vector<1x16x128xf32>,
    %c0_i32_131 = arith.constant 0 : i32
    %511 = arith.cmpi eq, %arg0, %c0_i32_131 : i32
    %512 = arith.extui %511 : i1 to i32
    %c0_i32_132 = arith.constant 0 : i32
    %513 = arith.cmpi ne, %512, %c0_i32_132 : i32
    scf.if %513 {
      %c0_133 = arith.constant 0 : index
      %c0_134 = arith.constant 0 : index
      %c0_135 = arith.constant 0 : index
      %514 = vector.load %arg15[%c0_133, %c0_134, %c0_135] : memref<2x16x128xf32, #tpu.memory_space<vmem>>, vector<2x16x128xf32>
      %c0_136 = arith.constant 0 : index
      %c0_137 = arith.constant 0 : index
      %c0_138 = arith.constant 0 : index
      %515 = vector.load %arg13[%c0_136, %c0_137, %c0_138] : memref<2x16x128xf32, #tpu.memory_space<vmem>>, vector<2x16x128xf32>
      tpu.vector_store %arg13[%c0_136, %c0_137, %c0_138], %514 {strides = array<i32>} : memref<2x16x128xf32, #tpu.memory_space<vmem>>, vector<2x16x128xf32>,
      %c0_139 = arith.constant 0 : index
      %c0_140 = arith.constant 0 : index
      %c0_141 = arith.constant 0 : index
      %516 = vector.load %arg16[%c0_139, %c0_140, %c0_141] : memref<2x16x128xf32, #tpu.memory_space<vmem>>, vector<2x16x128xf32>
      %c0_142 = arith.constant 0 : index
      %c0_143 = arith.constant 0 : index
      %c0_144 = arith.constant 0 : index
      %517 = vector.load %arg14[%c0_142, %c0_143, %c0_144] : memref<2x16x128xf32, #tpu.memory_space<vmem>>, vector<2x16x128xf32>
      tpu.vector_store %arg14[%c0_142, %c0_143, %c0_144], %516 {strides = array<i32>} : memref<2x16x128xf32, #tpu.memory_space<vmem>>, vector<2x16x128xf32>,
      %c1_145 = arith.constant 1 : index
      %c0_146 = arith.constant 0 : index
      %c0_147 = arith.constant 0 : index
      %518 = vector.load %arg15[%c1_145, %c0_146, %c0_147] : memref<2x16x128xf32, #tpu.memory_space<vmem>>, vector<1x16x128xf32>
      %519 = vector.shape_cast %518 : vector<1x16x128xf32> to vector<16x128xf32>
      %520 = arith.truncf %519 : vector<16x128xf32> to vector<16x128xbf16>
      %c0_148 = arith.constant 0 : index
      %c0_149 = arith.constant 0 : index
      %521 = vector.load %arg10[%c0_148, %c0_149] : memref<128x1xbf16, #tpu.memory_space<vmem>>, vector<128x1xbf16>
      %cst_150 = arith.constant dense<0.000000e+00> : vector<16x1xf32>
      %522 = tpu.matmul %520, %521, %cst_150 {dimension_numbers = #tpu.dot_dimension_numbers<[1], [0], [0], [1], [0, 0, 1, 1], [], []>} : vector<16x128xbf16>, vector<128x1xbf16>, vector<16x1xf32> -> vector<16x1xf32>
      %c0_151 = arith.constant 0 : index
      %c0_152 = arith.constant 0 : index
      %523 = vector.load %arg11[%c0_151, %c0_152] : memref<1x1xf32, #tpu.memory_space<vmem>>, vector<1x1xf32>
      %524 = vector.broadcast %523 : vector<1x1xf32> to vector<16x1xf32>
      %525 = arith.addf %522, %524 : vector<16x1xf32>
      %526 = arith.negf %525 : vector<16x1xf32>
      %527 = math.exp %526 : vector<16x1xf32>
      %cst_153 = arith.constant 1.000000e+00 : f32
      %528 = vector.broadcast %cst_153 : f32 to vector<16x1xf32>
      %529 = arith.addf %528, %527 : vector<16x1xf32>
      %530 = arith.divf %528, %529 : vector<16x1xf32>
      %c0_154 = arith.constant 0 : index
      %c0_155 = arith.constant 0 : index
      %531 = vector.load %arg12[%c0_154, %c0_155] : memref<16x1xf32, #tpu.memory_space<vmem>>, vector<16x1xf32>
      tpu.vector_store %arg12[%c0_154, %c0_155], %530 {strides = array<i32>} : memref<16x1xf32, #tpu.memory_space<vmem>>, vector<16x1xf32>,
    } else {
    }
    return
  }
  func.func @transform_0(%arg0: i32) -> (i32, i32) {
    %c0_i32 = arith.constant 0 : i32
    %c0_i32_0 = arith.constant 0 : i32
    return %arg0, %c0_i32 : i32, i32
  }
  func.func @transform_1(%arg0: i32) -> (i32, i32, i32) {
    %c0_i32 = arith.constant 0 : i32
    %c0_i32_0 = arith.constant 0 : i32
    %c0_i32_1 = arith.constant 0 : i32
    %c0_i32_2 = arith.constant 0 : i32
    return %c0_i32, %c0_i32_0, %c0_i32_1 : i32, i32, i32
  }
  func.func @transform_2(%arg0: i32) -> (i32, i32, i32) {
    %c0_i32 = arith.constant 0 : i32
    %c0_i32_0 = arith.constant 0 : i32
    %c0_i32_1 = arith.constant 0 : i32
    %c0_i32_2 = arith.constant 0 : i32
    return %c0_i32, %c0_i32_0, %c0_i32_1 : i32, i32, i32
  }
  func.func @transform_3(%arg0: i32) -> (i32, i32) {
    %c0_i32 = arith.constant 0 : i32
    %c0_i32_0 = arith.constant 0 : i32
    %c0_i32_1 = arith.constant 0 : i32
    return %c0_i32, %c0_i32_0 : i32, i32
  }
  func.func @transform_4(%arg0: i32) -> (i32, i32) {
    %c0_i32 = arith.constant 0 : i32
    %c0_i32_0 = arith.constant 0 : i32
    %c0_i32_1 = arith.constant 0 : i32
    return %c0_i32, %c0_i32_0 : i32, i32
  }
  func.func @transform_5(%arg0: i32) -> (i32, i32) {
    %c0_i32 = arith.constant 0 : i32
    %c0_i32_0 = arith.constant 0 : i32
    %c0_i32_1 = arith.constant 0 : i32
    return %c0_i32, %c0_i32_0 : i32, i32
  }
  func.func @transform_6(%arg0: i32) -> (i32, i32) {
    %c0_i32 = arith.constant 0 : i32
    %c0_i32_0 = arith.constant 0 : i32
    %c0_i32_1 = arith.constant 0 : i32
    return %c0_i32, %c0_i32_0 : i32, i32
  }
  func.func @transform_7(%arg0: i32) -> (i32, i32) {
    %c0_i32 = arith.constant 0 : i32
    %c0_i32_0 = arith.constant 0 : i32
    %c0_i32_1 = arith.constant 0 : i32
    return %c0_i32, %c0_i32_0 : i32, i32
  }
  func.func @transform_8(%arg0: i32) -> (i32, i32) {
    %c0_i32 = arith.constant 0 : i32
    %c0_i32_0 = arith.constant 0 : i32
    %c0_i32_1 = arith.constant 0 : i32
    return %c0_i32, %c0_i32_0 : i32, i32
  }
  func.func @transform_9(%arg0: i32) -> (i32, i32) {
    %c0_i32 = arith.constant 0 : i32
    %c0_i32_0 = arith.constant 0 : i32
    %c0_i32_1 = arith.constant 0 : i32
    return %c0_i32, %c0_i32_0 : i32, i32
  }
  func.func @transform_10(%arg0: i32) -> (i32, i32) {
    %c0_i32 = arith.constant 0 : i32
    %c0_i32_0 = arith.constant 0 : i32
    %c0_i32_1 = arith.constant 0 : i32
    return %c0_i32, %c0_i32_0 : i32, i32
  }
  func.func @transform_11(%arg0: i32) -> (i32, i32) {
    %c0_i32 = arith.constant 0 : i32
    %c0_i32_0 = arith.constant 0 : i32
    %c0_i32_1 = arith.constant 0 : i32
    return %c0_i32, %c0_i32_0 : i32, i32
  }
  func.func @transform_12(%arg0: i32) -> (i32, i32, i32) {
    %c0_i32 = arith.constant 0 : i32
    %c0_i32_0 = arith.constant 0 : i32
    %c0_i32_1 = arith.constant 0 : i32
    %c0_i32_2 = arith.constant 0 : i32
    return %c0_i32, %c0_i32_0, %c0_i32_1 : i32, i32, i32
  }
  func.func @transform_13(%arg0: i32) -> (i32, i32, i32) {
    %c0_i32 = arith.constant 0 : i32
    %c0_i32_0 = arith.constant 0 : i32
    %c0_i32_1 = arith.constant 0 : i32
    %c0_i32_2 = arith.constant 0 : i32
    return %c0_i32, %c0_i32_0, %c0_i32_1 : i32, i32, i32
  }
}

</mosaic_0001>

<llo_original>
// kernel: sentiment_rnn_forward.1
$region0: #{sentiment_rnn_forward.1}
  #allocation0 [shape = 'u32[]', space=smem, size = 0x4, offset = 0x4, fixed_abs, tag = 'smem constant byte address 0x4 - core index']
  #allocation1 [shape = 'u32[144,128]{1,0:T(1,128)}', space=vmem, size = 0x12000, scoped, tag = 'internal scratch']
  #allocation2 [shape = 'f32[2,16,128]{2,1,0:T(8,128)}', space=vmem, size = 0x4000, scoped, tag = 'scratch operand']
  #allocation3 [shape = 'f32[2,16,128]{2,1,0:T(8,128)}', space=vmem, size = 0x4000, scoped, tag = 'scratch operand']
  #allocation4 [shape = 'f32[128,512]{1,0:T(8,128)}', space=vmem, size = 0x40000, scoped, tag = 'scratch operand']
  #allocation5 [shape = 'f32[1,1]{1,0:T(1,128)S(1)}', space=vmem, size = 0x200, scoped, tag = 'scoped memory for sentiment_rnn_forward.1']
  %s0 = inlined_call_operand.vmem [shape: bf16[128,128], index: 0, kind: input, shape index: {}]
  %s1 = inlined_call_operand.vmem [shape: f32[2,16,128], index: 1, kind: input, shape index: {}]
  %s2 = inlined_call_operand.vmem [shape: f32[2,16,128], index: 2, kind: input, shape index: {}]
  %s3 = inlined_call_operand.vmem [shape: bf16[128,512], index: 3, kind: input, shape index: {}]
  %s4 = inlined_call_operand.vmem [shape: bf16[128,512], index: 4, kind: input, shape index: {}]
  %s5 = inlined_call_operand.vmem [shape: f32[1,512], index: 5, kind: input, shape index: {}]
  %s6 = inlined_call_operand.vmem [shape: bf16[128,512], index: 6, kind: input, shape index: {}]
  %s7 = inlined_call_operand.hbm [shape: bf16[128,512], index: 7, kind: input, shape index: {}]
  %s8 = inlined_call_operand.vmem [shape: f32[1,512], index: 8, kind: input, shape index: {}]
  %s9 = inlined_call_operand.vmem [shape: bf16[128,1], index: 9, kind: input, shape index: {}]
  %s10 = inlined_call_operand.<no memory space> [shape: f32[1,1], index: 10, kind: input, shape index: {}]
  %s11 = inlined_call_operand.vmem [shape: f32[16,1], index: 11, kind: output, shape index: {0}]
  %s12 = inlined_call_operand.vmem [shape: f32[2,16,128], index: 12, kind: output, shape index: {1}]
  %s13 = inlined_call_operand.vmem [shape: f32[2,16,128], index: 13, kind: output, shape index: {2}]
  %14 = xla_tuple %s11, %s12, %s13
  %s15 = sld [smem:[#allocation0]]
  $region82: #{sentiment_rnn_forward.1} parent=0
    _
  %s17 = ssub.s32 1, %s15
  %s18 = scalar_select 0, %s17, %s15
  %v19 = vstv %s10
  %20 = vst [vmem:[#allocation5] sm:$0x1] %v19
  $region1: #{sentiment_rnn_forward.1} parent=0
    #allocation6 [shape = 'u8[131072]{0}', space=vmem, size = 0x20000, scoped, tag = 'input window, operand 7, single buffered']
    #allocation7 [shape = 's32[1]{0}', space=sflag, size = 0x4, scoped, tag = 'scoped memory for sentiment_rnn_forward.1']
    %21 = vsyncpa [#allocation7], 0
    // Predicated region
    $region2: #{sentiment_rnn_forward.1} parent=1 // pred_check
      _
    $region3: #{sentiment_rnn_forward.1} parent=1 // pred_check_branch
      %23 = sbr.rel (0) target = $region5
    $region4: #{sentiment_rnn_forward.1} parent=1 // pred_region
      _
    $region5: #{sentiment_rnn_forward.1} parent=1 // pred_fallthru
      _
    // Predicated region
    $region6: #{sentiment_rnn_forward.1} parent=1 // pred_check
      _
    $region7: #{sentiment_rnn_forward.1} parent=1 // pred_check_branch
      %25 = sbr.rel (0) target = $region9
    $region8: #{sentiment_rnn_forward.1} parent=1 // pred_region
      _
    $region9: #{sentiment_rnn_forward.1} parent=1 // pred_fallthru
      _
    // Predicated region
    $region10: #{sentiment_rnn_forward.1} parent=1 // pred_check
      _
    $region11: #{sentiment_rnn_forward.1} parent=1 // pred_check_branch
      %27 = sbr.rel (0) target = $region13
    $region12: #{sentiment_rnn_forward.1} parent=1 // pred_region
      _
    $region13: #{sentiment_rnn_forward.1} parent=1 // pred_fallthru
      _
    // Predicated region
    $region14: #{sentiment_rnn_forward.1} parent=1 // pred_check
      _
    $region15: #{sentiment_rnn_forward.1} parent=1 // pred_check_branch
      %29 = sbr.rel (0) target = $region17
    $region16: #{sentiment_rnn_forward.1} parent=1 // pred_region
      _
    $region17: #{sentiment_rnn_forward.1} parent=1 // pred_fallthru
      _
    // Predicated region
    $region18: #{sentiment_rnn_forward.1} parent=1 // pred_check
      _
    $region19: #{sentiment_rnn_forward.1} parent=1 // pred_check_branch
      %31 = sbr.rel (0) target = $region21
    $region20: #{sentiment_rnn_forward.1} parent=1 // pred_region
      _
    $region21: #{sentiment_rnn_forward.1} parent=1 // pred_fallthru
      _
    // Predicated region
    $region22: #{sentiment_rnn_forward.1} parent=1 // pred_check
      _
    $region23: #{sentiment_rnn_forward.1} parent=1 // pred_check_branch
      %33 = sbr.rel (0) target = $region25
    $region24: #{sentiment_rnn_forward.1} parent=1 // pred_region
      _
    $region25: #{sentiment_rnn_forward.1} parent=1 // pred_fallthru
      _
    // Predicated region
    $region26: #{sentiment_rnn_forward.1} parent=1 // pred_check
      _
    $region27: #{sentiment_rnn_forward.1} parent=1 // pred_check_branch
      %35 = sbr.rel (0) target = $region29
    $region28: #{sentiment_rnn_forward.1} parent=1 // pred_region
      _
    $region29: #{sentiment_rnn_forward.1} parent=1 // pred_fallthru
      _
    // Predicated region
    $region30: #{sentiment_rnn_forward.1} parent=1 // pred_check
      _
    $region31: #{sentiment_rnn_forward.1} parent=1 // pred_check_branch
      %37 = sbr.rel (0) target = $region33
    $region32: #{sentiment_rnn_forward.1} parent=1 // pred_region
      %s39 = ssub.s32 4096, 4096
      %40 = vsyncadd [#allocation7], %s39
      %s41 = sshll.u32 [#allocation6], 4
      %s42 = int_to_ptr.vmem [resolvable:$true] %s41
      %47 = dma.hbm_to_vmem [thread:$0]  %s7, 4096, %s42, [#allocation7], 256, 256, 16
    $region33: #{sentiment_rnn_forward.1} parent=1 // pred_fallthru
      _
    // Predicated region
    $region34: #{sentiment_rnn_forward.1} parent=1 // pred_check
      _
    $region35: #{sentiment_rnn_forward.1} parent=1 // pred_check_branch
      %49 = sbr.rel (0) target = $region37
    $region36: #{sentiment_rnn_forward.1} parent=1 // pred_region
      _
    $region37: #{sentiment_rnn_forward.1} parent=1 // pred_fallthru
      _
    // Predicated region
    $region38: #{sentiment_rnn_forward.1} parent=1 // pred_check
      _
    $region39: #{sentiment_rnn_forward.1} parent=1 // pred_check_branch
      %51 = sbr.rel (0) target = $region41
    $region40: #{sentiment_rnn_forward.1} parent=1 // pred_region
      _
    $region41: #{sentiment_rnn_forward.1} parent=1 // pred_fallthru
      _
    // Predicated region
    $region42: #{sentiment_rnn_forward.1} parent=1 // pred_check
      _
    $region43: #{sentiment_rnn_forward.1} parent=1 // pred_check_branch
      %53 = sbr.rel (0) target = $region45
    $region44: #{sentiment_rnn_forward.1} parent=1 // pred_region
      _
    $region45: #{sentiment_rnn_forward.1} parent=1 // pred_fallthru
      _
    // Predicated region
    $region46: #{sentiment_rnn_forward.1} parent=1 // pred_check
      _
    $region47: #{sentiment_rnn_forward.1} parent=1 // pred_check_branch
      %55 = sbr.rel (0) target = $region49
    $region48: #{sentiment_rnn_forward.1} parent=1 // pred_region
      %56 = dma.done [#allocation7], 4096
    $region49: #{sentiment_rnn_forward.1} parent=1 // pred_fallthru
      _
    %p58 = scmp.eq.s32.totalorder 0, 0
    // Predicated region
    $region50: #{sentiment_rnn_forward.1} parent=1 // pred_check
      %p59 = pneg %p58
    $region51: #{sentiment_rnn_forward.1} parent=1 // pred_check_branch
      %61 = sbr.rel (%p59) target = $region53
    $region52: #{sentiment_rnn_forward.1} parent=1 // pred_region
      %v62 = vld [vmem:[%s1] sm:$0xff]
      %v63 = vld [vmem:[%s1 + $0x8] sm:$0xff]
      %v64 = vld [vmem:[%s1 + $0x10] sm:$0xff]
      %v65 = vld [vmem:[%s1 + $0x18] sm:$0xff]
      %66 = vst [vmem:[#allocation2] sm:$0xff] %v62
      %67 = vst [vmem:[#allocation2 + $0x8] sm:$0xff] %v63
      %68 = vst [vmem:[#allocation2 + $0x10] sm:$0xff] %v64
      %69 = vst [vmem:[#allocation2 + $0x18] sm:$0xff] %v65
      %v70 = vld [vmem:[%s2] sm:$0xff]
      %v71 = vld [vmem:[%s2 + $0x8] sm:$0xff]
      %v72 = vld [vmem:[%s2 + $0x10] sm:$0xff]
      %v73 = vld [vmem:[%s2 + $0x18] sm:$0xff]
      %74 = vst [vmem:[#allocation3] sm:$0xff] %v70
      %75 = vst [vmem:[#allocation3 + $0x8] sm:$0xff] %v71
      %76 = vst [vmem:[#allocation3 + $0x10] sm:$0xff] %v72
      %77 = vst [vmem:[#allocation3 + $0x18] sm:$0xff] %v73
    $region53: #{sentiment_rnn_forward.1} parent=1 // pred_fallthru
      _
    %v78 = vld [vmem:[%s0] sm:$0xf]
    %v79 = vld [vmem:[%s0 + $0x4] sm:$0xf]
    %v80 = vld [vmem:[%s0 + $0x8] sm:$0xf]
    %v81 = vld [vmem:[%s0 + $0xc] sm:$0xf]
    %v82 = vld [vmem:[%s0 + $0x10] sm:$0xf]
    %v83 = vld [vmem:[%s0 + $0x14] sm:$0xf]
    %v84 = vld [vmem:[%s0 + $0x18] sm:$0xf]
    %v85 = vld [vmem:[%s0 + $0x1c] sm:$0xf]
    %v86 = vld [vmem:[%s0 + $0x20] sm:$0xf]
    %v87 = vld [vmem:[%s0 + $0x24] sm:$0xf]
    %v88 = vld [vmem:[%s0 + $0x28] sm:$0xf]
    %v89 = vld [vmem:[%s0 + $0x2c] sm:$0xf]
    %v90 = vld [vmem:[%s0 + $0x30] sm:$0xf]
    %v91 = vld [vmem:[%s0 + $0x34] sm:$0xf]
    %v92 = vld [vmem:[%s0 + $0x38] sm:$0xf]
    %v93 = vld [vmem:[%s0 + $0x3c] sm:$0xf]
    %v94 = vld [vmem:[%s3] sm:$0xff]
    %v95 = vld [vmem:[%s3 + $0x8] sm:$0xff]
    %v96 = vld [vmem:[%s3 + $0x10] sm:$0xff]
    %v97 = vld [vmem:[%s3 + $0x18] sm:$0xff]
    %v98 = vld [vmem:[%s3 + $0x20] sm:$0xff]
    %v99 = vld [vmem:[%s3 + $0x28] sm:$0xff]
    %v100 = vld [vmem:[%s3 + $0x30] sm:$0xff]
    %v101 = vld [vmem:[%s3 + $0x38] sm:$0xff]
    %v102 = vld [vmem:[%s3 + $0x40] sm:$0xff]
    %v103 = vld [vmem:[%s3 + $0x48] sm:$0xff]
    %v104 = vld [vmem:[%s3 + $0x50] sm:$0xff]
    %v105 = vld [vmem:[%s3 + $0x58] sm:$0xff]
    %v106 = vld [vmem:[%s3 + $0x60] sm:$0xff]
    %v107 = vld [vmem:[%s3 + $0x68] sm:$0xff]
    %v108 = vld [vmem:[%s3 + $0x70] sm:$0xff]
    %v109 = vld [vmem:[%s3 + $0x78] sm:$0xff]
    %v110 = vld [vmem:[%s3 + $0x80] sm:$0xff]
    %v111 = vld [vmem:[%s3 + $0x88] sm:$0xff]
    %v112 = vld [vmem:[%s3 + $0x90] sm:$0xff]
    %v113 = vld [vmem:[%s3 + $0x98] sm:$0xff]
    %v114 = vld [vmem:[%s3 + $0xa0] sm:$0xff]
    %v115 = vld [vmem:[%s3 + $0xa8] sm:$0xff]
    %v116 = vld [vmem:[%s3 + $0xb0] sm:$0xff]
    %v117 = vld [vmem:[%s3 + $0xb8] sm:$0xff]
    %v118 = vld [vmem:[%s3 + $0xc0] sm:$0xff]
    %v119 = vld [vmem:[%s3 + $0xc8] sm:$0xff]
    %v120 = vld [vmem:[%s3 + $0xd0] sm:$0xff]
    %v121 = vld [vmem:[%s3 + $0xd8] sm:$0xff]
    %v122 = vld [vmem:[%s3 + $0xe0] sm:$0xff]
    %v123 = vld [vmem:[%s3 + $0xe8] sm:$0xff]
    %v124 = vld [vmem:[%s3 + $0xf0] sm:$0xff]
    %v125 = vld [vmem:[%s3 + $0xf8] sm:$0xff]
    %v126 = vld [vmem:[%s5] sm:$0xf]
    %v128 = vlaneseq
    %v129 = vshrl.u32 %v128, 7
    %v130 = vsub.s32 0, %v129
    %v131 = vrot.slane %v126, %v130
    %v132 = vlaneseq
    %v133 = vshrl.u32 %v132, 7
    %v134 = vsub.s32 1, %v133
    %v135 = vrot.slane %v126, %v134
    %v136 = vlaneseq
    %v137 = vshrl.u32 %v136, 7
    %v138 = vsub.s32 2, %v137
    %v139 = vrot.slane %v126, %v138
    %v140 = vlaneseq
    %v141 = vshrl.u32 %v140, 7
    %v142 = vsub.s32 3, %v141
    %v143 = vrot.slane %v126, %v142
    %v164 = vunpack.c.l.b16 %v78
    %v165 = vunpack.c.l.b16 %v79
    %v166 = vunpack.c.l.b16 %v80
    %v167 = vunpack.c.l.b16 %v81
    %v168 = vunpack.c.l.b16 %v82
    %v169 = vunpack.c.l.b16 %v83
    %v170 = vunpack.c.l.b16 %v84
    %v171 = vunpack.c.l.b16 %v85
    %v172 = vunpack.c.l.b16 %v86
    %v173 = vunpack.c.l.b16 %v87
    %v174 = vunpack.c.l.b16 %v88
    %v175 = vunpack.c.l.b16 %v89
    %v176 = vunpack.c.l.b16 %v90
    %v177 = vunpack.c.l.b16 %v91
    %v178 = vunpack.c.l.b16 %v92
    %v179 = vunpack.c.l.b16 %v93
    %v180 = vpack.c.b16 %v165, %v164
    %v181 = vpack.c.b16 %v167, %v166
    %v182 = vpack.c.b16 %v169, %v168
    %v183 = vpack.c.b16 %v171, %v170
    %v184 = vpack.c.b16 %v173, %v172
    %v185 = vpack.c.b16 %v175, %v174
    %v186 = vpack.c.b16 %v177, %v176
    %v187 = vpack.c.b16 %v179, %v178
    %v228 = vunpack.c.l.b16 %v94
    %v229 = vunpack.c.h.b16 %v94
    %v230 = vunpack.c.l.b16 %v95
    %v231 = vunpack.c.h.b16 %v95
    %v232 = vunpack.c.l.b16 %v96
    %v233 = vunpack.c.h.b16 %v96
    %v234 = vunpack.c.l.b16 %v97
    %v235 = vunpack.c.h.b16 %v97
    %v236 = vunpack.c.l.b16 %v98
    %v237 = vunpack.c.h.b16 %v98
    %v238 = vunpack.c.l.b16 %v99
    %v239 = vunpack.c.h.b16 %v99
    %v240 = vunpack.c.l.b16 %v100
    %v241 = vunpack.c.h.b16 %v100
    %v242 = vunpack.c.l.b16 %v101
    %v243 = vunpack.c.h.b16 %v101
    %v244 = vunpack.c.l.b16 %v102
    %v245 = vunpack.c.h.b16 %v102
    %v246 = vunpack.c.l.b16 %v103
    %v247 = vunpack.c.h.b16 %v103
    %v248 = vunpack.c.l.b16 %v104
    %v249 = vunpack.c.h.b16 %v104
    %v250 = vunpack.c.l.b16 %v105
    %v251 = vunpack.c.h.b16 %v105
    %v252 = vunpack.c.l.b16 %v106
    %v253 = vunpack.c.h.b16 %v106
    %v254 = vunpack.c.l.b16 %v107
    %v255 = vunpack.c.h.b16 %v107
    %v256 = vunpack.c.l.b16 %v108
    %v257 = vunpack.c.h.b16 %v108
    %v258 = vunpack.c.l.b16 %v109
    %v259 = vunpack.c.h.b16 %v109
    %v260 = vunpack.c.l.b16 %v110
    %v261 = vunpack.c.h.b16 %v110
    %v262 = vunpack.c.l.b16 %v111
    %v263 = vunpack.c.h.b16 %v111
    %v264 = vunpack.c.l.b16 %v112
    %v265 = vunpack.c.h.b16 %v112
    %v266 = vunpack.c.l.b16 %v113
    %v267 = vunpack.c.h.b16 %v113
    %v268 = vunpack.c.l.b16 %v114
    %v269 = vunpack.c.h.b16 %v114
    %v270 = vunpack.c.l.b16 %v115
    %v271 = vunpack.c.h.b16 %v115
    %v272 = vunpack.c.l.b16 %v116
    %v273 = vunpack.c.h.b16 %v116
    %v274 = vunpack.c.l.b16 %v117
    %v275 = vunpack.c.h.b16 %v117
    %v276 = vunpack.c.l.b16 %v118
    %v277 = vunpack.c.h.b16 %v118
    %v278 = vunpack.c.l.b16 %v119
    %v279 = vunpack.c.h.b16 %v119
    %v280 = vunpack.c.l.b16 %v120
    %v281 = vunpack.c.h.b16 %v120
    %v282 = vunpack.c.l.b16 %v121
    %v283 = vunpack.c.h.b16 %v121
    %v284 = vunpack.c.l.b16 %v122
    %v285 = vunpack.c.h.b16 %v122
    %v286 = vunpack.c.l.b16 %v123
    %v287 = vunpack.c.h.b16 %v123
    %v288 = vunpack.c.l.b16 %v124
    %v289 = vunpack.c.h.b16 %v124
    %v290 = vunpack.c.l.b16 %v125
    %v291 = vunpack.c.h.b16 %v125
    %v292 = vpack.c.b16 %v232, %v228
    %v293 = vpack.c.b16 %v233, %v229
    %v294 = vpack.c.b16 %v234, %v230
    %v295 = vpack.c.b16 %v235, %v231
    %v296 = vpack.c.b16 %v240, %v236
    %v297 = vpack.c.b16 %v241, %v237
    %v298 = vpack.c.b16 %v242, %v238
    %v299 = vpack.c.b16 %v243, %v239
    %v300 = vpack.c.b16 %v248, %v244
    %v301 = vpack.c.b16 %v249, %v245
    %v302 = vpack.c.b16 %v250, %v246
    %v303 = vpack.c.b16 %v251, %v247
    %v304 = vpack.c.b16 %v256, %v252
    %v305 = vpack.c.b16 %v257, %v253
    %v306 = vpack.c.b16 %v258, %v254
    %v307 = vpack.c.b16 %v259, %v255
    %v308 = vpack.c.b16 %v264, %v260
    %v309 = vpack.c.b16 %v265, %v261
    %v310 = vpack.c.b16 %v266, %v262
    %v311 = vpack.c.b16 %v267, %v263
    %v312 = vpack.c.b16 %v272, %v268
    %v313 = vpack.c.b16 %v273, %v269
    %v314 = vpack.c.b16 %v274, %v270
    %v315 = vpack.c.b16 %v275, %v271
    %v316 = vpack.c.b16 %v280, %v276
    %v317 = vpack.c.b16 %v281, %v277
    %v318 = vpack.c.b16 %v282, %v278
    %v319 = vpack.c.b16 %v283, %v279
    %v320 = vpack.c.b16 %v288, %v284
    %v321 = vpack.c.b16 %v289, %v285
    %v322 = vpack.c.b16 %v290, %v286
    %v323 = vpack.c.b16 %v291, %v287
    %356 = vmatprep.subr.bf16.mxu0 %v293
    %357 = vmatpush1.bf16.msra.mxu0 %v292
    %358 = vmatprep.subr.bf16.mxu0 %v297
    %359 = vmatpush1.bf16.msra.mxu0 %v296
    %360 = vmatprep.subr.bf16.mxu0 %v301
    %361 = vmatpush1.bf16.msra.mxu0 %v300
    %362 = vmatprep.subr.bf16.mxu0 %v305
    %363 = vmatpush1.bf16.msra.mxu0 %v304
    %364 = vmatprep.subr.bf16.mxu0 %v309
    %365 = vmatpush1.bf16.msra.mxu0 %v308
    %366 = vmatprep.subr.bf16.mxu0 %v313
    %367 = vmatpush1.bf16.msra.mxu0 %v312
    %368 = vmatprep.subr.bf16.mxu0 %v317
    %369 = vmatpush1.bf16.msra.mxu0 %v316
    %370 = vmatprep.subr.bf16.mxu0 %v321
    %371 = vmatpush1.bf16.msra.mxu0 %v320
    %372 = vmatprep.subr.bf16.mxu0 0
    %373 = vmatpush1.bf16.msra.mxu0 0
    %374 = vmatprep.subr.bf16.mxu0 0
    %375 = vmatpush1.bf16.msra.mxu0 0
    %376 = vmatprep.subr.bf16.mxu0 0
    %377 = vmatpush1.bf16.msra.mxu0 0
    %378 = vmatprep.subr.bf16.mxu0 0
    %379 = vmatpush1.bf16.msra.mxu0 0
    %380 = vmatprep.subr.bf16.mxu0 0
    %381 = vmatpush1.bf16.msra.mxu0 0
    %382 = vmatprep.subr.bf16.mxu0 0
    %383 = vmatpush1.bf16.msra.mxu0 0
    %384 = vmatprep.subr.bf16.mxu0 0
    %385 = vmatpush1.bf16.msra.mxu0 0
    %386 = vmatprep.subr.bf16.mxu0 0
    %387 = vmatpush1.bf16.msra.mxu0 0
    %388 = vmatprep.mubr.bf16.mxu0 0
    %389 = vmatmul.mubr.bf16.gmra.mrb[0].mxu0 %v180
    %v390 = vpop.f32.mrb[0].mxu0
    %v391 = vadd.f32 %v131, %v390
    %v392 = vpop.f32.mrb[0].mxu0
    %v393 = vadd.f32 %v135, %v392
    %v394 = vpop.f32.mrb[0].mxu0
    %v395 = vadd.f32 %v131, %v394
    %v396 = vpop.f32.mrb[0].mxu0
    %v397 = vadd.f32 %v135, %v396
    %398 = vmatprep.mubr.bf16.mxu0 0
    %399 = vmatmul.mubr.bf16.gmra.mrb[0].mxu0 %v181
    %v400 = vpop.f32.mrb[0].mxu0
    %v401 = vadd.f32 %v131, %v400
    %v402 = vpop.f32.mrb[0].mxu0
    %v403 = vadd.f32 %v135, %v402
    %v404 = vpop.f32.mrb[0].mxu0
    %v405 = vadd.f32 %v131, %v404
    %v406 = vpop.f32.mrb[0].mxu0
    %v407 = vadd.f32 %v135, %v406
    %408 = vmatprep.mubr.bf16.mxu0 0
    %409 = vmatmul.mubr.bf16.gmra.mrb[0].mxu0 %v182
    %v410 = vpop.f32.mrb[0].mxu0
    %v411 = vadd.f32 %v131, %v410
    %v412 = vpop.f32.mrb[0].mxu0
    %v413 = vadd.f32 %v135, %v412
    %v414 = vpop.f32.mrb[0].mxu0
    %v415 = vadd.f32 %v131, %v414
    %v416 = vpop.f32.mrb[0].mxu0
    %v417 = vadd.f32 %v135, %v416
    %418 = vmatprep.mubr.bf16.mxu0 0
    %419 = vmatmul.mubr.bf16.gmra.mrb[0].mxu0 %v183
    %v420 = vpop.f32.mrb[0].mxu0
    %v421 = vadd.f32 %v131, %v420
    %v422 = vpop.f32.mrb[0].mxu0
    %v423 = vadd.f32 %v135, %v422
    %v424 = vpop.f32.mrb[0].mxu0
    %v425 = vadd.f32 %v131, %v424
    %v426 = vpop.f32.mrb[0].mxu0
    %v427 = vadd.f32 %v135, %v426
    %428 = vmatprep.mubr.bf16.mxu0 0
    %429 = vmatmul.mubr.bf16.gmra.mrb[0].mxu0 %v184
    %v430 = vpop.f32.mrb[0].mxu0
    %v431 = vadd.f32 %v131, %v430
    %v432 = vpop.f32.mrb[0].mxu0
    %v433 = vadd.f32 %v135, %v432
    %v434 = vpop.f32.mrb[0].mxu0
    %v435 = vadd.f32 %v131, %v434
    %v436 = vpop.f32.mrb[0].mxu0
    %v437 = vadd.f32 %v135, %v436
    %438 = vmatprep.mubr.bf16.mxu0 0
    %439 = vmatmul.mubr.bf16.gmra.mrb[0].mxu0 %v185
    %v440 = vpop.f32.mrb[0].mxu0
    %v441 = vadd.f32 %v131, %v440
    %v442 = vpop.f32.mrb[0].mxu0
    %v443 = vadd.f32 %v135, %v442
    %v444 = vpop.f32.mrb[0].mxu0
    %v445 = vadd.f32 %v131, %v444
    %v446 = vpop.f32.mrb[0].mxu0
    %v447 = vadd.f32 %v135, %v446
    %448 = vmatprep.mubr.bf16.mxu0 0
    %449 = vmatmul.mubr.bf16.gmra.mrb[0].mxu0 %v186
    %v450 = vpop.f32.mrb[0].mxu0
    %v451 = vadd.f32 %v131, %v450
    %v452 = vpop.f32.mrb[0].mxu0
    %v453 = vadd.f32 %v135, %v452
    %v454 = vpop.f32.mrb[0].mxu0
    %v455 = vadd.f32 %v131, %v454
    %v456 = vpop.f32.mrb[0].mxu0
    %v457 = vadd.f32 %v135, %v456
    %458 = vmatprep.mubr.bf16.mxu0 0
    %459 = vmatmul.mubr.bf16.gmra.mrb[0].mxu0 %v187
    %v460 = vpop.f32.mrb[0].mxu0
    %v461 = vadd.f32 %v131, %v460
    %v462 = vpop.f32.mrb[0].mxu0
    %v463 = vadd.f32 %v135, %v462
    %v464 = vpop.f32.mrb[0].mxu0
    %v465 = vadd.f32 %v131, %v464
    %v466 = vpop.f32.mrb[0].mxu0
    %v467 = vadd.f32 %v135, %v466
    %468 = vdwg.mxu0
    %469 = vmatprep.subr.bf16.mxu0 %v295
    %470 = vmatpush1.bf16.msra.mxu0 %v294
    %471 = vmatprep.subr.bf16.mxu0 %v299
    %472 = vmatpush1.bf16.msra.mxu0 %v298
    %473 = vmatprep.subr.bf16.mxu0 %v303
    %474 = vmatpush1.bf16.msra.mxu0 %v302
    %475 = vmatprep.subr.bf16.mxu0 %v307
    %476 = vmatpush1.bf16.msra.mxu0 %v306
    %477 = vmatprep.subr.bf16.mxu0 %v311
    %478 = vmatpush1.bf16.msra.mxu0 %v310
    %479 = vmatprep.subr.bf16.mxu0 %v315
    %480 = vmatpush1.bf16.msra.mxu0 %v314
    %481 = vmatprep.subr.bf16.mxu0 %v319
    %482 = vmatpush1.bf16.msra.mxu0 %v318
    %483 = vmatprep.subr.bf16.mxu0 %v323
    %484 = vmatpush1.bf16.msra.mxu0 %v322
    %485 = vmatprep.subr.bf16.mxu0 0
    %486 = vmatpush1.bf16.msra.mxu0 0
    %487 = vmatprep.subr.bf16.mxu0 0
    %488 = vmatpush1.bf16.msra.mxu0 0
    %489 = vmatprep.subr.bf16.mxu0 0
    %490 = vmatpush1.bf16.msra.mxu0 0
    %491 = vmatprep.subr.bf16.mxu0 0
    %492 = vmatpush1.bf16.msra.mxu0 0
    %493 = vmatprep.subr.bf16.mxu0 0
    %494 = vmatpush1.bf16.msra.mxu0 0
    %495 = vmatprep.subr.bf16.mxu0 0
    %496 = vmatpush1.bf16.msra.mxu0 0
    %497 = vmatprep.subr.bf16.mxu0 0
    %498 = vmatpush1.bf16.msra.mxu0 0
    %499 = vmatprep.subr.bf16.mxu0 0
    %500 = vmatpush1.bf16.msra.mxu0 0
    %501 = vmatprep.mubr.bf16.mxu0 0
    %502 = vmatmul.mubr.bf16.gmra.mrb[0].mxu0 %v180
    %v503 = vpop.f32.mrb[0].mxu0
    %v504 = vadd.f32 %v139, %v503
    %v505 = vpop.f32.mrb[0].mxu0
    %v506 = vadd.f32 %v143, %v505
    %v507 = vpop.f32.mrb[0].mxu0
    %v508 = vadd.f32 %v139, %v507
    %v509 = vpop.f32.mrb[0].mxu0
    %v510 = vadd.f32 %v143, %v509
    %511 = vmatprep.mubr.bf16.mxu0 0
    %512 = vmatmul.mubr.bf16.gmra.mrb[0].mxu0 %v181
    %v513 = vpop.f32.mrb[0].mxu0
    %v514 = vadd.f32 %v139, %v513
    %v515 = vpop.f32.mrb[0].mxu0
    %v516 = vadd.f32 %v143, %v515
    %v517 = vpop.f32.mrb[0].mxu0
    %v518 = vadd.f32 %v139, %v517
    %v519 = vpop.f32.mrb[0].mxu0
    %v520 = vadd.f32 %v143, %v519
    %521 = vmatprep.mubr.bf16.mxu0 0
    %522 = vmatmul.mubr.bf16.gmra.mrb[0].mxu0 %v182
    %v523 = vpop.f32.mrb[0].mxu0
    %v524 = vadd.f32 %v139, %v523
    %v525 = vpop.f32.mrb[0].mxu0
    %v526 = vadd.f32 %v143, %v525
    %v527 = vpop.f32.mrb[0].mxu0
    %v528 = vadd.f32 %v139, %v527
    %v529 = vpop.f32.mrb[0].mxu0
    %v530 = vadd.f32 %v143, %v529
    %531 = vmatprep.mubr.bf16.mxu0 0
    %532 = vmatmul.mubr.bf16.gmra.mrb[0].mxu0 %v183
    %v533 = vpop.f32.mrb[0].mxu0
    %v534 = vadd.f32 %v139, %v533
    %v535 = vpop.f32.mrb[0].mxu0
    %v536 = vadd.f32 %v143, %v535
    %v537 = vpop.f32.mrb[0].mxu0
    %v538 = vadd.f32 %v139, %v537
    %v539 = vpop.f32.mrb[0].mxu0
    %v540 = vadd.f32 %v143, %v539
    %541 = vmatprep.mubr.bf16.mxu0 0
    %542 = vmatmul.mubr.bf16.gmra.mrb[0].mxu0 %v184
    %v543 = vpop.f32.mrb[0].mxu0
    %v544 = vadd.f32 %v139, %v543
    %v545 = vpop.f32.mrb[0].mxu0
    %v546 = vadd.f32 %v143, %v545
    %v547 = vpop.f32.mrb[0].mxu0
    %v548 = vadd.f32 %v139, %v547
    %v549 = vpop.f32.mrb[0].mxu0
    %v550 = vadd.f32 %v143, %v549
    %551 = vmatprep.mubr.bf16.mxu0 0
    %552 = vmatmul.mubr.bf16.gmra.mrb[0].mxu0 %v185
    %v553 = vpop.f32.mrb[0].mxu0
    %v554 = vadd.f32 %v139, %v553
    %v555 = vpop.f32.mrb[0].mxu0
    %v556 = vadd.f32 %v143, %v555
    %v557 = vpop.f32.mrb[0].mxu0
    %v558 = vadd.f32 %v139, %v557
    %v559 = vpop.f32.mrb[0].mxu0
    %v560 = vadd.f32 %v143, %v559
    %561 = vmatprep.mubr.bf16.mxu0 0
    %562 = vmatmul.mubr.bf16.gmra.mrb[0].mxu0 %v186
    %v563 = vpop.f32.mrb[0].mxu0
    %v564 = vadd.f32 %v139, %v563
    %v565 = vpop.f32.mrb[0].mxu0
    %v566 = vadd.f32 %v143, %v565
    %v567 = vpop.f32.mrb[0].mxu0
    %v568 = vadd.f32 %v139, %v567
    %v569 = vpop.f32.mrb[0].mxu0
    %v570 = vadd.f32 %v143, %v569
    %571 = vmatprep.mubr.bf16.mxu0 0
    %572 = vmatmul.mubr.bf16.gmra.mrb[0].mxu0 %v187
    %v573 = vpop.f32.mrb[0].mxu0
    %v574 = vadd.f32 %v139, %v573
    %v575 = vpop.f32.mrb[0].mxu0
    %v576 = vadd.f32 %v143, %v575
    %v577 = vpop.f32.mrb[0].mxu0
    %v578 = vadd.f32 %v139, %v577
    %v579 = vpop.f32.mrb[0].mxu0
    %v580 = vadd.f32 %v143, %v579
    %581 = vdwg.mxu0
    %582 = vst [vmem:[#allocation4] sm:$0xff] %v391
    %583 = vst [vmem:[#allocation4 + $0x8] sm:$0xff] %v393
    %584 = vst [vmem:[#allocation4 + $0x10] sm:$0xff] %v504
    %585 = vst [vmem:[#allocation4 + $0x18] sm:$0xff] %v506
    %586 = vst [vmem:[#allocation4 + $0x20] sm:$0xff] %v395
    %587 = vst [vmem:[#allocation4 + $0x28] sm:$0xff] %v397
    %588 = vst [vmem:[#allocation4 + $0x30] sm:$0xff] %v508
    %589 = vst [vmem:[#allocation4 + $0x38] sm:$0xff] %v510
    %590 = vst [vmem:[#allocation4 + $0x40] sm:$0xff] %v401
    %591 = vst [vmem:[#allocation4 + $0x48] sm:$0xff] %v403
    %592 = vst [vmem:[#allocation4 + $0x50] sm:$0xff] %v514
    %593 = vst [vmem:[#allocation4 + $0x58] sm:$0xff] %v516
    %594 = vst [vmem:[#allocation4 + $0x60] sm:$0xff] %v405
    %595 = vst [vmem:[#allocation4 + $0x68] sm:$0xff] %v407
    %596 = vst [vmem:[#allocation4 + $0x70] sm:$0xff] %v518
    %597 = vst [vmem:[#allocation4 + $0x78] sm:$0xff] %v520
    %598 = vst [vmem:[#allocation4 + $0x80] sm:$0xff] %v411
    %599 = vst [vmem:[#allocation4 + $0x88] sm:$0xff] %v413
    %600 = vst [vmem:[#allocation4 + $0x90] sm:$0xff] %v524
    %601 = vst [vmem:[#allocation4 + $0x98] sm:$0xff] %v526
    %602 = vst [vmem:[#allocation4 + $0xa0] sm:$0xff] %v415
    %603 = vst [vmem:[#allocation4 + $0xa8] sm:$0xff] %v417
    %604 = vst [vmem:[#allocation4 + $0xb0] sm:$0xff] %v528
    %605 = vst [vmem:[#allocation4 + $0xb8] sm:$0xff] %v530
    %606 = vst [vmem:[#allocation4 + $0xc0] sm:$0xff] %v421
    %607 = vst [vmem:[#allocation4 + $0xc8] sm:$0xff] %v423
    %608 = vst [vmem:[#allocation4 + $0xd0] sm:$0xff] %v534
    %609 = vst [vmem:[#allocation4 + $0xd8] sm:$0xff] %v536
    %610 = vst [vmem:[#allocation4 + $0xe0] sm:$0xff] %v425
    %611 = vst [vmem:[#allocation4 + $0xe8] sm:$0xff] %v427
    %612 = vst [vmem:[#allocation4 + $0xf0] sm:$0xff] %v538
    %613 = vst [vmem:[#allocation4 + $0xf8] sm:$0xff] %v540
    %614 = vst [vmem:[#allocation4 + $0x100] sm:$0xff] %v431
    %615 = vst [vmem:[#allocation4 + $0x108] sm:$0xff] %v433
    %616 = vst [vmem:[#allocation4 + $0x110] sm:$0xff] %v544
    %617 = vst [vmem:[#allocation4 + $0x118] sm:$0xff] %v546
    %618 = vst [vmem:[#allocation4 + $0x120] sm:$0xff] %v435
    %619 = vst [vmem:[#allocation4 + $0x128] sm:$0xff] %v437
    %620 = vst [vmem:[#allocation4 + $0x130] sm:$0xff] %v548
    %621 = vst [vmem:[#allocation4 + $0x138] sm:$0xff] %v550
    %622 = vst [vmem:[#allocation4 + $0x140] sm:$0xff] %v441
    %623 = vst [vmem:[#allocation4 + $0x148] sm:$0xff] %v443
    %624 = vst [vmem:[#allocation4 + $0x150] sm:$0xff] %v554
    %625 = vst [vmem:[#allocation4 + $0x158] sm:$0xff] %v556
    %626 = vst [vmem:[#allocation4 + $0x160] sm:$0xff] %v445
    %627 = vst [vmem:[#allocation4 + $0x168] sm:$0xff] %v447
    %628 = vst [vmem:[#allocation4 + $0x170] sm:$0xff] %v558
    %629 = vst [vmem:[#allocation4 + $0x178] sm:$0xff] %v560
    %630 = vst [vmem:[#allocation4 + $0x180] sm:$0xff] %v451
    %631 = vst [vmem:[#allocation4 + $0x188] sm:$0xff] %v453
    %632 = vst [vmem:[#allocation4 + $0x190] sm:$0xff] %v564
    %633 = vst [vmem:[#allocation4 + $0x198] sm:$0xff] %v566
    %634 = vst [vmem:[#allocation4 + $0x1a0] sm:$0xff] %v455
    %635 = vst [vmem:[#allocation4 + $0x1a8] sm:$0xff] %v457
    %636 = vst [vmem:[#allocation4 + $0x1b0] sm:$0xff] %v568
    %637 = vst [vmem:[#allocation4 + $0x1b8] sm:$0xff] %v570
    %638 = vst [vmem:[#allocation4 + $0x1c0] sm:$0xff] %v461
    %639 = vst [vmem:[#allocation4 + $0x1c8] sm:$0xff] %v463
    %640 = vst [vmem:[#allocation4 + $0x1d0] sm:$0xff] %v574
    %641 = vst [vmem:[#allocation4 + $0x1d8] sm:$0xff] %v576
    %642 = vst [vmem:[#allocation4 + $0x1e0] sm:$0xff] %v465
    %643 = vst [vmem:[#allocation4 + $0x1e8] sm:$0xff] %v467
    %644 = vst [vmem:[#allocation4 + $0x1f0] sm:$0xff] %v578
    %645 = vst [vmem:[#allocation4 + $0x1f8] sm:$0xff] %v580
    %v646 = vld [vmem:[%s4] sm:$0xff]
    %v647 = vld [vmem:[%s4 + $0x8] sm:$0xff]
    %v648 = vld [vmem:[%s4 + $0x10] sm:$0xff]
    %v649 = vld [vmem:[%s4 + $0x18] sm:$0xff]
    %v650 = vld [vmem:[%s4 + $0x20] sm:$0xff]
    %v651 = vld [vmem:[%s4 + $0x28] sm:$0xff]
    %v652 = vld [vmem:[%s4 + $0x30] sm:$0xff]
    %v653 = vld [vmem:[%s4 + $0x38] sm:$0xff]
    %v654 = vld [vmem:[%s4 + $0x40] sm:$0xff]
    %v655 = vld [vmem:[%s4 + $0x48] sm:$0xff]
    %v656 = vld [vmem:[%s4 + $0x50] sm:$0xff]
    %v657 = vld [vmem:[%s4 + $0x58] sm:$0xff]
    %v658 = vld [vmem:[%s4 + $0x60] sm:$0xff]
    %v659 = vld [vmem:[%s4 + $0x68] sm:$0xff]
    %v660 = vld [vmem:[%s4 + $0x70] sm:$0xff]
    %v661 = vld [vmem:[%s4 + $0x78] sm:$0xff]
    %v662 = vld [vmem:[%s4 + $0x80] sm:$0xff]
    %v663 = vld [vmem:[%s4 + $0x88] sm:$0xff]
    %v664 = vld [vmem:[%s4 + $0x90] sm:$0xff]
    %v665 = vld [vmem:[%s4 + $0x98] sm:$0xff]
    %v666 = vld [vmem:[%s4 + $0xa0] sm:$0xff]
    %v667 = vld [vmem:[%s4 + $0xa8] sm:$0xff]
    %v668 = vld [vmem:[%s4 + $0xb0] sm:$0xff]
    %v669 = vld [vmem:[%s4 + $0xb8] sm:$0xff]
    %v670 = vld [vmem:[%s4 + $0xc0] sm:$0xff]
    %v671 = vld [vmem:[%s4 + $0xc8] sm:$0xff]
    %v672 = vld [vmem:[%s4 + $0xd0] sm:$0xff]
    %v673 = vld [vmem:[%s4 + $0xd8] sm:$0xff]
    %v674 = vld [vmem:[%s4 + $0xe0] sm:$0xff]
    %v675 = vld [vmem:[%s4 + $0xe8] sm:$0xff]
    %v676 = vld [vmem:[%s4 + $0xf0] sm:$0xff]
    %v677 = vld [vmem:[%s4 + $0xf8] sm:$0xff]
    %v678 = vld [vmem:[#allocation2] sm:$0xff]
    %v679 = vld [vmem:[#allocation2 + $0x8] sm:$0xff]
    %v680 = vld [vmem:[#allocation3] sm:$0xff]
    %v681 = vld [vmem:[#allocation3 + $0x8] sm:$0xff]
    %v682 = vld [vmem:[#allocation4] sm:$0xff]
    %v683 = vld [vmem:[#allocation4 + $0x8] sm:$0xff]
    %v684 = vld [vmem:[#allocation4 + $0x10] sm:$0xff]
    %v685 = vld [vmem:[#allocation4 + $0x18] sm:$0xff]
    %v686 = vld [vmem:[#allocation4 + $0x20] sm:$0xff]
    %v687 = vld [vmem:[#allocation4 + $0x28] sm:$0xff]
    %v688 = vld [vmem:[#allocation4 + $0x30] sm:$0xff]
    %v689 = vld [vmem:[#allocation4 + $0x38] sm:$0xff]
    %v690 = vpack.c.bf16 %v679, %v678
    %v723 = vunpack.c.l.b16 %v646
    %v724 = vunpack.c.h.b16 %v646
    %v725 = vunpack.c.l.b16 %v647
    %v726 = vunpack.c.h.b16 %v647
    %v727 = vunpack.c.l.b16 %v648
    %v728 = vunpack.c.h.b16 %v648
    %v729 = vunpack.c.l.b16 %v649
    %v730 = vunpack.c.h.b16 %v649
    %v731 = vunpack.c.l.b16 %v650
    %v732 = vunpack.c.h.b16 %v650
    %v733 = vunpack.c.l.b16 %v651
    %v734 = vunpack.c.h.b16 %v651
    %v735 = vunpack.c.l.b16 %v652
    %v736 = vunpack.c.h.b16 %v652
    %v737 = vunpack.c.l.b16 %v653
    %v738 = vunpack.c.h.b16 %v653
    %v739 = vunpack.c.l.b16 %v654
    %v740 = vunpack.c.h.b16 %v654
    %v741 = vunpack.c.l.b16 %v655
    %v742 = vunpack.c.h.b16 %v655
    %v743 = vunpack.c.l.b16 %v656
    %v744 = vunpack.c.h.b16 %v656
    %v745 = vunpack.c.l.b16 %v657
    %v746 = vunpack.c.h.b16 %v657
    %v747 = vunpack.c.l.b16 %v658
    %v748 = vunpack.c.h.b16 %v658
    %v749 = vunpack.c.l.b16 %v659
    %v750 = vunpack.c.h.b16 %v659
    %v751 = vunpack.c.l.b16 %v660
    %v752 = vunpack.c.h.b16 %v660
    %v753 = vunpack.c.l.b16 %v661
    %v754 = vunpack.c.h.b16 %v661
    %v755 = vunpack.c.l.b16 %v662
    %v756 = vunpack.c.h.b16 %v662
    %v757 = vunpack.c.l.b16 %v663
    %v758 = vunpack.c.h.b16 %v663
    %v759 = vunpack.c.l.b16 %v664
    %v760 = vunpack.c.h.b16 %v664
    %v761 = vunpack.c.l.b16 %v665
    %v762 = vunpack.c.h.b16 %v665
    %v763 = vunpack.c.l.b16 %v666
    %v764 = vunpack.c.h.b16 %v666
    %v765 = vunpack.c.l.b16 %v667
    %v766 = vunpack.c.h.b16 %v667
    %v767 = vunpack.c.l.b16 %v668
    %v768 = vunpack.c.h.b16 %v668
    %v769 = vunpack.c.l.b16 %v669
    %v770 = vunpack.c.h.b16 %v669
    %v771 = vunpack.c.l.b16 %v670
    %v772 = vunpack.c.h.b16 %v670
    %v773 = vunpack.c.l.b16 %v671
    %v774 = vunpack.c.h.b16 %v671
    %v775 = vunpack.c.l.b16 %v672
    %v776 = vunpack.c.h.b16 %v672
    %v777 = vunpack.c.l.b16 %v673
    %v778 = vunpack.c.h.b16 %v673
    %v779 = vunpack.c.l.b16 %v674
    %v780 = vunpack.c.h.b16 %v674
    %v781 = vunpack.c.l.b16 %v675
    %v782 = vunpack.c.h.b16 %v675
    %v783 = vunpack.c.l.b16 %v676
    %v784 = vunpack.c.h.b16 %v676
    %v785 = vunpack.c.l.b16 %v677
    %v786 = vunpack.c.h.b16 %v677
    %v787 = vpack.c.b16 %v727, %v723
    %v788 = vpack.c.b16 %v728, %v724
    %v789 = vpack.c.b16 %v729, %v725
    %v790 = vpack.c.b16 %v730, %v726
    %v791 = vpack.c.b16 %v735, %v731
    %v792 = vpack.c.b16 %v736, %v732
    %v793 = vpack.c.b16 %v737, %v733
    %v794 = vpack.c.b16 %v738, %v734
    %v795 = vpack.c.b16 %v743, %v739
    %v796 = vpack.c.b16 %v744, %v740
    %v797 = vpack.c.b16 %v745, %v741
    %v798 = vpack.c.b16 %v746, %v742
    %v799 = vpack.c.b16 %v751, %v747
    %v800 = vpack.c.b16 %v752, %v748
    %v801 = vpack.c.b16 %v753, %v749
    %v802 = vpack.c.b16 %v754, %v750
    %v803 = vpack.c.b16 %v759, %v755
    %v804 = vpack.c.b16 %v760, %v756
    %v805 = vpack.c.b16 %v761, %v757
    %v806 = vpack.c.b16 %v762, %v758
    %v807 = vpack.c.b16 %v767, %v763
    %v808 = vpack.c.b16 %v768, %v764
    %v809 = vpack.c.b16 %v769, %v765
    %v810 = vpack.c.b16 %v770, %v766
    %v811 = vpack.c.b16 %v775, %v771
    %v812 = vpack.c.b16 %v776, %v772
    %v813 = vpack.c.b16 %v777, %v773
    %v814 = vpack.c.b16 %v778, %v774
    %v815 = vpack.c.b16 %v783, %v779
    %v816 = vpack.c.b16 %v784, %v780
    %v817 = vpack.c.b16 %v785, %v781
    %v818 = vpack.c.b16 %v786, %v782
    %851 = vmatprep.subr.bf16.mxu0 %v788
    %852 = vmatpush1.bf16.msra.mxu0 %v787
    %853 = vmatprep.subr.bf16.mxu0 %v792
    %854 = vmatpush1.bf16.msra.mxu0 %v791
    %855 = vmatprep.subr.bf16.mxu0 %v796
    %856 = vmatpush1.bf16.msra.mxu0 %v795
    %857 = vmatprep.subr.bf16.mxu0 %v800
    %858 = vmatpush1.bf16.msra.mxu0 %v799
    %859 = vmatprep.subr.bf16.mxu0 %v804
    %860 = vmatpush1.bf16.msra.mxu0 %v803
    %861 = vmatprep.subr.bf16.mxu0 %v808
    %862 = vmatpush1.bf16.msra.mxu0 %v807
    %863 = vmatprep.subr.bf16.mxu0 %v812
    %864 = vmatpush1.bf16.msra.mxu0 %v811
    %865 = vmatprep.subr.bf16.mxu0 %v816
    %866 = vmatpush1.bf16.msra.mxu0 %v815
    %867 = vmatprep.subr.bf16.mxu0 0
    %868 = vmatpush1.bf16.msra.mxu0 0
    %869 = vmatprep.subr.bf16.mxu0 0
    %870 = vmatpush1.bf16.msra.mxu0 0
    %871 = vmatprep.subr.bf16.mxu0 0
    %872 = vmatpush1.bf16.msra.mxu0 0
    %873 = vmatprep.subr.bf16.mxu0 0
    %874 = vmatpush1.bf16.msra.mxu0 0
    %875 = vmatprep.subr.bf16.mxu0 0
    %876 = vmatpush1.bf16.msra.mxu0 0
    %877 = vmatprep.subr.bf16.mxu0 0
    %878 = vmatpush1.bf16.msra.mxu0 0
    %879 = vmatprep.subr.bf16.mxu0 0
    %880 = vmatpush1.bf16.msra.mxu0 0
    %881 = vmatprep.subr.bf16.mxu0 0
    %882 = vmatpush1.bf16.msra.mxu0 0
    %883 = vmatprep.mubr.bf16.mxu0 0
    %884 = vmatmul.mubr.bf16.gmra.mrb[0].mxu0 %v690
    %v885 = vpop.f32.mrb[0].mxu0
    %v886 = vadd.f32 0.0, %v885
    %v887 = vpop.f32.mrb[0].mxu0
    %v888 = vadd.f32 0.0, %v887
    %v889 = vpop.f32.mrb[0].mxu0
    %v890 = vadd.f32 0.0, %v889
    %v891 = vpop.f32.mrb[0].mxu0
    %v892 = vadd.f32 0.0, %v891
    %893 = vdwg.mxu0
    %894 = vmatprep.subr.bf16.mxu0 %v790
    %895 = vmatpush1.bf16.msra.mxu0 %v789
    %896 = vmatprep.subr.bf16.mxu0 %v794
    %897 = vmatpush1.bf16.msra.mxu0 %v793
    %898 = vmatprep.subr.bf16.mxu0 %v798
    %899 = vmatpush1.bf16.msra.mxu0 %v797
    %900 = vmatprep.subr.bf16.mxu0 %v802
    %901 = vmatpush1.bf16.msra.mxu0 %v801
    %902 = vmatprep.subr.bf16.mxu0 %v806
    %903 = vmatpush1.bf16.msra.mxu0 %v805
    %904 = vmatprep.subr.bf16.mxu0 %v810
    %905 = vmatpush1.bf16.msra.mxu0 %v809
    %906 = vmatprep.subr.bf16.mxu0 %v814
    %907 = vmatpush1.bf16.msra.mxu0 %v813
    %908 = vmatprep.subr.bf16.mxu0 %v818
    %909 = vmatpush1.bf16.msra.mxu0 %v817
    %910 = vmatprep.subr.bf16.mxu0 0
    %911 = vmatpush1.bf16.msra.mxu0 0
    %912 = vmatprep.subr.bf16.mxu0 0
    %913 = vmatpush1.bf16.msra.mxu0 0
    %914 = vmatprep.subr.bf16.mxu0 0
    %915 = vmatpush1.bf16.msra.mxu0 0
    %916 = vmatprep.subr.bf16.mxu0 0
    %917 = vmatpush1.bf16.msra.mxu0 0
    %918 = vmatprep.subr.bf16.mxu0 0
    %919 = vmatpush1.bf16.msra.mxu0 0
    %920 = vmatprep.subr.bf16.mxu0 0
    %921 = vmatpush1.bf16.msra.mxu0 0
    %922 = vmatprep.subr.bf16.mxu0 0
    %923 = vmatpush1.bf16.msra.mxu0 0
    %924 = vmatprep.subr.bf16.mxu0 0
    %925 = vmatpush1.bf16.msra.mxu0 0
    %926 = vmatprep.mubr.bf16.mxu0 0
    %927 = vmatmul.mubr.bf16.gmra.mrb[0].mxu0 %v690
    %v928 = vpop.f32.mrb[0].mxu0
    %v929 = vadd.f32 0.0, %v928
    %v930 = vpop.f32.mrb[0].mxu0
    %v931 = vadd.f32 0.0, %v930
    %v932 = vpop.f32.mrb[0].mxu0
    %v933 = vadd.f32 0.0, %v932
    %v934 = vpop.f32.mrb[0].mxu0
    %v935 = vadd.f32 0.0, %v934
    %936 = vdwg.mxu0
    %v937 = vadd.f32 %v682, %v886
    %v938 = vadd.f32 %v683, %v888
    %v939 = vadd.f32 %v684, %v929
    %v940 = vadd.f32 %v685, %v931
    %v941 = vadd.f32 %v686, %v890
    %v942 = vadd.f32 %v687, %v892
    %v943 = vadd.f32 %v688, %v933
    %v944 = vadd.f32 %v689, %v935
    %v945 = vxor.u32 %v937, 2147483648
    %v946 = vxor.u32 %v941, 2147483648
    %v947 = vmul.f32 %v945, 1.442695
    %v948 = vpow.pop %v947
    %v949 = vmul.f32 %v946, 1.442695
    %v950 = vpow.pop %v949
    %v951 = vadd.f32 %v948, 1.0
    %v952 = vadd.f32 %v950, 1.0
    %v953 = vrcp.pop %v951
    %v954 = vmul.f32 1.0, %v953
    %v955 = vrcp.pop %v952
    %v956 = vmul.f32 1.0, %v955
    %v957 = vxor.u32 %v938, 2147483648
    %v958 = vxor.u32 %v942, 2147483648
    %v959 = vmul.f32 %v957, 1.442695
    %v960 = vpow.pop %v959
    %v961 = vmul.f32 %v958, 1.442695
    %v962 = vpow.pop %v961
    %v963 = vadd.f32 %v960, 1.0
    %v964 = vadd.f32 %v962, 1.0
    %v965 = vrcp.pop %v963
    %v966 = vmul.f32 1.0, %v965
    %v967 = vrcp.pop %v964
    %v968 = vmul.f32 1.0, %v967
    %v969 = vtanh.pop %v939
    %v970 = vtanh.pop %v943
    %v971 = vxor.u32 %v940, 2147483648
    %v972 = vxor.u32 %v944, 2147483648
    %v973 = vmul.f32 %v971, 1.442695
    %v974 = vpow.pop %v973
    %v975 = vmul.f32 %v972, 1.442695
    %v976 = vpow.pop %v975
    %v977 = vadd.f32 %v974, 1.0
    %v978 = vadd.f32 %v976, 1.0
    %v979 = vrcp.pop %v977
    %v980 = vmul.f32 1.0, %v979
    %v981 = vrcp.pop %v978
    %v982 = vmul.f32 1.0, %v981
    %v983 = vmul.f32 %v966, %v680
    %v984 = vmul.f32 %v968, %v681
    %v985 = vmul.f32 %v954, %v969
    %v986 = vmul.f32 %v956, %v970
    %v987 = vadd.f32 %v983, %v985
    %v988 = vadd.f32 %v984, %v986
    %v989 = vtanh.pop %v987
    %v990 = vtanh.pop %v988
    %v991 = vmul.f32 %v980, %v989
    %v992 = vmul.f32 %v982, %v990
    %v993 = vpack.c.bf16 %v992, %v991
    %v994 = vld [vmem:[#allocation4 + $0x40] sm:$0xff]
    %v995 = vld [vmem:[#allocation4 + $0x48] sm:$0xff]
    %v996 = vld [vmem:[#allocation4 + $0x50] sm:$0xff]
    %v997 = vld [vmem:[#allocation4 + $0x58] sm:$0xff]
    %v998 = vld [vmem:[#allocation4 + $0x60] sm:$0xff]
    %v999 = vld [vmem:[#allocation4 + $0x68] sm:$0xff]
    %v1000 = vld [vmem:[#allocation4 + $0x70] sm:$0xff]
    %v1001 = vld [vmem:[#allocation4 + $0x78] sm:$0xff]
    %1002 = vmatprep.subr.bf16.mxu0 %v788
    %1003 = vmatpush1.bf16.msra.mxu0 %v787
    %1004 = vmatprep.subr.bf16.mxu0 %v792
    %1005 = vmatpush1.bf16.msra.mxu0 %v791
    %1006 = vmatprep.subr.bf16.mxu0 %v796
    %1007 = vmatpush1.bf16.msra.mxu0 %v795
    %1008 = vmatprep.subr.bf16.mxu0 %v800
    %1009 = vmatpush1.bf16.msra.mxu0 %v799
    %1010 = vmatprep.subr.bf16.mxu0 %v804
    %1011 = vmatpush1.bf16.msra.mxu0 %v803
    %1012 = vmatprep.subr.bf16.mxu0 %v808
    %1013 = vmatpush1.bf16.msra.mxu0 %v807
    %1014 = vmatprep.subr.bf16.mxu0 %v812
    %1015 = vmatpush1.bf16.msra.mxu0 %v811
    %1016 = vmatprep.subr.bf16.mxu0 %v816
    %1017 = vmatpush1.bf16.msra.mxu0 %v815
    %1018 = vmatprep.subr.bf16.mxu0 0
    %1019 = vmatpush1.bf16.msra.mxu0 0
    %1020 = vmatprep.subr.bf16.mxu0 0
    %1021 = vmatpush1.bf16.msra.mxu0 0
    %1022 = vmatprep.subr.bf16.mxu0 0
    %1023 = vmatpush1.bf16.msra.mxu0 0
    %1024 = vmatprep.subr.bf16.mxu0 0
    %1025 = vmatpush1.bf16.msra.mxu0 0
    %1026 = vmatprep.subr.bf16.mxu0 0
    %1027 = vmatpush1.bf16.msra.mxu0 0
    %1028 = vmatprep.subr.bf16.mxu0 0
    %1029 = vmatpush1.bf16.msra.mxu0 0
    %1030 = vmatprep.subr.bf16.mxu0 0
    %1031 = vmatpush1.bf16.msra.mxu0 0
    %1032 = vmatprep.subr.bf16.mxu0 0
    %1033 = vmatpush1.bf16.msra.mxu0 0
    %1034 = vmatprep.mubr.bf16.mxu0 0
    %1035 = vmatmul.mubr.bf16.gmra.mrb[0].mxu0 %v993
    %v1036 = vpop.f32.mrb[0].mxu0
    %v1037 = vadd.f32 0.0, %v1036
    %v1038 = vpop.f32.mrb[0].mxu0
    %v1039 = vadd.f32 0.0, %v1038
    %v1040 = vpop.f32.mrb[0].mxu0
    %v1041 = vadd.f32 0.0, %v1040
    %v1042 = vpop.f32.mrb[0].mxu0
    %v1043 = vadd.f32 0.0, %v1042
    %1044 = vdwg.mxu0
    %1045 = vmatprep.subr.bf16.mxu0 %v790
    %1046 = vmatpush1.bf16.msra.mxu0 %v789
    %1047 = vmatprep.subr.bf16.mxu0 %v794
    %1048 = vmatpush1.bf16.msra.mxu0 %v793
    %1049 = vmatprep.subr.bf16.mxu0 %v798
    %1050 = vmatpush1.bf16.msra.mxu0 %v797
    %1051 = vmatprep.subr.bf16.mxu0 %v802
    %1052 = vmatpush1.bf16.msra.mxu0 %v801
    %1053 = vmatprep.subr.bf16.mxu0 %v806
    %1054 = vmatpush1.bf16.msra.mxu0 %v805
    %1055 = vmatprep.subr.bf16.mxu0 %v810
    %1056 = vmatpush1.bf16.msra.mxu0 %v809
    %1057 = vmatprep.subr.bf16.mxu0 %v814
    %1058 = vmatpush1.bf16.msra.mxu0 %v813
    %1059 = vmatprep.subr.bf16.mxu0 %v818
    %1060 = vmatpush1.bf16.msra.mxu0 %v817
    %1061 = vmatprep.subr.bf16.mxu0 0
    %1062 = vmatpush1.bf16.msra.mxu0 0
    %1063 = vmatprep.subr.bf16.mxu0 0
    %1064 = vmatpush1.bf16.msra.mxu0 0
    %1065 = vmatprep.subr.bf16.mxu0 0
    %1066 = vmatpush1.bf16.msra.mxu0 0
    %1067 = vmatprep.subr.bf16.mxu0 0
    %1068 = vmatpush1.bf16.msra.mxu0 0
    %1069 = vmatprep.subr.bf16.mxu0 0
    %1070 = vmatpush1.bf16.msra.mxu0 0
    %1071 = vmatprep.subr.bf16.mxu0 0
    %1072 = vmatpush1.bf16.msra.mxu0 0
    %1073 = vmatprep.subr.bf16.mxu0 0
    %1074 = vmatpush1.bf16.msra.mxu0 0
    %1075 = vmatprep.subr.bf16.mxu0 0
    %1076 = vmatpush1.bf16.msra.mxu0 0
    %1077 = vmatprep.mubr.bf16.mxu0 0
    %1078 = vmatmul.mubr.bf16.gmra.mrb[0].mxu0 %v993
    %v1079 = vpop.f32.mrb[0].mxu0
    %v1080 = vadd.f32 0.0, %v1079
    %v1081 = vpop.f32.mrb[0].mxu0
    %v1082 = vadd.f32 0.0, %v1081
    %v1083 = vpop.f32.mrb[0].mxu0
    %v1084 = vadd.f32 0.0, %v1083
    %v1085 = vpop.f32.mrb[0].mxu0
    %v1086 = vadd.f32 0.0, %v1085
    %1087 = vdwg.mxu0
    %v1088 = vadd.f32 %v994, %v1037
    %v1089 = vadd.f32 %v995, %v1039
    %v1090 = vadd.f32 %v996, %v1080
    %v1091 = vadd.f32 %v997, %v1082
    %v1092 = vadd.f32 %v998, %v1041
    %v1093 = vadd.f32 %v999, %v1043
    %v1094 = vadd.f32 %v1000, %v1084
    %v1095 = vadd.f32 %v1001, %v1086
    %v1096 = vxor.u32 %v1088, 2147483648
    %v1097 = vxor.u32 %v1092, 2147483648
    %v1098 = vmul.f32 %v1096, 1.442695
    %v1099 = vpow.pop %v1098
    %v1100 = vmul.f32 %v1097, 1.442695
    %v1101 = vpow.pop %v1100
    %v1102 = vadd.f32 %v1099, 1.0
    %v1103 = vadd.f32 %v1101, 1.0
    %v1104 = vrcp.pop %v1102
    %v1105 = vmul.f32 1.0, %v1104
    %v1106 = vrcp.pop %v1103
    %v1107 = vmul.f32 1.0, %v1106
    %v1108 = vxor.u32 %v1089, 2147483648
    %v1109 = vxor.u32 %v1093, 2147483648
    %v1110 = vmul.f32 %v1108, 1.442695
    %v1111 = vpow.pop %v1110
    %v1112 = vmul.f32 %v1109, 1.442695
    %v1113 = vpow.pop %v1112
    %v1114 = vadd.f32 %v1111, 1.0
    %v1115 = vadd.f32 %v1113, 1.0
    %v1116 = vrcp.pop %v1114
    %v1117 = vmul.f32 1.0, %v1116
    %v1118 = vrcp.pop %v1115
    %v1119 = vmul.f32 1.0, %v1118
    %v1120 = vtanh.pop %v1090
    %v1121 = vtanh.pop %v1094
    %v1122 = vxor.u32 %v1091, 2147483648
    %v1123 = vxor.u32 %v1095, 2147483648
    %v1124 = vmul.f32 %v1122, 1.442695
    %v1125 = vpow.pop %v1124
    %v1126 = vmul.f32 %v1123, 1.442695
    %v1127 = vpow.pop %v1126
    %v1128 = vadd.f32 %v1125, 1.0
    %v1129 = vadd.f32 %v1127, 1.0
    %v1130 = vrcp.pop %v1128
    %v1131 = vmul.f32 1.0, %v1130
    %v1132 = vrcp.pop %v1129
    %v1133 = vmul.f32 1.0, %v1132
    %v1134 = vmul.f32 %v1117, %v987
    %v1135 = vmul.f32 %v1119, %v988
    %v1136 = vmul.f32 %v1105, %v1120
    %v1137 = vmul.f32 %v1107, %v1121
    %v1138 = vadd.f32 %v1134, %v1136
    %v1139 = vadd.f32 %v1135, %v1137
    %v1140 = vtanh.pop %v1138
    %v1141 = vtanh.pop %v1139
    %v1142 = vmul.f32 %v1131, %v1140
    %v1143 = vmul.f32 %v1133, %v1141
    %v1144 = vpack.c.bf16 %v1143, %v1142
    %v1145 = vld [vmem:[#allocation4 + $0x80] sm:$0xff]
    %v1146 = vld [vmem:[#allocation4 + $0x88] sm:$0xff]
    %v1147 = vld [vmem:[#allocation4 + $0x90] sm:$0xff]
    %v1148 = vld [vmem:[#allocation4 + $0x98] sm:$0xff]
    %v1149 = vld [vmem:[#allocation4 + $0xa0] sm:$0xff]
    %v1150 = vld [vmem:[#allocation4 + $0xa8] sm:$0xff]
    %v1151 = vld [vmem:[#allocation4 + $0xb0] sm:$0xff]
    %v1152 = vld [vmem:[#allocation4 + $0xb8] sm:$0xff]
    %1153 = vmatprep.subr.bf16.mxu0 %v788
    %1154 = vmatpush1.bf16.msra.mxu0 %v787
    %1155 = vmatprep.subr.bf16.mxu0 %v792
    %1156 = vmatpush1.bf16.msra.mxu0 %v791
    %1157 = vmatprep.subr.bf16.mxu0 %v796
    %1158 = vmatpush1.bf16.msra.mxu0 %v795
    %1159 = vmatprep.subr.bf16.mxu0 %v800
    %1160 = vmatpush1.bf16.msra.mxu0 %v799
    %1161 = vmatprep.subr.bf16.mxu0 %v804
    %1162 = vmatpush1.bf16.msra.mxu0 %v803
    %1163 = vmatprep.subr.bf16.mxu0 %v808
    %1164 = vmatpush1.bf16.msra.mxu0 %v807
    %1165 = vmatprep.subr.bf16.mxu0 %v812
    %1166 = vmatpush1.bf16.msra.mxu0 %v811
    %1167 = vmatprep.subr.bf16.mxu0 %v816
    %1168 = vmatpush1.bf16.msra.mxu0 %v815
    %1169 = vmatprep.subr.bf16.mxu0 0
    %1170 = vmatpush1.bf16.msra.mxu0 0
    %1171 = vmatprep.subr.bf16.mxu0 0
    %1172 = vmatpush1.bf16.msra.mxu0 0
    %1173 = vmatprep.subr.bf16.mxu0 0
    %1174 = vmatpush1.bf16.msra.mxu0 0
    %1175 = vmatprep.subr.bf16.mxu0 0
    %1176 = vmatpush1.bf16.msra.mxu0 0
    %1177 = vmatprep.subr.bf16.mxu0 0
    %1178 = vmatpush1.bf16.msra.mxu0 0
    %1179 = vmatprep.subr.bf16.mxu0 0
    %1180 = vmatpush1.bf16.msra.mxu0 0
    %1181 = vmatprep.subr.bf16.mxu0 0
    %1182 = vmatpush1.bf16.msra.mxu0 0
    %1183 = vmatprep.subr.bf16.mxu0 0
    %1184 = vmatpush1.bf16.msra.mxu0 0
    %1185 = vmatprep.mubr.bf16.mxu0 0
    %1186 = vmatmul.mubr.bf16.gmra.mrb[0].mxu0 %v1144
    %v1187 = vpop.f32.mrb[0].mxu0
    %v1188 = vadd.f32 0.0, %v1187
    %v1189 = vpop.f32.mrb[0].mxu0
    %v1190 = vadd.f32 0.0, %v1189
    %v1191 = vpop.f32.mrb[0].mxu0
    %v1192 = vadd.f32 0.0, %v1191
    %v1193 = vpop.f32.mrb[0].mxu0
    %v1194 = vadd.f32 0.0, %v1193
    %1195 = vdwg.mxu0
    %1196 = vmatprep.subr.bf16.mxu0 %v790
    %1197 = vmatpush1.bf16.msra.mxu0 %v789
    %1198 = vmatprep.subr.bf16.mxu0 %v794
    %1199 = vmatpush1.bf16.msra.mxu0 %v793
    %1200 = vmatprep.subr.bf16.mxu0 %v798
    %1201 = vmatpush1.bf16.msra.mxu0 %v797
    %1202 = vmatprep.subr.bf16.mxu0 %v802
    %1203 = vmatpush1.bf16.msra.mxu0 %v801
    %1204 = vmatprep.subr.bf16.mxu0 %v806
    %1205 = vmatpush1.bf16.msra.mxu0 %v805
    %1206 = vmatprep.subr.bf16.mxu0 %v810
    %1207 = vmatpush1.bf16.msra.mxu0 %v809
    %1208 = vmatprep.subr.bf16.mxu0 %v814
    %1209 = vmatpush1.bf16.msra.mxu0 %v813
    %1210 = vmatprep.subr.bf16.mxu0 %v818
    %1211 = vmatpush1.bf16.msra.mxu0 %v817
    %1212 = vmatprep.subr.bf16.mxu0 0
    %1213 = vmatpush1.bf16.msra.mxu0 0
    %1214 = vmatprep.subr.bf16.mxu0 0
    %1215 = vmatpush1.bf16.msra.mxu0 0
    %1216 = vmatprep.subr.bf16.mxu0 0
    %1217 = vmatpush1.bf16.msra.mxu0 0
    %1218 = vmatprep.subr.bf16.mxu0 0
    %1219 = vmatpush1.bf16.msra.mxu0 0
    %1220 = vmatprep.subr.bf16.mxu0 0
    %1221 = vmatpush1.bf16.msra.mxu0 0
    %1222 = vmatprep.subr.bf16.mxu0 0
    %1223 = vmatpush1.bf16.msra.mxu0 0
    %1224 = vmatprep.subr.bf16.mxu0 0
    %1225 = vmatpush1.bf16.msra.mxu0 0
    %1226 = vmatprep.subr.bf16.mxu0 0
    %1227 = vmatpush1.bf16.msra.mxu0 0
    %1228 = vmatprep.mubr.bf16.mxu0 0
    %1229 = vmatmul.mubr.bf16.gmra.mrb[0].mxu0 %v1144
    %v1230 = vpop.f32.mrb[0].mxu0
    %v1231 = vadd.f32 0.0, %v1230
    %v1232 = vpop.f32.mrb[0].mxu0
    %v1233 = vadd.f32 0.0, %v1232
    %v1234 = vpop.f32.mrb[0].mxu0
    %v1235 = vadd.f32 0.0, %v1234
    %v1236 = vpop.f32.mrb[0].mxu0
    %v1237 = vadd.f32 0.0, %v1236
    %1238 = vdwg.mxu0
    %v1239 = vadd.f32 %v1145, %v1188
    %v1240 = vadd.f32 %v1146, %v1190
    %v1241 = vadd.f32 %v1147, %v1231
    %v1242 = vadd.f32 %v1148, %v1233
    %v1243 = vadd.f32 %v1149, %v1192
    %v1244 = vadd.f32 %v1150, %v1194
    %v1245 = vadd.f32 %v1151, %v1235
    %v1246 = vadd.f32 %v1152, %v1237
    %v1247 = vxor.u32 %v1239, 2147483648
    %v1248 = vxor.u32 %v1243, 2147483648
    %v1249 = vmul.f32 %v1247, 1.442695
    %v1250 = vpow.pop %v1249
    %v1251 = vmul.f32 %v1248, 1.442695
    %v1252 = vpow.pop %v1251
    %v1253 = vadd.f32 %v1250, 1.0
    %v1254 = vadd.f32 %v1252, 1.0
    %v1255 = vrcp.pop %v1253
    %v1256 = vmul.f32 1.0, %v1255
    %v1257 = vrcp.pop %v1254
    %v1258 = vmul.f32 1.0, %v1257
    %v1259 = vxor.u32 %v1240, 2147483648
    %v1260 = vxor.u32 %v1244, 2147483648
    %v1261 = vmul.f32 %v1259, 1.442695
    %v1262 = vpow.pop %v1261
    %v1263 = vmul.f32 %v1260, 1.442695
    %v1264 = vpow.pop %v1263
    %v1265 = vadd.f32 %v1262, 1.0
    %v1266 = vadd.f32 %v1264, 1.0
    %v1267 = vrcp.pop %v1265
    %v1268 = vmul.f32 1.0, %v1267
    %v1269 = vrcp.pop %v1266
    %v1270 = vmul.f32 1.0, %v1269
    %v1271 = vtanh.pop %v1241
    %v1272 = vtanh.pop %v1245
    %v1273 = vxor.u32 %v1242, 2147483648
    %v1274 = vxor.u32 %v1246, 2147483648
    %v1275 = vmul.f32 %v1273, 1.442695
    %v1276 = vpow.pop %v1275
    %v1277 = vmul.f32 %v1274, 1.442695
    %v1278 = vpow.pop %v1277
    %v1279 = vadd.f32 %v1276, 1.0
    %v1280 = vadd.f32 %v1278, 1.0
    %v1281 = vrcp.pop %v1279
    %v1282 = vmul.f32 1.0, %v1281
    %v1283 = vrcp.pop %v1280
    %v1284 = vmul.f32 1.0, %v1283
    %v1285 = vmul.f32 %v1268, %v1138
    %v1286 = vmul.f32 %v1270, %v1139
    %v1287 = vmul.f32 %v1256, %v1271
    %v1288 = vmul.f32 %v1258, %v1272
    %v1289 = vadd.f32 %v1285, %v1287
    %v1290 = vadd.f32 %v1286, %v1288
    %v1291 = vtanh.pop %v1289
    %v1292 = vtanh.pop %v1290
    %v1293 = vmul.f32 %v1282, %v1291
    %v1294 = vmul.f32 %v1284, %v1292
    %v1295 = vpack.c.bf16 %v1294, %v1293
    %v1296 = vld [vmem:[#allocation4 + $0xc0] sm:$0xff]
    %v1297 = vld [vmem:[#allocation4 + $0xc8] sm:$0xff]
    %v1298 = vld [vmem:[#allocation4 + $0xd0] sm:$0xff]
    %v1299 = vld [vmem:[#allocation4 + $0xd8] sm:$0xff]
    %v1300 = vld [vmem:[#allocation4 + $0xe0] sm:$0xff]
    %v1301 = vld [vmem:[#allocation4 + $0xe8] sm:$0xff]
    %v1302 = vld [vmem:[#allocation4 + $0xf0] sm:$0xff]
    %v1303 = vld [vmem:[#allocation4 + $0xf8] sm:$0xff]
    %1304 = vmatprep.subr.bf16.mxu0 %v788
    %1305 = vmatpush1.bf16.msra.mxu0 %v787
    %1306 = vmatprep.subr.bf16.mxu0 %v792
    %1307 = vmatpush1.bf16.msra.mxu0 %v791
    %1308 = vmatprep.subr.bf16.mxu0 %v796
    %1309 = vmatpush1.bf16.msra.mxu0 %v795
    %1310 = vmatprep.subr.bf16.mxu0 %v800
    %1311 = vmatpush1.bf16.msra.mxu0 %v799
    %1312 = vmatprep.subr.bf16.mxu0 %v804
    %1313 = vmatpush1.bf16.msra.mxu0 %v803
    %1314 = vmatprep.subr.bf16.mxu0 %v808
    %1315 = vmatpush1.bf16.msra.mxu0 %v807
    %1316 = vmatprep.subr.bf16.mxu0 %v812
    %1317 = vmatpush1.bf16.msra.mxu0 %v811
    %1318 = vmatprep.subr.bf16.mxu0 %v816
    %1319 = vmatpush1.bf16.msra.mxu0 %v815
    %1320 = vmatprep.subr.bf16.mxu0 0
    %1321 = vmatpush1.bf16.msra.mxu0 0
    %1322 = vmatprep.subr.bf16.mxu0 0
    %1323 = vmatpush1.bf16.msra.mxu0 0
    %1324 = vmatprep.subr.bf16.mxu0 0
    %1325 = vmatpush1.bf16.msra.mxu0 0
    %1326 = vmatprep.subr.bf16.mxu0 0
    %1327 = vmatpush1.bf16.msra.mxu0 0
    %1328 = vmatprep.subr.bf16.mxu0 0
    %1329 = vmatpush1.bf16.msra.mxu0 0
    %1330 = vmatprep.subr.bf16.mxu0 0
    %1331 = vmatpush1.bf16.msra.mxu0 0
    %1332 = vmatprep.subr.bf16.mxu0 0
    %1333 = vmatpush1.bf16.msra.mxu0 0
    %1334 = vmatprep.subr.bf16.mxu0 0
    %1335 = vmatpush1.bf16.msra.mxu0 0
    %1336 = vmatprep.mubr.bf16.mxu0 0
    %1337 = vmatmul.mubr.bf16.gmra.mrb[0].mxu0 %v1295
    %v1338 = vpop.f32.mrb[0].mxu0
    %v1339 = vadd.f32 0.0, %v1338
    %v1340 = vpop.f32.mrb[0].mxu0
    %v1341 = vadd.f32 0.0, %v1340
    %v1342 = vpop.f32.mrb[0].mxu0
    %v1343 = vadd.f32 0.0, %v1342
    %v1344 = vpop.f32.mrb[0].mxu0
    %v1345 = vadd.f32 0.0, %v1344
    %1346 = vdwg.mxu0
    %1347 = vmatprep.subr.bf16.mxu0 %v790
    %1348 = vmatpush1.bf16.msra.mxu0 %v789
    %1349 = vmatprep.subr.bf16.mxu0 %v794
    %1350 = vmatpush1.bf16.msra.mxu0 %v793
    %1351 = vmatprep.subr.bf16.mxu0 %v798
    %1352 = vmatpush1.bf16.msra.mxu0 %v797
    %1353 = vmatprep.subr.bf16.mxu0 %v802
    %1354 = vmatpush1.bf16.msra.mxu0 %v801
    %1355 = vmatprep.subr.bf16.mxu0 %v806
    %1356 = vmatpush1.bf16.msra.mxu0 %v805
    %1357 = vmatprep.subr.bf16.mxu0 %v810
    %1358 = vmatpush1.bf16.msra.mxu0 %v809
    %1359 = vmatprep.subr.bf16.mxu0 %v814
    %1360 = vmatpush1.bf16.msra.mxu0 %v813
    %1361 = vmatprep.subr.bf16.mxu0 %v818
    %1362 = vmatpush1.bf16.msra.mxu0 %v817
    %1363 = vmatprep.subr.bf16.mxu0 0
    %1364 = vmatpush1.bf16.msra.mxu0 0
    %1365 = vmatprep.subr.bf16.mxu0 0
    %1366 = vmatpush1.bf16.msra.mxu0 0
    %1367 = vmatprep.subr.bf16.mxu0 0
    %1368 = vmatpush1.bf16.msra.mxu0 0
    %1369 = vmatprep.subr.bf16.mxu0 0
    %1370 = vmatpush1.bf16.msra.mxu0 0
    %1371 = vmatprep.subr.bf16.mxu0 0
    %1372 = vmatpush1.bf16.msra.mxu0 0
    %1373 = vmatprep.subr.bf16.mxu0 0
    %1374 = vmatpush1.bf16.msra.mxu0 0
    %1375 = vmatprep.subr.bf16.mxu0 0
    %1376 = vmatpush1.bf16.msra.mxu0 0
    %1377 = vmatprep.subr.bf16.mxu0 0
    %1378 = vmatpush1.bf16.msra.mxu0 0
    %1379 = vmatprep.mubr.bf16.mxu0 0
    %1380 = vmatmul.mubr.bf16.gmra.mrb[0].mxu0 %v1295
    %v1381 = vpop.f32.mrb[0].mxu0
    %v1382 = vadd.f32 0.0, %v1381
    %v1383 = vpop.f32.mrb[0].mxu0
    %v1384 = vadd.f32 0.0, %v1383
    %v1385 = vpop.f32.mrb[0].mxu0
    %v1386 = vadd.f32 0.0, %v1385
    %v1387 = vpop.f32.mrb[0].mxu0
    %v1388 = vadd.f32 0.0, %v1387
    %1389 = vdwg.mxu0
    %v1390 = vadd.f32 %v1296, %v1339
    %v1391 = vadd.f32 %v1297, %v1341
    %v1392 = vadd.f32 %v1298, %v1382
    %v1393 = vadd.f32 %v1299, %v1384
    %v1394 = vadd.f32 %v1300, %v1343
    %v1395 = vadd.f32 %v1301, %v1345
    %v1396 = vadd.f32 %v1302, %v1386
    %v1397 = vadd.f32 %v1303, %v1388
    %v1398 = vxor.u32 %v1390, 2147483648
    %v1399 = vxor.u32 %v1394, 2147483648
    %v1400 = vmul.f32 %v1398, 1.442695
    %v1401 = vpow.pop %v1400
    %v1402 = vmul.f32 %v1399, 1.442695
    %v1403 = vpow.pop %v1402
    %v1404 = vadd.f32 %v1401, 1.0
    %v1405 = vadd.f32 %v1403, 1.0
    %v1406 = vrcp.pop %v1404
    %v1407 = vmul.f32 1.0, %v1406
    %v1408 = vrcp.pop %v1405
    %v1409 = vmul.f32 1.0, %v1408
    %v1410 = vxor.u32 %v1391, 2147483648
    %v1411 = vxor.u32 %v1395, 2147483648
    %v1412 = vmul.f32 %v1410, 1.442695
    %v1413 = vpow.pop %v1412
    %v1414 = vmul.f32 %v1411, 1.442695
    %v1415 = vpow.pop %v1414
    %v1416 = vadd.f32 %v1413, 1.0
    %v1417 = vadd.f32 %v1415, 1.0
    %v1418 = vrcp.pop %v1416
    %v1419 = vmul.f32 1.0, %v1418
    %v1420 = vrcp.pop %v1417
    %v1421 = vmul.f32 1.0, %v1420
    %v1422 = vtanh.pop %v1392
    %v1423 = vtanh.pop %v1396
    %v1424 = vxor.u32 %v1393, 2147483648
    %v1425 = vxor.u32 %v1397, 2147483648
    %v1426 = vmul.f32 %v1424, 1.442695
    %v1427 = vpow.pop %v1426
    %v1428 = vmul.f32 %v1425, 1.442695
    %v1429 = vpow.pop %v1428
    %v1430 = vadd.f32 %v1427, 1.0
    %v1431 = vadd.f32 %v1429, 1.0
    %v1432 = vrcp.pop %v1430
    %v1433 = vmul.f32 1.0, %v1432
    %v1434 = vrcp.pop %v1431
    %v1435 = vmul.f32 1.0, %v1434
    %v1436 = vmul.f32 %v1419, %v1289
    %v1437 = vmul.f32 %v1421, %v1290
    %v1438 = vmul.f32 %v1407, %v1422
    %v1439 = vmul.f32 %v1409, %v1423
    %v1440 = vadd.f32 %v1436, %v1438
    %v1441 = vadd.f32 %v1437, %v1439
    %v1442 = vtanh.pop %v1440
    %v1443 = vtanh.pop %v1441
    %v1444 = vmul.f32 %v1433, %v1442
    %v1445 = vmul.f32 %v1435, %v1443
    %v1446 = vpack.c.bf16 %v1445, %v1444
    %v1447 = vld [vmem:[#allocation4 + $0x100] sm:$0xff]
    %v1448 = vld [vmem:[#allocation4 + $0x108] sm:$0xff]
    %v1449 = vld [vmem:[#allocation4 + $0x110] sm:$0xff]
    %v1450 = vld [vmem:[#allocation4 + $0x118] sm:$0xff]
    %v1451 = vld [vmem:[#allocation4 + $0x120] sm:$0xff]
    %v1452 = vld [vmem:[#allocation4 + $0x128] sm:$0xff]
    %v1453 = vld [vmem:[#allocation4 + $0x130] sm:$0xff]
    %v1454 = vld [vmem:[#allocation4 + $0x138] sm:$0xff]
    %1455 = vmatprep.subr.bf16.mxu0 %v788
    %1456 = vmatpush1.bf16.msra.mxu0 %v787
    %1457 = vmatprep.subr.bf16.mxu0 %v792
    %1458 = vmatpush1.bf16.msra.mxu0 %v791
    %1459 = vmatprep.subr.bf16.mxu0 %v796
    %1460 = vmatpush1.bf16.msra.mxu0 %v795
    %1461 = vmatprep.subr.bf16.mxu0 %v800
    %1462 = vmatpush1.bf16.msra.mxu0 %v799
    %1463 = vmatprep.subr.bf16.mxu0 %v804
    %1464 = vmatpush1.bf16.msra.mxu0 %v803
    %1465 = vmatprep.subr.bf16.mxu0 %v808
    %1466 = vmatpush1.bf16.msra.mxu0 %v807
    %1467 = vmatprep.subr.bf16.mxu0 %v812
    %1468 = vmatpush1.bf16.msra.mxu0 %v811
    %1469 = vmatprep.subr.bf16.mxu0 %v816
    %1470 = vmatpush1.bf16.msra.mxu0 %v815
    %1471 = vmatprep.subr.bf16.mxu0 0
    %1472 = vmatpush1.bf16.msra.mxu0 0
    %1473 = vmatprep.subr.bf16.mxu0 0
    %1474 = vmatpush1.bf16.msra.mxu0 0
    %1475 = vmatprep.subr.bf16.mxu0 0
    %1476 = vmatpush1.bf16.msra.mxu0 0
    %1477 = vmatprep.subr.bf16.mxu0 0
    %1478 = vmatpush1.bf16.msra.mxu0 0
    %1479 = vmatprep.subr.bf16.mxu0 0
    %1480 = vmatpush1.bf16.msra.mxu0 0
    %1481 = vmatprep.subr.bf16.mxu0 0
    %1482 = vmatpush1.bf16.msra.mxu0 0
    %1483 = vmatprep.subr.bf16.mxu0 0
    %1484 = vmatpush1.bf16.msra.mxu0 0
    %1485 = vmatprep.subr.bf16.mxu0 0
    %1486 = vmatpush1.bf16.msra.mxu0 0
    %1487 = vmatprep.mubr.bf16.mxu0 0
    %1488 = vmatmul.mubr.bf16.gmra.mrb[0].mxu0 %v1446
    %v1489 = vpop.f32.mrb[0].mxu0
    %v1490 = vadd.f32 0.0, %v1489
    %v1491 = vpop.f32.mrb[0].mxu0
    %v1492 = vadd.f32 0.0, %v1491
    %v1493 = vpop.f32.mrb[0].mxu0
    %v1494 = vadd.f32 0.0, %v1493
    %v1495 = vpop.f32.mrb[0].mxu0
    %v1496 = vadd.f32 0.0, %v1495
    %1497 = vdwg.mxu0
    %1498 = vmatprep.subr.bf16.mxu0 %v790
    %1499 = vmatpush1.bf16.msra.mxu0 %v789
    %1500 = vmatprep.subr.bf16.mxu0 %v794
    %1501 = vmatpush1.bf16.msra.mxu0 %v793
    %1502 = vmatprep.subr.bf16.mxu0 %v798
    %1503 = vmatpush1.bf16.msra.mxu0 %v797
    %1504 = vmatprep.subr.bf16.mxu0 %v802
    %1505 = vmatpush1.bf16.msra.mxu0 %v801
    %1506 = vmatprep.subr.bf16.mxu0 %v806
    %1507 = vmatpush1.bf16.msra.mxu0 %v805
    %1508 = vmatprep.subr.bf16.mxu0 %v810
    %1509 = vmatpush1.bf16.msra.mxu0 %v809
    %1510 = vmatprep.subr.bf16.mxu0 %v814
    %1511 = vmatpush1.bf16.msra.mxu0 %v813
    %1512 = vmatprep.subr.bf16.mxu0 %v818
    %1513 = vmatpush1.bf16.msra.mxu0 %v817
    %1514 = vmatprep.subr.bf16.mxu0 0
    %1515 = vmatpush1.bf16.msra.mxu0 0
    %1516 = vmatprep.subr.bf16.mxu0 0
    %1517 = vmatpush1.bf16.msra.mxu0 0
    %1518 = vmatprep.subr.bf16.mxu0 0
    %1519 = vmatpush1.bf16.msra.mxu0 0
    %1520 = vmatprep.subr.bf16.mxu0 0
    %1521 = vmatpush1.bf16.msra.mxu0 0
    %1522 = vmatprep.subr.bf16.mxu0 0
    %1523 = vmatpush1.bf16.msra.mxu0 0
    %1524 = vmatprep.subr.bf16.mxu0 0
    %1525 = vmatpush1.bf16.msra.mxu0 0
    %1526 = vmatprep.subr.bf16.mxu0 0
    %1527 = vmatpush1.bf16.msra.mxu0 0
    %1528 = vmatprep.subr.bf16.mxu0 0
    %1529 = vmatpush1.bf16.msra.mxu0 0
    %1530 = vmatprep.mubr.bf16.mxu0 0
    %1531 = vmatmul.mubr.bf16.gmra.mrb[0].mxu0 %v1446
    %v1532 = vpop.f32.mrb[0].mxu0
    %v1533 = vadd.f32 0.0, %v1532
    %v1534 = vpop.f32.mrb[0].mxu0
    %v1535 = vadd.f32 0.0, %v1534
    %v1536 = vpop.f32.mrb[0].mxu0
    %v1537 = vadd.f32 0.0, %v1536
    %v1538 = vpop.f32.mrb[0].mxu0
    %v1539 = vadd.f32 0.0, %v1538
    %1540 = vdwg.mxu0
    %v1541 = vadd.f32 %v1447, %v1490
    %v1542 = vadd.f32 %v1448, %v1492
    %v1543 = vadd.f32 %v1449, %v1533
    %v1544 = vadd.f32 %v1450, %v1535
    %v1545 = vadd.f32 %v1451, %v1494
    %v1546 = vadd.f32 %v1452, %v1496
    %v1547 = vadd.f32 %v1453, %v1537
    %v1548 = vadd.f32 %v1454, %v1539
    %v1549 = vxor.u32 %v1541, 2147483648
    %v1550 = vxor.u32 %v1545, 2147483648
    %v1551 = vmul.f32 %v1549, 1.442695
    %v1552 = vpow.pop %v1551
    %v1553 = vmul.f32 %v1550, 1.442695
    %v1554 = vpow.pop %v1553
    %v1555 = vadd.f32 %v1552, 1.0
    %v1556 = vadd.f32 %v1554, 1.0
    %v1557 = vrcp.pop %v1555
    %v1558 = vmul.f32 1.0, %v1557
    %v1559 = vrcp.pop %v1556
    %v1560 = vmul.f32 1.0, %v1559
    %v1561 = vxor.u32 %v1542, 2147483648
    %v1562 = vxor.u32 %v1546, 2147483648
    %v1563 = vmul.f32 %v1561, 1.442695
    %v1564 = vpow.pop %v1563
    %v1565 = vmul.f32 %v1562, 1.442695
    %v1566 = vpow.pop %v1565
    %v1567 = vadd.f32 %v1564, 1.0
    %v1568 = vadd.f32 %v1566, 1.0
    %v1569 = vrcp.pop %v1567
    %v1570 = vmul.f32 1.0, %v1569
    %v1571 = vrcp.pop %v1568
    %v1572 = vmul.f32 1.0, %v1571
    %v1573 = vtanh.pop %v1543
    %v1574 = vtanh.pop %v1547
    %v1575 = vxor.u32 %v1544, 2147483648
    %v1576 = vxor.u32 %v1548, 2147483648
    %v1577 = vmul.f32 %v1575, 1.442695
    %v1578 = vpow.pop %v1577
    %v1579 = vmul.f32 %v1576, 1.442695
    %v1580 = vpow.pop %v1579
    %v1581 = vadd.f32 %v1578, 1.0
    %v1582 = vadd.f32 %v1580, 1.0
    %v1583 = vrcp.pop %v1581
    %v1584 = vmul.f32 1.0, %v1583
    %v1585 = vrcp.pop %v1582
    %v1586 = vmul.f32 1.0, %v1585
    %v1587 = vmul.f32 %v1570, %v1440
    %v1588 = vmul.f32 %v1572, %v1441
    %v1589 = vmul.f32 %v1558, %v1573
    %v1590 = vmul.f32 %v1560, %v1574
    %v1591 = vadd.f32 %v1587, %v1589
    %v1592 = vadd.f32 %v1588, %v1590
    %v1593 = vtanh.pop %v1591
    %v1594 = vtanh.pop %v1592
    %v1595 = vmul.f32 %v1584, %v1593
    %v1596 = vmul.f32 %v1586, %v1594
    %v1597 = vpack.c.bf16 %v1596, %v1595
    %v1598 = vld [vmem:[#allocation4 + $0x140] sm:$0xff]
    %v1599 = vld [vmem:[#allocation4 + $0x148] sm:$0xff]
    %v1600 = vld [vmem:[#allocation4 + $0x150] sm:$0xff]
    %v1601 = vld [vmem:[#allocation4 + $0x158] sm:$0xff]
    %v1602 = vld [vmem:[#allocation4 + $0x160] sm:$0xff]
    %v1603 = vld [vmem:[#allocation4 + $0x168] sm:$0xff]
    %v1604 = vld [vmem:[#allocation4 + $0x170] sm:$0xff]
    %v1605 = vld [vmem:[#allocation4 + $0x178] sm:$0xff]
    %1606 = vmatprep.subr.bf16.mxu0 %v788
    %1607 = vmatpush1.bf16.msra.mxu0 %v787
    %1608 = vmatprep.subr.bf16.mxu0 %v792
    %1609 = vmatpush1.bf16.msra.mxu0 %v791
    %1610 = vmatprep.subr.bf16.mxu0 %v796
    %1611 = vmatpush1.bf16.msra.mxu0 %v795
    %1612 = vmatprep.subr.bf16.mxu0 %v800
    %1613 = vmatpush1.bf16.msra.mxu0 %v799
    %1614 = vmatprep.subr.bf16.mxu0 %v804
    %1615 = vmatpush1.bf16.msra.mxu0 %v803
    %1616 = vmatprep.subr.bf16.mxu0 %v808
    %1617 = vmatpush1.bf16.msra.mxu0 %v807
    %1618 = vmatprep.subr.bf16.mxu0 %v812
    %1619 = vmatpush1.bf16.msra.mxu0 %v811
    %1620 = vmatprep.subr.bf16.mxu0 %v816
    %1621 = vmatpush1.bf16.msra.mxu0 %v815
    %1622 = vmatprep.subr.bf16.mxu0 0
    %1623 = vmatpush1.bf16.msra.mxu0 0
    %1624 = vmatprep.subr.bf16.mxu0 0
    %1625 = vmatpush1.bf16.msra.mxu0 0
    %1626 = vmatprep.subr.bf16.mxu0 0
    %1627 = vmatpush1.bf16.msra.mxu0 0
    %1628 = vmatprep.subr.bf16.mxu0 0
    %1629 = vmatpush1.bf16.msra.mxu0 0
    %1630 = vmatprep.subr.bf16.mxu0 0
    %1631 = vmatpush1.bf16.msra.mxu0 0
    %1632 = vmatprep.subr.bf16.mxu0 0
    %1633 = vmatpush1.bf16.msra.mxu0 0
    %1634 = vmatprep.subr.bf16.mxu0 0
    %1635 = vmatpush1.bf16.msra.mxu0 0
    %1636 = vmatprep.subr.bf16.mxu0 0
    %1637 = vmatpush1.bf16.msra.mxu0 0
    %1638 = vmatprep.mubr.bf16.mxu0 0
    %1639 = vmatmul.mubr.bf16.gmra.mrb[0].mxu0 %v1597
    %v1640 = vpop.f32.mrb[0].mxu0
    %v1641 = vadd.f32 0.0, %v1640
    %v1642 = vpop.f32.mrb[0].mxu0
    %v1643 = vadd.f32 0.0, %v1642
    %v1644 = vpop.f32.mrb[0].mxu0
    %v1645 = vadd.f32 0.0, %v1644
    %v1646 = vpop.f32.mrb[0].mxu0
    %v1647 = vadd.f32 0.0, %v1646
    %1648 = vdwg.mxu0
    %1649 = vmatprep.subr.bf16.mxu0 %v790
    %1650 = vmatpush1.bf16.msra.mxu0 %v789
    %1651 = vmatprep.subr.bf16.mxu0 %v794
    %1652 = vmatpush1.bf16.msra.mxu0 %v793
    %1653 = vmatprep.subr.bf16.mxu0 %v798
    %1654 = vmatpush1.bf16.msra.mxu0 %v797
    %1655 = vmatprep.subr.bf16.mxu0 %v802
    %1656 = vmatpush1.bf16.msra.mxu0 %v801
    %1657 = vmatprep.subr.bf16.mxu0 %v806
    %1658 = vmatpush1.bf16.msra.mxu0 %v805
    %1659 = vmatprep.subr.bf16.mxu0 %v810
    %1660 = vmatpush1.bf16.msra.mxu0 %v809
    %1661 = vmatprep.subr.bf16.mxu0 %v814
    %1662 = vmatpush1.bf16.msra.mxu0 %v813
    %1663 = vmatprep.subr.bf16.mxu0 %v818
    %1664 = vmatpush1.bf16.msra.mxu0 %v817
    %1665 = vmatprep.subr.bf16.mxu0 0
    %1666 = vmatpush1.bf16.msra.mxu0 0
    %1667 = vmatprep.subr.bf16.mxu0 0
    %1668 = vmatpush1.bf16.msra.mxu0 0
    %1669 = vmatprep.subr.bf16.mxu0 0
    %1670 = vmatpush1.bf16.msra.mxu0 0
    %1671 = vmatprep.subr.bf16.mxu0 0
    %1672 = vmatpush1.bf16.msra.mxu0 0
    %1673 = vmatprep.subr.bf16.mxu0 0
    %1674 = vmatpush1.bf16.msra.mxu0 0
    %1675 = vmatprep.subr.bf16.mxu0 0
    %1676 = vmatpush1.bf16.msra.mxu0 0
    %1677 = vmatprep.subr.bf16.mxu0 0
    %1678 = vmatpush1.bf16.msra.mxu0 0
    %1679 = vmatprep.subr.bf16.mxu0 0
    %1680 = vmatpush1.bf16.msra.mxu0 0
    %1681 = vmatprep.mubr.bf16.mxu0 0
    %1682 = vmatmul.mubr.bf16.gmra.mrb[0].mxu0 %v1597
    %v1683 = vpop.f32.mrb[0].mxu0
    %v1684 = vadd.f32 0.0, %v1683
    %v1685 = vpop.f32.mrb[0].mxu0
    %v1686 = vadd.f32 0.0, %v1685
    %v1687 = vpop.f32.mrb[0].mxu0
    %v1688 = vadd.f32 0.0, %v1687
    %v1689 = vpop.f32.mrb[0].mxu0
    %v1690 = vadd.f32 0.0, %v1689
    %1691 = vdwg.mxu0
    %v1692 = vadd.f32 %v1598, %v1641
    %v1693 = vadd.f32 %v1599, %v1643
    %v1694 = vadd.f32 %v1600, %v1684
    %v1695 = vadd.f32 %v1601, %v1686
    %v1696 = vadd.f32 %v1602, %v1645
    %v1697 = vadd.f32 %v1603, %v1647
    %v1698 = vadd.f32 %v1604, %v1688
    %v1699 = vadd.f32 %v1605, %v1690
    %v1700 = vxor.u32 %v1692, 2147483648
    %v1701 = vxor.u32 %v1696, 2147483648
    %v1702 = vmul.f32 %v1700, 1.442695
    %v1703 = vpow.pop %v1702
    %v1704 = vmul.f32 %v1701, 1.442695
    %v1705 = vpow.pop %v1704
    %v1706 = vadd.f32 %v1703, 1.0
    %v1707 = vadd.f32 %v1705, 1.0
    %v1708 = vrcp.pop %v1706
    %v1709 = vmul.f32 1.0, %v1708
    %v1710 = vrcp.pop %v1707
    %v1711 = vmul.f32 1.0, %v1710
    %v1712 = vxor.u32 %v1693, 2147483648
    %v1713 = vxor.u32 %v1697, 2147483648
    %v1714 = vmul.f32 %v1712, 1.442695
    %v1715 = vpow.pop %v1714
    %v1716 = vmul.f32 %v1713, 1.442695
    %v1717 = vpow.pop %v1716
    %v1718 = vadd.f32 %v1715, 1.0
    %v1719 = vadd.f32 %v1717, 1.0
    %v1720 = vrcp.pop %v1718
    %v1721 = vmul.f32 1.0, %v1720
    %v1722 = vrcp.pop %v1719
    %v1723 = vmul.f32 1.0, %v1722
    %v1724 = vtanh.pop %v1694
    %v1725 = vtanh.pop %v1698
    %v1726 = vxor.u32 %v1695, 2147483648
    %v1727 = vxor.u32 %v1699, 2147483648
    %v1728 = vmul.f32 %v1726, 1.442695
    %v1729 = vpow.pop %v1728
    %v1730 = vmul.f32 %v1727, 1.442695
    %v1731 = vpow.pop %v1730
    %v1732 = vadd.f32 %v1729, 1.0
    %v1733 = vadd.f32 %v1731, 1.0
    %v1734 = vrcp.pop %v1732
    %v1735 = vmul.f32 1.0, %v1734
    %v1736 = vrcp.pop %v1733
    %v1737 = vmul.f32 1.0, %v1736
    %v1738 = vmul.f32 %v1721, %v1591
    %v1739 = vmul.f32 %v1723, %v1592
    %v1740 = vmul.f32 %v1709, %v1724
    %v1741 = vmul.f32 %v1711, %v1725
    %v1742 = vadd.f32 %v1738, %v1740
    %v1743 = vadd.f32 %v1739, %v1741
    %v1744 = vtanh.pop %v1742
    %v1745 = vtanh.pop %v1743
    %v1746 = vmul.f32 %v1735, %v1744
    %v1747 = vmul.f32 %v1737, %v1745
    %v1748 = vpack.c.bf16 %v1747, %v1746
    %v1749 = vld [vmem:[#allocation4 + $0x180] sm:$0xff]
    %v1750 = vld [vmem:[#allocation4 + $0x188] sm:$0xff]
    %v1751 = vld [vmem:[#allocation4 + $0x190] sm:$0xff]
    %v1752 = vld [vmem:[#allocation4 + $0x198] sm:$0xff]
    %v1753 = vld [vmem:[#allocation4 + $0x1a0] sm:$0xff]
    %v1754 = vld [vmem:[#allocation4 + $0x1a8] sm:$0xff]
    %v1755 = vld [vmem:[#allocation4 + $0x1b0] sm:$0xff]
    %v1756 = vld [vmem:[#allocation4 + $0x1b8] sm:$0xff]
    %1757 = vmatprep.subr.bf16.mxu0 %v788
    %1758 = vmatpush1.bf16.msra.mxu0 %v787
    %1759 = vmatprep.subr.bf16.mxu0 %v792
    %1760 = vmatpush1.bf16.msra.mxu0 %v791
    %1761 = vmatprep.subr.bf16.mxu0 %v796
    %1762 = vmatpush1.bf16.msra.mxu0 %v795
    %1763 = vmatprep.subr.bf16.mxu0 %v800
    %1764 = vmatpush1.bf16.msra.mxu0 %v799
    %1765 = vmatprep.subr.bf16.mxu0 %v804
    %1766 = vmatpush1.bf16.msra.mxu0 %v803
    %1767 = vmatprep.subr.bf16.mxu0 %v808
    %1768 = vmatpush1.bf16.msra.mxu0 %v807
    %1769 = vmatprep.subr.bf16.mxu0 %v812
    %1770 = vmatpush1.bf16.msra.mxu0 %v811
    %1771 = vmatprep.subr.bf16.mxu0 %v816
    %1772 = vmatpush1.bf16.msra.mxu0 %v815
    %1773 = vmatprep.subr.bf16.mxu0 0
    %1774 = vmatpush1.bf16.msra.mxu0 0
    %1775 = vmatprep.subr.bf16.mxu0 0
    %1776 = vmatpush1.bf16.msra.mxu0 0
    %1777 = vmatprep.subr.bf16.mxu0 0
    %1778 = vmatpush1.bf16.msra.mxu0 0
    %1779 = vmatprep.subr.bf16.mxu0 0
    %1780 = vmatpush1.bf16.msra.mxu0 0
    %1781 = vmatprep.subr.bf16.mxu0 0
    %1782 = vmatpush1.bf16.msra.mxu0 0
    %1783 = vmatprep.subr.bf16.mxu0 0
    %1784 = vmatpush1.bf16.msra.mxu0 0
    %1785 = vmatprep.subr.bf16.mxu0 0
    %1786 = vmatpush1.bf16.msra.mxu0 0
    %1787 = vmatprep.subr.bf16.mxu0 0
    %1788 = vmatpush1.bf16.msra.mxu0 0
    %1789 = vmatprep.mubr.bf16.mxu0 0
    %1790 = vmatmul.mubr.bf16.gmra.mrb[0].mxu0 %v1748
    %v1791 = vpop.f32.mrb[0].mxu0
    %v1792 = vadd.f32 0.0, %v1791
    %v1793 = vpop.f32.mrb[0].mxu0
    %v1794 = vadd.f32 0.0, %v1793
    %v1795 = vpop.f32.mrb[0].mxu0
    %v1796 = vadd.f32 0.0, %v1795
    %v1797 = vpop.f32.mrb[0].mxu0
    %v1798 = vadd.f32 0.0, %v1797
    %1799 = vdwg.mxu0
    %1800 = vmatprep.subr.bf16.mxu0 %v790
    %1801 = vmatpush1.bf16.msra.mxu0 %v789
    %1802 = vmatprep.subr.bf16.mxu0 %v794
    %1803 = vmatpush1.bf16.msra.mxu0 %v793
    %1804 = vmatprep.subr.bf16.mxu0 %v798
    %1805 = vmatpush1.bf16.msra.mxu0 %v797
    %1806 = vmatprep.subr.bf16.mxu0 %v802
    %1807 = vmatpush1.bf16.msra.mxu0 %v801
    %1808 = vmatprep.subr.bf16.mxu0 %v806
    %1809 = vmatpush1.bf16.msra.mxu0 %v805
    %1810 = vmatprep.subr.bf16.mxu0 %v810
    %1811 = vmatpush1.bf16.msra.mxu0 %v809
    %1812 = vmatprep.subr.bf16.mxu0 %v814
    %1813 = vmatpush1.bf16.msra.mxu0 %v813
    %1814 = vmatprep.subr.bf16.mxu0 %v818
    %1815 = vmatpush1.bf16.msra.mxu0 %v817
    %1816 = vmatprep.subr.bf16.mxu0 0
    %1817 = vmatpush1.bf16.msra.mxu0 0
    %1818 = vmatprep.subr.bf16.mxu0 0
    %1819 = vmatpush1.bf16.msra.mxu0 0
    %1820 = vmatprep.subr.bf16.mxu0 0
    %1821 = vmatpush1.bf16.msra.mxu0 0
    %1822 = vmatprep.subr.bf16.mxu0 0
    %1823 = vmatpush1.bf16.msra.mxu0 0
    %1824 = vmatprep.subr.bf16.mxu0 0
    %1825 = vmatpush1.bf16.msra.mxu0 0
    %1826 = vmatprep.subr.bf16.mxu0 0
    %1827 = vmatpush1.bf16.msra.mxu0 0
    %1828 = vmatprep.subr.bf16.mxu0 0
    %1829 = vmatpush1.bf16.msra.mxu0 0
    %1830 = vmatprep.subr.bf16.mxu0 0
    %1831 = vmatpush1.bf16.msra.mxu0 0
    %1832 = vmatprep.mubr.bf16.mxu0 0
    %1833 = vmatmul.mubr.bf16.gmra.mrb[0].mxu0 %v1748
    %v1834 = vpop.f32.mrb[0].mxu0
    %v1835 = vadd.f32 0.0, %v1834
    %v1836 = vpop.f32.mrb[0].mxu0
    %v1837 = vadd.f32 0.0, %v1836
    %v1838 = vpop.f32.mrb[0].mxu0
    %v1839 = vadd.f32 0.0, %v1838
    %v1840 = vpop.f32.mrb[0].mxu0
    %v1841 = vadd.f32 0.0, %v1840
    %1842 = vdwg.mxu0
    %v1843 = vadd.f32 %v1749, %v1792
    %v1844 = vadd.f32 %v1750, %v1794
    %v1845 = vadd.f32 %v1751, %v1835
    %v1846 = vadd.f32 %v1752, %v1837
    %v1847 = vadd.f32 %v1753, %v1796
    %v1848 = vadd.f32 %v1754, %v1798
    %v1849 = vadd.f32 %v1755, %v1839
    %v1850 = vadd.f32 %v1756, %v1841
    %v1851 = vxor.u32 %v1843, 2147483648
    %v1852 = vxor.u32 %v1847, 2147483648
    %v1853 = vmul.f32 %v1851, 1.442695
    %v1854 = vpow.pop %v1853
    %v1855 = vmul.f32 %v1852, 1.442695
    %v1856 = vpow.pop %v1855
    %v1857 = vadd.f32 %v1854, 1.0
    %v1858 = vadd.f32 %v1856, 1.0
    %v1859 = vrcp.pop %v1857
    %v1860 = vmul.f32 1.0, %v1859
    %v1861 = vrcp.pop %v1858
    %v1862 = vmul.f32 1.0, %v1861
    %v1863 = vxor.u32 %v1844, 2147483648
    %v1864 = vxor.u32 %v1848, 2147483648
    %v1865 = vmul.f32 %v1863, 1.442695
    %v1866 = vpow.pop %v1865
    %v1867 = vmul.f32 %v1864, 1.442695
    %v1868 = vpow.pop %v1867
    %v1869 = vadd.f32 %v1866, 1.0
    %v1870 = vadd.f32 %v1868, 1.0
    %v1871 = vrcp.pop %v1869
    %v1872 = vmul.f32 1.0, %v1871
    %v1873 = vrcp.pop %v1870
    %v1874 = vmul.f32 1.0, %v1873
    %v1875 = vtanh.pop %v1845
    %v1876 = vtanh.pop %v1849
    %v1877 = vxor.u32 %v1846, 2147483648
    %v1878 = vxor.u32 %v1850, 2147483648
    %v1879 = vmul.f32 %v1877, 1.442695
    %v1880 = vpow.pop %v1879
    %v1881 = vmul.f32 %v1878, 1.442695
    %v1882 = vpow.pop %v1881
    %v1883 = vadd.f32 %v1880, 1.0
    %v1884 = vadd.f32 %v1882, 1.0
    %v1885 = vrcp.pop %v1883
    %v1886 = vmul.f32 1.0, %v1885
    %v1887 = vrcp.pop %v1884
    %v1888 = vmul.f32 1.0, %v1887
    %v1889 = vmul.f32 %v1872, %v1742
    %v1890 = vmul.f32 %v1874, %v1743
    %v1891 = vmul.f32 %v1860, %v1875
    %v1892 = vmul.f32 %v1862, %v1876
    %v1893 = vadd.f32 %v1889, %v1891
    %v1894 = vadd.f32 %v1890, %v1892
    %v1895 = vtanh.pop %v1893
    %v1896 = vtanh.pop %v1894
    %v1897 = vmul.f32 %v1886, %v1895
    %v1898 = vmul.f32 %v1888, %v1896
    %v1899 = vpack.c.bf16 %v1898, %v1897
    %v1900 = vld [vmem:[#allocation4 + $0x1c0] sm:$0xff]
    %v1901 = vld [vmem:[#allocation4 + $0x1c8] sm:$0xff]
    %v1902 = vld [vmem:[#allocation4 + $0x1d0] sm:$0xff]
    %v1903 = vld [vmem:[#allocation4 + $0x1d8] sm:$0xff]
    %v1904 = vld [vmem:[#allocation4 + $0x1e0] sm:$0xff]
    %v1905 = vld [vmem:[#allocation4 + $0x1e8] sm:$0xff]
    %v1906 = vld [vmem:[#allocation4 + $0x1f0] sm:$0xff]
    %v1907 = vld [vmem:[#allocation4 + $0x1f8] sm:$0xff]
    %1908 = vmatprep.subr.bf16.mxu0 %v788
    %1909 = vmatpush1.bf16.msra.mxu0 %v787
    %1910 = vmatprep.subr.bf16.mxu0 %v792
    %1911 = vmatpush1.bf16.msra.mxu0 %v791
    %1912 = vmatprep.subr.bf16.mxu0 %v796
    %1913 = vmatpush1.bf16.msra.mxu0 %v795
    %1914 = vmatprep.subr.bf16.mxu0 %v800
    %1915 = vmatpush1.bf16.msra.mxu0 %v799
    %1916 = vmatprep.subr.bf16.mxu0 %v804
    %1917 = vmatpush1.bf16.msra.mxu0 %v803
    %1918 = vmatprep.subr.bf16.mxu0 %v808
    %1919 = vmatpush1.bf16.msra.mxu0 %v807
    %1920 = vmatprep.subr.bf16.mxu0 %v812
    %1921 = vmatpush1.bf16.msra.mxu0 %v811
    %1922 = vmatprep.subr.bf16.mxu0 %v816
    %1923 = vmatpush1.bf16.msra.mxu0 %v815
    %1924 = vmatprep.subr.bf16.mxu0 0
    %1925 = vmatpush1.bf16.msra.mxu0 0
    %1926 = vmatprep.subr.bf16.mxu0 0
    %1927 = vmatpush1.bf16.msra.mxu0 0
    %1928 = vmatprep.subr.bf16.mxu0 0
    %1929 = vmatpush1.bf16.msra.mxu0 0
    %1930 = vmatprep.subr.bf16.mxu0 0
    %1931 = vmatpush1.bf16.msra.mxu0 0
    %1932 = vmatprep.subr.bf16.mxu0 0
    %1933 = vmatpush1.bf16.msra.mxu0 0
    %1934 = vmatprep.subr.bf16.mxu0 0
    %1935 = vmatpush1.bf16.msra.mxu0 0
    %1936 = vmatprep.subr.bf16.mxu0 0
    %1937 = vmatpush1.bf16.msra.mxu0 0
    %1938 = vmatprep.subr.bf16.mxu0 0
    %1939 = vmatpush1.bf16.msra.mxu0 0
    %1940 = vmatprep.mubr.bf16.mxu0 0
    %1941 = vmatmul.mubr.bf16.gmra.mrb[0].mxu0 %v1899
    %v1942 = vpop.f32.mrb[0].mxu0
    %v1943 = vadd.f32 0.0, %v1942
    %v1944 = vpop.f32.mrb[0].mxu0
    %v1945 = vadd.f32 0.0, %v1944
    %v1946 = vpop.f32.mrb[0].mxu0
    %v1947 = vadd.f32 0.0, %v1946
    %v1948 = vpop.f32.mrb[0].mxu0
    %v1949 = vadd.f32 0.0, %v1948
    %1950 = vdwg.mxu0
    %1951 = vmatprep.subr.bf16.mxu0 %v790
    %1952 = vmatpush1.bf16.msra.mxu0 %v789
    %1953 = vmatprep.subr.bf16.mxu0 %v794
    %1954 = vmatpush1.bf16.msra.mxu0 %v793
    %1955 = vmatprep.subr.bf16.mxu0 %v798
    %1956 = vmatpush1.bf16.msra.mxu0 %v797
    %1957 = vmatprep.subr.bf16.mxu0 %v802
    %1958 = vmatpush1.bf16.msra.mxu0 %v801
    %1959 = vmatprep.subr.bf16.mxu0 %v806
    %1960 = vmatpush1.bf16.msra.mxu0 %v805
    %1961 = vmatprep.subr.bf16.mxu0 %v810
    %1962 = vmatpush1.bf16.msra.mxu0 %v809
    %1963 = vmatprep.subr.bf16.mxu0 %v814
    %1964 = vmatpush1.bf16.msra.mxu0 %v813
    %1965 = vmatprep.subr.bf16.mxu0 %v818
    %1966 = vmatpush1.bf16.msra.mxu0 %v817
    %1967 = vmatprep.subr.bf16.mxu0 0
    %1968 = vmatpush1.bf16.msra.mxu0 0
    %1969 = vmatprep.subr.bf16.mxu0 0
    %1970 = vmatpush1.bf16.msra.mxu0 0
    %1971 = vmatprep.subr.bf16.mxu0 0
    %1972 = vmatpush1.bf16.msra.mxu0 0
    %1973 = vmatprep.subr.bf16.mxu0 0
    %1974 = vmatpush1.bf16.msra.mxu0 0
    %1975 = vmatprep.subr.bf16.mxu0 0
    %1976 = vmatpush1.bf16.msra.mxu0 0
    %1977 = vmatprep.subr.bf16.mxu0 0
    %1978 = vmatpush1.bf16.msra.mxu0 0
    %1979 = vmatprep.subr.bf16.mxu0 0
    %1980 = vmatpush1.bf16.msra.mxu0 0
    %1981 = vmatprep.subr.bf16.mxu0 0
    %1982 = vmatpush1.bf16.msra.mxu0 0
    %1983 = vmatprep.mubr.bf16.mxu0 0
    %1984 = vmatmul.mubr.bf16.gmra.mrb[0].mxu0 %v1899
    %v1985 = vpop.f32.mrb[0].mxu0
    %v1986 = vadd.f32 0.0, %v1985
    %v1987 = vpop.f32.mrb[0].mxu0
    %v1988 = vadd.f32 0.0, %v1987
    %v1989 = vpop.f32.mrb[0].mxu0
    %v1990 = vadd.f32 0.0, %v1989
    %v1991 = vpop.f32.mrb[0].mxu0
    %v1992 = vadd.f32 0.0, %v1991
    %1993 = vdwg.mxu0
    %v1994 = vadd.f32 %v1900, %v1943
    %v1995 = vadd.f32 %v1901, %v1945
    %v1996 = vadd.f32 %v1902, %v1986
    %v1997 = vadd.f32 %v1903, %v1988
    %v1998 = vadd.f32 %v1904, %v1947
    %v1999 = vadd.f32 %v1905, %v1949
    %v2000 = vadd.f32 %v1906, %v1990
    %v2001 = vadd.f32 %v1907, %v1992
    %v2002 = vxor.u32 %v1994, 2147483648
    %v2003 = vxor.u32 %v1998, 2147483648
    %v2004 = vmul.f32 %v2002, 1.442695
    %v2005 = vpow.pop %v2004
    %v2006 = vmul.f32 %v2003, 1.442695
    %v2007 = vpow.pop %v2006
    %v2008 = vadd.f32 %v2005, 1.0
    %v2009 = vadd.f32 %v2007, 1.0
    %v2010 = vrcp.pop %v2008
    %v2011 = vmul.f32 1.0, %v2010
    %v2012 = vrcp.pop %v2009
    %v2013 = vmul.f32 1.0, %v2012
    %v2014 = vxor.u32 %v1995, 2147483648
    %v2015 = vxor.u32 %v1999, 2147483648
    %v2016 = vmul.f32 %v2014, 1.442695
    %v2017 = vpow.pop %v2016
    %v2018 = vmul.f32 %v2015, 1.442695
    %v2019 = vpow.pop %v2018
    %v2020 = vadd.f32 %v2017, 1.0
    %v2021 = vadd.f32 %v2019, 1.0
    %v2022 = vrcp.pop %v2020
    %v2023 = vmul.f32 1.0, %v2022
    %v2024 = vrcp.pop %v2021
    %v2025 = vmul.f32 1.0, %v2024
    %v2026 = vtanh.pop %v1996
    %v2027 = vtanh.pop %v2000
    %v2028 = vxor.u32 %v1997, 2147483648
    %v2029 = vxor.u32 %v2001, 2147483648
    %v2030 = vmul.f32 %v2028, 1.442695
    %v2031 = vpow.pop %v2030
    %v2032 = vmul.f32 %v2029, 1.442695
    %v2033 = vpow.pop %v2032
    %v2034 = vadd.f32 %v2031, 1.0
    %v2035 = vadd.f32 %v2033, 1.0
    %v2036 = vrcp.pop %v2034
    %v2037 = vmul.f32 1.0, %v2036
    %v2038 = vrcp.pop %v2035
    %v2039 = vmul.f32 1.0, %v2038
    %v2040 = vmul.f32 %v2023, %v1893
    %v2041 = vmul.f32 %v2025, %v1894
    %v2042 = vmul.f32 %v2011, %v2026
    %v2043 = vmul.f32 %v2013, %v2027
    %v2044 = vadd.f32 %v2040, %v2042
    %v2045 = vadd.f32 %v2041, %v2043
    %v2046 = vtanh.pop %v2044
    %v2047 = vtanh.pop %v2045
    %v2048 = vmul.f32 %v2037, %v2046
    %v2049 = vmul.f32 %v2039, %v2047
    %v2050 = vpack.c.bf16 %v2049, %v2048
    %2051 = vst [vmem:[#allocation2] sm:$0xff] %v2048
    %2052 = vst [vmem:[#allocation2 + $0x8] sm:$0xff] %v2049
    %2053 = vst [vmem:[#allocation3] sm:$0xff] %v2044
    %2054 = vst [vmem:[#allocation3 + $0x8] sm:$0xff] %v2045
    %v2055 = vld [vmem:[%s6] sm:$0xff]
    %v2056 = vld [vmem:[%s6 + $0x8] sm:$0xff]
    %v2057 = vld [vmem:[%s6 + $0x10] sm:$0xff]
    %v2058 = vld [vmem:[%s6 + $0x18] sm:$0xff]
    %v2059 = vld [vmem:[%s6 + $0x20] sm:$0xff]
    %v2060 = vld [vmem:[%s6 + $0x28] sm:$0xff]
    %v2061 = vld [vmem:[%s6 + $0x30] sm:$0xff]
    %v2062 = vld [vmem:[%s6 + $0x38] sm:$0xff]
    %v2063 = vld [vmem:[%s6 + $0x40] sm:$0xff]
    %v2064 = vld [vmem:[%s6 + $0x48] sm:$0xff]
    %v2065 = vld [vmem:[%s6 + $0x50] sm:$0xff]
    %v2066 = vld [vmem:[%s6 + $0x58] sm:$0xff]
    %v2067 = vld [vmem:[%s6 + $0x60] sm:$0xff]
    %v2068 = vld [vmem:[%s6 + $0x68] sm:$0xff]
    %v2069 = vld [vmem:[%s6 + $0x70] sm:$0xff]
    %v2070 = vld [vmem:[%s6 + $0x78] sm:$0xff]
    %v2071 = vld [vmem:[%s6 + $0x80] sm:$0xff]
    %v2072 = vld [vmem:[%s6 + $0x88] sm:$0xff]
    %v2073 = vld [vmem:[%s6 + $0x90] sm:$0xff]
    %v2074 = vld [vmem:[%s6 + $0x98] sm:$0xff]
    %v2075 = vld [vmem:[%s6 + $0xa0] sm:$0xff]
    %v2076 = vld [vmem:[%s6 + $0xa8] sm:$0xff]
    %v2077 = vld [vmem:[%s6 + $0xb0] sm:$0xff]
    %v2078 = vld [vmem:[%s6 + $0xb8] sm:$0xff]
    %v2079 = vld [vmem:[%s6 + $0xc0] sm:$0xff]
    %v2080 = vld [vmem:[%s6 + $0xc8] sm:$0xff]
    %v2081 = vld [vmem:[%s6 + $0xd0] sm:$0xff]
    %v2082 = vld [vmem:[%s6 + $0xd8] sm:$0xff]
    %v2083 = vld [vmem:[%s6 + $0xe0] sm:$0xff]
    %v2084 = vld [vmem:[%s6 + $0xe8] sm:$0xff]
    %v2085 = vld [vmem:[%s6 + $0xf0] sm:$0xff]
    %v2086 = vld [vmem:[%s6 + $0xf8] sm:$0xff]
    %v2087 = vld [vmem:[%s8] sm:$0xf]
    %v2089 = vlaneseq
    %v2090 = vshrl.u32 %v2089, 7
    %v2091 = vsub.s32 0, %v2090
    %v2092 = vrot.slane %v2087, %v2091
    %v2093 = vlaneseq
    %v2094 = vshrl.u32 %v2093, 7
    %v2095 = vsub.s32 1, %v2094
    %v2096 = vrot.slane %v2087, %v2095
    %v2097 = vlaneseq
    %v2098 = vshrl.u32 %v2097, 7
    %v2099 = vsub.s32 2, %v2098
    %v2100 = vrot.slane %v2087, %v2099
    %v2101 = vlaneseq
    %v2102 = vshrl.u32 %v2101, 7
    %v2103 = vsub.s32 3, %v2102
    %v2104 = vrot.slane %v2087, %v2103
    %v2141 = vunpack.c.l.b16 %v2055
    %v2142 = vunpack.c.h.b16 %v2055
    %v2143 = vunpack.c.l.b16 %v2056
    %v2144 = vunpack.c.h.b16 %v2056
    %v2145 = vunpack.c.l.b16 %v2057
    %v2146 = vunpack.c.h.b16 %v2057
    %v2147 = vunpack.c.l.b16 %v2058
    %v2148 = vunpack.c.h.b16 %v2058
    %v2149 = vunpack.c.l.b16 %v2059
    %v2150 = vunpack.c.h.b16 %v2059
    %v2151 = vunpack.c.l.b16 %v2060
    %v2152 = vunpack.c.h.b16 %v2060
    %v2153 = vunpack.c.l.b16 %v2061
    %v2154 = vunpack.c.h.b16 %v2061
    %v2155 = vunpack.c.l.b16 %v2062
    %v2156 = vunpack.c.h.b16 %v2062
    %v2157 = vunpack.c.l.b16 %v2063
    %v2158 = vunpack.c.h.b16 %v2063
    %v2159 = vunpack.c.l.b16 %v2064
    %v2160 = vunpack.c.h.b16 %v2064
    %v2161 = vunpack.c.l.b16 %v2065
    %v2162 = vunpack.c.h.b16 %v2065
    %v2163 = vunpack.c.l.b16 %v2066
    %v2164 = vunpack.c.h.b16 %v2066
    %v2165 = vunpack.c.l.b16 %v2067
    %v2166 = vunpack.c.h.b16 %v2067
    %v2167 = vunpack.c.l.b16 %v2068
    %v2168 = vunpack.c.h.b16 %v2068
    %v2169 = vunpack.c.l.b16 %v2069
    %v2170 = vunpack.c.h.b16 %v2069
    %v2171 = vunpack.c.l.b16 %v2070
    %v2172 = vunpack.c.h.b16 %v2070
    %v2173 = vunpack.c.l.b16 %v2071
    %v2174 = vunpack.c.h.b16 %v2071
    %v2175 = vunpack.c.l.b16 %v2072
    %v2176 = vunpack.c.h.b16 %v2072
    %v2177 = vunpack.c.l.b16 %v2073
    %v2178 = vunpack.c.h.b16 %v2073
    %v2179 = vunpack.c.l.b16 %v2074
    %v2180 = vunpack.c.h.b16 %v2074
    %v2181 = vunpack.c.l.b16 %v2075
    %v2182 = vunpack.c.h.b16 %v2075
    %v2183 = vunpack.c.l.b16 %v2076
    %v2184 = vunpack.c.h.b16 %v2076
    %v2185 = vunpack.c.l.b16 %v2077
    %v2186 = vunpack.c.h.b16 %v2077
    %v2187 = vunpack.c.l.b16 %v2078
    %v2188 = vunpack.c.h.b16 %v2078
    %v2189 = vunpack.c.l.b16 %v2079
    %v2190 = vunpack.c.h.b16 %v2079
    %v2191 = vunpack.c.l.b16 %v2080
    %v2192 = vunpack.c.h.b16 %v2080
    %v2193 = vunpack.c.l.b16 %v2081
    %v2194 = vunpack.c.h.b16 %v2081
    %v2195 = vunpack.c.l.b16 %v2082
    %v2196 = vunpack.c.h.b16 %v2082
    %v2197 = vunpack.c.l.b16 %v2083
    %v2198 = vunpack.c.h.b16 %v2083
    %v2199 = vunpack.c.l.b16 %v2084
    %v2200 = vunpack.c.h.b16 %v2084
    %v2201 = vunpack.c.l.b16 %v2085
    %v2202 = vunpack.c.h.b16 %v2085
    %v2203 = vunpack.c.l.b16 %v2086
    %v2204 = vunpack.c.h.b16 %v2086
    %v2205 = vpack.c.b16 %v2145, %v2141
    %v2206 = vpack.c.b16 %v2146, %v2142
    %v2207 = vpack.c.b16 %v2147, %v2143
    %v2208 = vpack.c.b16 %v2148, %v2144
    %v2209 = vpack.c.b16 %v2153, %v2149
    %v2210 = vpack.c.b16 %v2154, %v2150
    %v2211 = vpack.c.b16 %v2155, %v2151
    %v2212 = vpack.c.b16 %v2156, %v2152
    %v2213 = vpack.c.b16 %v2161, %v2157
    %v2214 = vpack.c.b16 %v2162, %v2158
    %v2215 = vpack.c.b16 %v2163, %v2159
    %v2216 = vpack.c.b16 %v2164, %v2160
    %v2217 = vpack.c.b16 %v2169, %v2165
    %v2218 = vpack.c.b16 %v2170, %v2166
    %v2219 = vpack.c.b16 %v2171, %v2167
    %v2220 = vpack.c.b16 %v2172, %v2168
    %v2221 = vpack.c.b16 %v2177, %v2173
    %v2222 = vpack.c.b16 %v2178, %v2174
    %v2223 = vpack.c.b16 %v2179, %v2175
    %v2224 = vpack.c.b16 %v2180, %v2176
    %v2225 = vpack.c.b16 %v2185, %v2181
    %v2226 = vpack.c.b16 %v2186, %v2182
    %v2227 = vpack.c.b16 %v2187, %v2183
    %v2228 = vpack.c.b16 %v2188, %v2184
    %v2229 = vpack.c.b16 %v2193, %v2189
    %v2230 = vpack.c.b16 %v2194, %v2190
    %v2231 = vpack.c.b16 %v2195, %v2191
    %v2232 = vpack.c.b16 %v2196, %v2192
    %v2233 = vpack.c.b16 %v2201, %v2197
    %v2234 = vpack.c.b16 %v2202, %v2198
    %v2235 = vpack.c.b16 %v2203, %v2199
    %v2236 = vpack.c.b16 %v2204, %v2200
    %2269 = vmatprep.subr.bf16.mxu0 %v2206
    %2270 = vmatpush1.bf16.msra.mxu0 %v2205
    %2271 = vmatprep.subr.bf16.mxu0 %v2210
    %2272 = vmatpush1.bf16.msra.mxu0 %v2209
    %2273 = vmatprep.subr.bf16.mxu0 %v2214
    %2274 = vmatpush1.bf16.msra.mxu0 %v2213
    %2275 = vmatprep.subr.bf16.mxu0 %v2218
    %2276 = vmatpush1.bf16.msra.mxu0 %v2217
    %2277 = vmatprep.subr.bf16.mxu0 %v2222
    %2278 = vmatpush1.bf16.msra.mxu0 %v2221
    %2279 = vmatprep.subr.bf16.mxu0 %v2226
    %2280 = vmatpush1.bf16.msra.mxu0 %v2225
    %2281 = vmatprep.subr.bf16.mxu0 %v2230
    %2282 = vmatpush1.bf16.msra.mxu0 %v2229
    %2283 = vmatprep.subr.bf16.mxu0 %v2234
    %2284 = vmatpush1.bf16.msra.mxu0 %v2233
    %2285 = vmatprep.subr.bf16.mxu0 0
    %2286 = vmatpush1.bf16.msra.mxu0 0
    %2287 = vmatprep.subr.bf16.mxu0 0
    %2288 = vmatpush1.bf16.msra.mxu0 0
    %2289 = vmatprep.subr.bf16.mxu0 0
    %2290 = vmatpush1.bf16.msra.mxu0 0
    %2291 = vmatprep.subr.bf16.mxu0 0
    %2292 = vmatpush1.bf16.msra.mxu0 0
    %2293 = vmatprep.subr.bf16.mxu0 0
    %2294 = vmatpush1.bf16.msra.mxu0 0
    %2295 = vmatprep.subr.bf16.mxu0 0
    %2296 = vmatpush1.bf16.msra.mxu0 0
    %2297 = vmatprep.subr.bf16.mxu0 0
    %2298 = vmatpush1.bf16.msra.mxu0 0
    %2299 = vmatprep.subr.bf16.mxu0 0
    %2300 = vmatpush1.bf16.msra.mxu0 0
    %2301 = vmatprep.mubr.bf16.mxu0 0
    %2302 = vmatmul.mubr.bf16.gmra.mrb[0].mxu0 %v993
    %v2303 = vpop.f32.mrb[0].mxu0
    %v2304 = vadd.f32 %v2092, %v2303
    %v2305 = vpop.f32.mrb[0].mxu0
    %v2306 = vadd.f32 %v2096, %v2305
    %v2307 = vpop.f32.mrb[0].mxu0
    %v2308 = vadd.f32 %v2092, %v2307
    %v2309 = vpop.f32.mrb[0].mxu0
    %v2310 = vadd.f32 %v2096, %v2309
    %2311 = vmatprep.mubr.bf16.mxu0 0
    %2312 = vmatmul.mubr.bf16.gmra.mrb[0].mxu0 %v1144
    %v2313 = vpop.f32.mrb[0].mxu0
    %v2314 = vadd.f32 %v2092, %v2313
    %v2315 = vpop.f32.mrb[0].mxu0
    %v2316 = vadd.f32 %v2096, %v2315
    %v2317 = vpop.f32.mrb[0].mxu0
    %v2318 = vadd.f32 %v2092, %v2317
    %v2319 = vpop.f32.mrb[0].mxu0
    %v2320 = vadd.f32 %v2096, %v2319
    %2321 = vmatprep.mubr.bf16.mxu0 0
    %2322 = vmatmul.mubr.bf16.gmra.mrb[0].mxu0 %v1295
    %v2323 = vpop.f32.mrb[0].mxu0
    %v2324 = vadd.f32 %v2092, %v2323
    %v2325 = vpop.f32.mrb[0].mxu0
    %v2326 = vadd.f32 %v2096, %v2325
    %v2327 = vpop.f32.mrb[0].mxu0
    %v2328 = vadd.f32 %v2092, %v2327
    %v2329 = vpop.f32.mrb[0].mxu0
    %v2330 = vadd.f32 %v2096, %v2329
    %2331 = vmatprep.mubr.bf16.mxu0 0
    %2332 = vmatmul.mubr.bf16.gmra.mrb[0].mxu0 %v1446
    %v2333 = vpop.f32.mrb[0].mxu0
    %v2334 = vadd.f32 %v2092, %v2333
    %v2335 = vpop.f32.mrb[0].mxu0
    %v2336 = vadd.f32 %v2096, %v2335
    %v2337 = vpop.f32.mrb[0].mxu0
    %v2338 = vadd.f32 %v2092, %v2337
    %v2339 = vpop.f32.mrb[0].mxu0
    %v2340 = vadd.f32 %v2096, %v2339
    %2341 = vmatprep.mubr.bf16.mxu0 0
    %2342 = vmatmul.mubr.bf16.gmra.mrb[0].mxu0 %v1597
    %v2343 = vpop.f32.mrb[0].mxu0
    %v2344 = vadd.f32 %v2092, %v2343
    %v2345 = vpop.f32.mrb[0].mxu0
    %v2346 = vadd.f32 %v2096, %v2345
    %v2347 = vpop.f32.mrb[0].mxu0
    %v2348 = vadd.f32 %v2092, %v2347
    %v2349 = vpop.f32.mrb[0].mxu0
    %v2350 = vadd.f32 %v2096, %v2349
    %2351 = vmatprep.mubr.bf16.mxu0 0
    %2352 = vmatmul.mubr.bf16.gmra.mrb[0].mxu0 %v1748
    %v2353 = vpop.f32.mrb[0].mxu0
    %v2354 = vadd.f32 %v2092, %v2353
    %v2355 = vpop.f32.mrb[0].mxu0
    %v2356 = vadd.f32 %v2096, %v2355
    %v2357 = vpop.f32.mrb[0].mxu0
    %v2358 = vadd.f32 %v2092, %v2357
    %v2359 = vpop.f32.mrb[0].mxu0
    %v2360 = vadd.f32 %v2096, %v2359
    %2361 = vmatprep.mubr.bf16.mxu0 0
    %2362 = vmatmul.mubr.bf16.gmra.mrb[0].mxu0 %v1899
    %v2363 = vpop.f32.mrb[0].mxu0
    %v2364 = vadd.f32 %v2092, %v2363
    %v2365 = vpop.f32.mrb[0].mxu0
    %v2366 = vadd.f32 %v2096, %v2365
    %v2367 = vpop.f32.mrb[0].mxu0
    %v2368 = vadd.f32 %v2092, %v2367
    %v2369 = vpop.f32.mrb[0].mxu0
    %v2370 = vadd.f32 %v2096, %v2369
    %2371 = vmatprep.mubr.bf16.mxu0 0
    %2372 = vmatmul.mubr.bf16.gmra.mrb[0].mxu0 %v2050
    %v2373 = vpop.f32.mrb[0].mxu0
    %v2374 = vadd.f32 %v2092, %v2373
    %v2375 = vpop.f32.mrb[0].mxu0
    %v2376 = vadd.f32 %v2096, %v2375
    %v2377 = vpop.f32.mrb[0].mxu0
    %v2378 = vadd.f32 %v2092, %v2377
    %v2379 = vpop.f32.mrb[0].mxu0
    %v2380 = vadd.f32 %v2096, %v2379
    %2381 = vdwg.mxu0
    %2382 = vmatprep.subr.bf16.mxu0 %v2208
    %2383 = vmatpush1.bf16.msra.mxu0 %v2207
    %2384 = vmatprep.subr.bf16.mxu0 %v2212
    %2385 = vmatpush1.bf16.msra.mxu0 %v2211
    %2386 = vmatprep.subr.bf16.mxu0 %v2216
    %2387 = vmatpush1.bf16.msra.mxu0 %v2215
    %2388 = vmatprep.subr.bf16.mxu0 %v2220
    %2389 = vmatpush1.bf16.msra.mxu0 %v2219
    %2390 = vmatprep.subr.bf16.mxu0 %v2224
    %2391 = vmatpush1.bf16.msra.mxu0 %v2223
    %2392 = vmatprep.subr.bf16.mxu0 %v2228
    %2393 = vmatpush1.bf16.msra.mxu0 %v2227
    %2394 = vmatprep.subr.bf16.mxu0 %v2232
    %2395 = vmatpush1.bf16.msra.mxu0 %v2231
    %2396 = vmatprep.subr.bf16.mxu0 %v2236
    %2397 = vmatpush1.bf16.msra.mxu0 %v2235
    %2398 = vmatprep.subr.bf16.mxu0 0
    %2399 = vmatpush1.bf16.msra.mxu0 0
    %2400 = vmatprep.subr.bf16.mxu0 0
    %2401 = vmatpush1.bf16.msra.mxu0 0
    %2402 = vmatprep.subr.bf16.mxu0 0
    %2403 = vmatpush1.bf16.msra.mxu0 0
    %2404 = vmatprep.subr.bf16.mxu0 0
    %2405 = vmatpush1.bf16.msra.mxu0 0
    %2406 = vmatprep.subr.bf16.mxu0 0
    %2407 = vmatpush1.bf16.msra.mxu0 0
    %2408 = vmatprep.subr.bf16.mxu0 0
    %2409 = vmatpush1.bf16.msra.mxu0 0
    %2410 = vmatprep.subr.bf16.mxu0 0
    %2411 = vmatpush1.bf16.msra.mxu0 0
    %2412 = vmatprep.subr.bf16.mxu0 0
    %2413 = vmatpush1.bf16.msra.mxu0 0
    %2414 = vmatprep.mubr.bf16.mxu0 0
    %2415 = vmatmul.mubr.bf16.gmra.mrb[0].mxu0 %v993
    %v2416 = vpop.f32.mrb[0].mxu0
    %v2417 = vadd.f32 %v2100, %v2416
    %v2418 = vpop.f32.mrb[0].mxu0
    %v2419 = vadd.f32 %v2104, %v2418
    %v2420 = vpop.f32.mrb[0].mxu0
    %v2421 = vadd.f32 %v2100, %v2420
    %v2422 = vpop.f32.mrb[0].mxu0
    %v2423 = vadd.f32 %v2104, %v2422
    %2424 = vmatprep.mubr.bf16.mxu0 0
    %2425 = vmatmul.mubr.bf16.gmra.mrb[0].mxu0 %v1144
    %v2426 = vpop.f32.mrb[0].mxu0
    %v2427 = vadd.f32 %v2100, %v2426
    %v2428 = vpop.f32.mrb[0].mxu0
    %v2429 = vadd.f32 %v2104, %v2428
    %v2430 = vpop.f32.mrb[0].mxu0
    %v2431 = vadd.f32 %v2100, %v2430
    %v2432 = vpop.f32.mrb[0].mxu0
    %v2433 = vadd.f32 %v2104, %v2432
    %2434 = vmatprep.mubr.bf16.mxu0 0
    %2435 = vmatmul.mubr.bf16.gmra.mrb[0].mxu0 %v1295
    %v2436 = vpop.f32.mrb[0].mxu0
    %v2437 = vadd.f32 %v2100, %v2436
    %v2438 = vpop.f32.mrb[0].mxu0
    %v2439 = vadd.f32 %v2104, %v2438
    %v2440 = vpop.f32.mrb[0].mxu0
    %v2441 = vadd.f32 %v2100, %v2440
    %v2442 = vpop.f32.mrb[0].mxu0
    %v2443 = vadd.f32 %v2104, %v2442
    %2444 = vmatprep.mubr.bf16.mxu0 0
    %2445 = vmatmul.mubr.bf16.gmra.mrb[0].mxu0 %v1446
    %v2446 = vpop.f32.mrb[0].mxu0
    %v2447 = vadd.f32 %v2100, %v2446
    %v2448 = vpop.f32.mrb[0].mxu0
    %v2449 = vadd.f32 %v2104, %v2448
    %v2450 = vpop.f32.mrb[0].mxu0
    %v2451 = vadd.f32 %v2100, %v2450
    %v2452 = vpop.f32.mrb[0].mxu0
    %v2453 = vadd.f32 %v2104, %v2452
    %2454 = vmatprep.mubr.bf16.mxu0 0
    %2455 = vmatmul.mubr.bf16.gmra.mrb[0].mxu0 %v1597
    %v2456 = vpop.f32.mrb[0].mxu0
    %v2457 = vadd.f32 %v2100, %v2456
    %v2458 = vpop.f32.mrb[0].mxu0
    %v2459 = vadd.f32 %v2104, %v2458
    %v2460 = vpop.f32.mrb[0].mxu0
    %v2461 = vadd.f32 %v2100, %v2460
    %v2462 = vpop.f32.mrb[0].mxu0
    %v2463 = vadd.f32 %v2104, %v2462
    %2464 = vmatprep.mubr.bf16.mxu0 0
    %2465 = vmatmul.mubr.bf16.gmra.mrb[0].mxu0 %v1748
    %v2466 = vpop.f32.mrb[0].mxu0
    %v2467 = vadd.f32 %v2100, %v2466
    %v2468 = vpop.f32.mrb[0].mxu0
    %v2469 = vadd.f32 %v2104, %v2468
    %v2470 = vpop.f32.mrb[0].mxu0
    %v2471 = vadd.f32 %v2100, %v2470
    %v2472 = vpop.f32.mrb[0].mxu0
    %v2473 = vadd.f32 %v2104, %v2472
    %2474 = vmatprep.mubr.bf16.mxu0 0
    %2475 = vmatmul.mubr.bf16.gmra.mrb[0].mxu0 %v1899
    %v2476 = vpop.f32.mrb[0].mxu0
    %v2477 = vadd.f32 %v2100, %v2476
    %v2478 = vpop.f32.mrb[0].mxu0
    %v2479 = vadd.f32 %v2104, %v2478
    %v2480 = vpop.f32.mrb[0].mxu0
    %v2481 = vadd.f32 %v2100, %v2480
    %v2482 = vpop.f32.mrb[0].mxu0
    %v2483 = vadd.f32 %v2104, %v2482
    %2484 = vmatprep.mubr.bf16.mxu0 0
    %2485 = vmatmul.mubr.bf16.gmra.mrb[0].mxu0 %v2050
    %v2486 = vpop.f32.mrb[0].mxu0
    %v2487 = vadd.f32 %v2100, %v2486
    %v2488 = vpop.f32.mrb[0].mxu0
    %v2489 = vadd.f32 %v2104, %v2488
    %v2490 = vpop.f32.mrb[0].mxu0
    %v2491 = vadd.f32 %v2100, %v2490
    %v2492 = vpop.f32.mrb[0].mxu0
    %v2493 = vadd.f32 %v2104, %v2492
    %2494 = vdwg.mxu0
    %2495 = vst [vmem:[#allocation4] sm:$0xff] %v2304
    %2496 = vst [vmem:[#allocation4 + $0x8] sm:$0xff] %v2306
    %2497 = vst [vmem:[#allocation4 + $0x10] sm:$0xff] %v2417
    %2498 = vst [vmem:[#allocation4 + $0x18] sm:$0xff] %v2419
    %2499 = vst [vmem:[#allocation4 + $0x20] sm:$0xff] %v2308
    %2500 = vst [vmem:[#allocation4 + $0x28] sm:$0xff] %v2310
    %2501 = vst [vmem:[#allocation4 + $0x30] sm:$0xff] %v2421
    %2502 = vst [vmem:[#allocation4 + $0x38] sm:$0xff] %v2423
    %2503 = vst [vmem:[#allocation4 + $0x40] sm:$0xff] %v2314
    %2504 = vst [vmem:[#allocation4 + $0x48] sm:$0xff] %v2316
    %2505 = vst [vmem:[#allocation4 + $0x50] sm:$0xff] %v2427
    %2506 = vst [vmem:[#allocation4 + $0x58] sm:$0xff] %v2429
    %2507 = vst [vmem:[#allocation4 + $0x60] sm:$0xff] %v2318
    %2508 = vst [vmem:[#allocation4 + $0x68] sm:$0xff] %v2320
    %2509 = vst [vmem:[#allocation4 + $0x70] sm:$0xff] %v2431
    %2510 = vst [vmem:[#allocation4 + $0x78] sm:$0xff] %v2433
    %2511 = vst [vmem:[#allocation4 + $0x80] sm:$0xff] %v2324
    %2512 = vst [vmem:[#allocation4 + $0x88] sm:$0xff] %v2326
    %2513 = vst [vmem:[#allocation4 + $0x90] sm:$0xff] %v2437
    %2514 = vst [vmem:[#allocation4 + $0x98] sm:$0xff] %v2439
    %2515 = vst [vmem:[#allocation4 + $0xa0] sm:$0xff] %v2328
    %2516 = vst [vmem:[#allocation4 + $0xa8] sm:$0xff] %v2330
    %2517 = vst [vmem:[#allocation4 + $0xb0] sm:$0xff] %v2441
    %2518 = vst [vmem:[#allocation4 + $0xb8] sm:$0xff] %v2443
    %2519 = vst [vmem:[#allocation4 + $0xc0] sm:$0xff] %v2334
    %2520 = vst [vmem:[#allocation4 + $0xc8] sm:$0xff] %v2336
    %2521 = vst [vmem:[#allocation4 + $0xd0] sm:$0xff] %v2447
    %2522 = vst [vmem:[#allocation4 + $0xd8] sm:$0xff] %v2449
    %2523 = vst [vmem:[#allocation4 + $0xe0] sm:$0xff] %v2338
    %2524 = vst [vmem:[#allocation4 + $0xe8] sm:$0xff] %v2340
    %2525 = vst [vmem:[#allocation4 + $0xf0] sm:$0xff] %v2451
    %2526 = vst [vmem:[#allocation4 + $0xf8] sm:$0xff] %v2453
    %2527 = vst [vmem:[#allocation4 + $0x100] sm:$0xff] %v2344
    %2528 = vst [vmem:[#allocation4 + $0x108] sm:$0xff] %v2346
    %2529 = vst [vmem:[#allocation4 + $0x110] sm:$0xff] %v2457
    %2530 = vst [vmem:[#allocation4 + $0x118] sm:$0xff] %v2459
    %2531 = vst [vmem:[#allocation4 + $0x120] sm:$0xff] %v2348
    %2532 = vst [vmem:[#allocation4 + $0x128] sm:$0xff] %v2350
    %2533 = vst [vmem:[#allocation4 + $0x130] sm:$0xff] %v2461
    %2534 = vst [vmem:[#allocation4 + $0x138] sm:$0xff] %v2463
    %2535 = vst [vmem:[#allocation4 + $0x140] sm:$0xff] %v2354
    %2536 = vst [vmem:[#allocation4 + $0x148] sm:$0xff] %v2356
    %2537 = vst [vmem:[#allocation4 + $0x150] sm:$0xff] %v2467
    %2538 = vst [vmem:[#allocation4 + $0x158] sm:$0xff] %v2469
    %2539 = vst [vmem:[#allocation4 + $0x160] sm:$0xff] %v2358
    %2540 = vst [vmem:[#allocation4 + $0x168] sm:$0xff] %v2360
    %2541 = vst [vmem:[#allocation4 + $0x170] sm:$0xff] %v2471
    %2542 = vst [vmem:[#allocation4 + $0x178] sm:$0xff] %v2473
    %2543 = vst [vmem:[#allocation4 + $0x180] sm:$0xff] %v2364
    %2544 = vst [vmem:[#allocation4 + $0x188] sm:$0xff] %v2366
    %2545 = vst [vmem:[#allocation4 + $0x190] sm:$0xff] %v2477
    %2546 = vst [vmem:[#allocation4 + $0x198] sm:$0xff] %v2479
    %2547 = vst [vmem:[#allocation4 + $0x1a0] sm:$0xff] %v2368
    %2548 = vst [vmem:[#allocation4 + $0x1a8] sm:$0xff] %v2370
    %2549 = vst [vmem:[#allocation4 + $0x1b0] sm:$0xff] %v2481
    %2550 = vst [vmem:[#allocation4 + $0x1b8] sm:$0xff] %v2483
    %2551 = vst [vmem:[#allocation4 + $0x1c0] sm:$0xff] %v2374
    %2552 = vst [vmem:[#allocation4 + $0x1c8] sm:$0xff] %v2376
    %2553 = vst [vmem:[#allocation4 + $0x1d0] sm:$0xff] %v2487
    %2554 = vst [vmem:[#allocation4 + $0x1d8] sm:$0xff] %v2489
    %2555 = vst [vmem:[#allocation4 + $0x1e0] sm:$0xff] %v2378
    %2556 = vst [vmem:[#allocation4 + $0x1e8] sm:$0xff] %v2380
    %2557 = vst [vmem:[#allocation4 + $0x1f0] sm:$0xff] %v2491
    %2558 = vst [vmem:[#allocation4 + $0x1f8] sm:$0xff] %v2493
    %v2559 = vld [vmem:[#allocation6] sm:$0xff]
    %v2560 = vld [vmem:[#allocation6 + $0x8] sm:$0xff]
    %v2561 = vld [vmem:[#allocation6 + $0x10] sm:$0xff]
    %v2562 = vld [vmem:[#allocation6 + $0x18] sm:$0xff]
    %v2563 = vld [vmem:[#allocation6 + $0x20] sm:$0xff]
    %v2564 = vld [vmem:[#allocation6 + $0x28] sm:$0xff]
    %v2565 = vld [vmem:[#allocation6 + $0x30] sm:$0xff]
    %v2566 = vld [vmem:[#allocation6 + $0x38] sm:$0xff]
    %v2567 = vld [vmem:[#allocation6 + $0x40] sm:$0xff]
    %v2568 = vld [vmem:[#allocation6 + $0x48] sm:$0xff]
    %v2569 = vld [vmem:[#allocation6 + $0x50] sm:$0xff]
    %v2570 = vld [vmem:[#allocation6 + $0x58] sm:$0xff]
    %v2571 = vld [vmem:[#allocation6 + $0x60] sm:$0xff]
    %v2572 = vld [vmem:[#allocation6 + $0x68] sm:$0xff]
    %v2573 = vld [vmem:[#allocation6 + $0x70] sm:$0xff]
    %v2574 = vld [vmem:[#allocation6 + $0x78] sm:$0xff]
    %v2575 = vld [vmem:[#allocation6 + $0x80] sm:$0xff]
    %v2576 = vld [vmem:[#allocation6 + $0x88] sm:$0xff]
    %v2577 = vld [vmem:[#allocation6 + $0x90] sm:$0xff]
    %v2578 = vld [vmem:[#allocation6 + $0x98] sm:$0xff]
    %v2579 = vld [vmem:[#allocation6 + $0xa0] sm:$0xff]
    %v2580 = vld [vmem:[#allocation6 + $0xa8] sm:$0xff]
    %v2581 = vld [vmem:[#allocation6 + $0xb0] sm:$0xff]
    %v2582 = vld [vmem:[#allocation6 + $0xb8] sm:$0xff]
    %v2583 = vld [vmem:[#allocation6 + $0xc0] sm:$0xff]
    %v2584 = vld [vmem:[#allocation6 + $0xc8] sm:$0xff]
    %v2585 = vld [vmem:[#allocation6 + $0xd0] sm:$0xff]
    %v2586 = vld [vmem:[#allocation6 + $0xd8] sm:$0xff]
    %v2587 = vld [vmem:[#allocation6 + $0xe0] sm:$0xff]
    %v2588 = vld [vmem:[#allocation6 + $0xe8] sm:$0xff]
    %v2589 = vld [vmem:[#allocation6 + $0xf0] sm:$0xff]
    %v2590 = vld [vmem:[#allocation6 + $0xf8] sm:$0xff]
    %s2591 = scalar_lea.vmem [#allocation2], 16
    %v2592 = vld [vmem:[%s2591] sm:$0xff]
    %v2593 = vld [vmem:[%s2591 + $0x8] sm:$0xff]
    %s2594 = scalar_lea.vmem [#allocation3], 16
    %v2595 = vld [vmem:[%s2594] sm:$0xff]
    %v2596 = vld [vmem:[%s2594 + $0x8] sm:$0xff]
    %v2597 = vld [vmem:[#allocation4] sm:$0xff]
    %v2598 = vld [vmem:[#allocation4 + $0x8] sm:$0xff]
    %v2599 = vld [vmem:[#allocation4 + $0x10] sm:$0xff]
    %v2600 = vld [vmem:[#allocation4 + $0x18] sm:$0xff]
    %v2601 = vld [vmem:[#allocation4 + $0x20] sm:$0xff]
    %v2602 = vld [vmem:[#allocation4 + $0x28] sm:$0xff]
    %v2603 = vld [vmem:[#allocation4 + $0x30] sm:$0xff]
    %v2604 = vld [vmem:[#allocation4 + $0x38] sm:$0xff]
    %v2605 = vpack.c.bf16 %v2593, %v2592
    %v2638 = vunpack.c.l.b16 %v2559
    %v2639 = vunpack.c.h.b16 %v2559
    %v2640 = vunpack.c.l.b16 %v2560
    %v2641 = vunpack.c.h.b16 %v2560
    %v2642 = vunpack.c.l.b16 %v2561
    %v2643 = vunpack.c.h.b16 %v2561
    %v2644 = vunpack.c.l.b16 %v2562
    %v2645 = vunpack.c.h.b16 %v2562
    %v2646 = vunpack.c.l.b16 %v2563
    %v2647 = vunpack.c.h.b16 %v2563
    %v2648 = vunpack.c.l.b16 %v2564
    %v2649 = vunpack.c.h.b16 %v2564
    %v2650 = vunpack.c.l.b16 %v2565
    %v2651 = vunpack.c.h.b16 %v2565
    %v2652 = vunpack.c.l.b16 %v2566
    %v2653 = vunpack.c.h.b16 %v2566
    %v2654 = vunpack.c.l.b16 %v2567
    %v2655 = vunpack.c.h.b16 %v2567
    %v2656 = vunpack.c.l.b16 %v2568
    %v2657 = vunpack.c.h.b16 %v2568
    %v2658 = vunpack.c.l.b16 %v2569
    %v2659 = vunpack.c.h.b16 %v2569
    %v2660 = vunpack.c.l.b16 %v2570
    %v2661 = vunpack.c.h.b16 %v2570
    %v2662 = vunpack.c.l.b16 %v2571
    %v2663 = vunpack.c.h.b16 %v2571
    %v2664 = vunpack.c.l.b16 %v2572
    %v2665 = vunpack.c.h.b16 %v2572
    %v2666 = vunpack.c.l.b16 %v2573
    %v2667 = vunpack.c.h.b16 %v2573
    %v2668 = vunpack.c.l.b16 %v2574
    %v2669 = vunpack.c.h.b16 %v2574
    %v2670 = vunpack.c.l.b16 %v2575
    %v2671 = vunpack.c.h.b16 %v2575
    %v2672 = vunpack.c.l.b16 %v2576
    %v2673 = vunpack.c.h.b16 %v2576
    %v2674 = vunpack.c.l.b16 %v2577
    %v2675 = vunpack.c.h.b16 %v2577
    %v2676 = vunpack.c.l.b16 %v2578
    %v2677 = vunpack.c.h.b16 %v2578
    %v2678 = vunpack.c.l.b16 %v2579
    %v2679 = vunpack.c.h.b16 %v2579
    %v2680 = vunpack.c.l.b16 %v2580
    %v2681 = vunpack.c.h.b16 %v2580
    %v2682 = vunpack.c.l.b16 %v2581
    %v2683 = vunpack.c.h.b16 %v2581
    %v2684 = vunpack.c.l.b16 %v2582
    %v2685 = vunpack.c.h.b16 %v2582
    %v2686 = vunpack.c.l.b16 %v2583
    %v2687 = vunpack.c.h.b16 %v2583
    %v2688 = vunpack.c.l.b16 %v2584
    %v2689 = vunpack.c.h.b16 %v2584
    %v2690 = vunpack.c.l.b16 %v2585
    %v2691 = vunpack.c.h.b16 %v2585
    %v2692 = vunpack.c.l.b16 %v2586
    %v2693 = vunpack.c.h.b16 %v2586
    %v2694 = vunpack.c.l.b16 %v2587
    %v2695 = vunpack.c.h.b16 %v2587
    %v2696 = vunpack.c.l.b16 %v2588
    %v2697 = vunpack.c.h.b16 %v2588
    %v2698 = vunpack.c.l.b16 %v2589
    %v2699 = vunpack.c.h.b16 %v2589
    %v2700 = vunpack.c.l.b16 %v2590
    %v2701 = vunpack.c.h.b16 %v2590
    %v2702 = vpack.c.b16 %v2642, %v2638
    %v2703 = vpack.c.b16 %v2643, %v2639
    %v2704 = vpack.c.b16 %v2644, %v2640
    %v2705 = vpack.c.b16 %v2645, %v2641
    %v2706 = vpack.c.b16 %v2650, %v2646
    %v2707 = vpack.c.b16 %v2651, %v2647
    %v2708 = vpack.c.b16 %v2652, %v2648
    %v2709 = vpack.c.b16 %v2653, %v2649
    %v2710 = vpack.c.b16 %v2658, %v2654
    %v2711 = vpack.c.b16 %v2659, %v2655
    %v2712 = vpack.c.b16 %v2660, %v2656
    %v2713 = vpack.c.b16 %v2661, %v2657
    %v2714 = vpack.c.b16 %v2666, %v2662
    %v2715 = vpack.c.b16 %v2667, %v2663
    %v2716 = vpack.c.b16 %v2668, %v2664
    %v2717 = vpack.c.b16 %v2669, %v2665
    %v2718 = vpack.c.b16 %v2674, %v2670
    %v2719 = vpack.c.b16 %v2675, %v2671
    %v2720 = vpack.c.b16 %v2676, %v2672
    %v2721 = vpack.c.b16 %v2677, %v2673
    %v2722 = vpack.c.b16 %v2682, %v2678
    %v2723 = vpack.c.b16 %v2683, %v2679
    %v2724 = vpack.c.b16 %v2684, %v2680
    %v2725 = vpack.c.b16 %v2685, %v2681
    %v2726 = vpack.c.b16 %v2690, %v2686
    %v2727 = vpack.c.b16 %v2691, %v2687
    %v2728 = vpack.c.b16 %v2692, %v2688
    %v2729 = vpack.c.b16 %v2693, %v2689
    %v2730 = vpack.c.b16 %v2698, %v2694
    %v2731 = vpack.c.b16 %v2699, %v2695
    %v2732 = vpack.c.b16 %v2700, %v2696
    %v2733 = vpack.c.b16 %v2701, %v2697
    %2766 = vmatprep.subr.bf16.mxu0 %v2703
    %2767 = vmatpush1.bf16.msra.mxu0 %v2702
    %2768 = vmatprep.subr.bf16.mxu0 %v2707
    %2769 = vmatpush1.bf16.msra.mxu0 %v2706
    %2770 = vmatprep.subr.bf16.mxu0 %v2711
    %2771 = vmatpush1.bf16.msra.mxu0 %v2710
    %2772 = vmatprep.subr.bf16.mxu0 %v2715
    %2773 = vmatpush1.bf16.msra.mxu0 %v2714
    %2774 = vmatprep.subr.bf16.mxu0 %v2719
    %2775 = vmatpush1.bf16.msra.mxu0 %v2718
    %2776 = vmatprep.subr.bf16.mxu0 %v2723
    %2777 = vmatpush1.bf16.msra.mxu0 %v2722
    %2778 = vmatprep.subr.bf16.mxu0 %v2727
    %2779 = vmatpush1.bf16.msra.mxu0 %v2726
    %2780 = vmatprep.subr.bf16.mxu0 %v2731
    %2781 = vmatpush1.bf16.msra.mxu0 %v2730
    %2782 = vmatprep.subr.bf16.mxu0 0
    %2783 = vmatpush1.bf16.msra.mxu0 0
    %2784 = vmatprep.subr.bf16.mxu0 0
    %2785 = vmatpush1.bf16.msra.mxu0 0
    %2786 = vmatprep.subr.bf16.mxu0 0
    %2787 = vmatpush1.bf16.msra.mxu0 0
    %2788 = vmatprep.subr.bf16.mxu0 0
    %2789 = vmatpush1.bf16.msra.mxu0 0
    %2790 = vmatprep.subr.bf16.mxu0 0
    %2791 = vmatpush1.bf16.msra.mxu0 0
    %2792 = vmatprep.subr.bf16.mxu0 0
    %2793 = vmatpush1.bf16.msra.mxu0 0
    %2794 = vmatprep.subr.bf16.mxu0 0
    %2795 = vmatpush1.bf16.msra.mxu0 0
    %2796 = vmatprep.subr.bf16.mxu0 0
    %2797 = vmatpush1.bf16.msra.mxu0 0
    %2798 = vmatprep.mubr.bf16.mxu0 0
    %2799 = vmatmul.mubr.bf16.gmra.mrb[0].mxu0 %v2605
    %v2800 = vpop.f32.mrb[0].mxu0
    %v2801 = vadd.f32 0.0, %v2800
    %v2802 = vpop.f32.mrb[0].mxu0
    %v2803 = vadd.f32 0.0, %v2802
    %v2804 = vpop.f32.mrb[0].mxu0
    %v2805 = vadd.f32 0.0, %v2804
    %v2806 = vpop.f32.mrb[0].mxu0
    %v2807 = vadd.f32 0.0, %v2806
    %2808 = vdwg.mxu0
    %2809 = vmatprep.subr.bf16.mxu0 %v2705
    %2810 = vmatpush1.bf16.msra.mxu0 %v2704
    %2811 = vmatprep.subr.bf16.mxu0 %v2709
    %2812 = vmatpush1.bf16.msra.mxu0 %v2708
    %2813 = vmatprep.subr.bf16.mxu0 %v2713
    %2814 = vmatpush1.bf16.msra.mxu0 %v2712
    %2815 = vmatprep.subr.bf16.mxu0 %v2717
    %2816 = vmatpush1.bf16.msra.mxu0 %v2716
    %2817 = vmatprep.subr.bf16.mxu0 %v2721
    %2818 = vmatpush1.bf16.msra.mxu0 %v2720
    %2819 = vmatprep.subr.bf16.mxu0 %v2725
    %2820 = vmatpush1.bf16.msra.mxu0 %v2724
    %2821 = vmatprep.subr.bf16.mxu0 %v2729
    %2822 = vmatpush1.bf16.msra.mxu0 %v2728
    %2823 = vmatprep.subr.bf16.mxu0 %v2733
    %2824 = vmatpush1.bf16.msra.mxu0 %v2732
    %2825 = vmatprep.subr.bf16.mxu0 0
    %2826 = vmatpush1.bf16.msra.mxu0 0
    %2827 = vmatprep.subr.bf16.mxu0 0
    %2828 = vmatpush1.bf16.msra.mxu0 0
    %2829 = vmatprep.subr.bf16.mxu0 0
    %2830 = vmatpush1.bf16.msra.mxu0 0
    %2831 = vmatprep.subr.bf16.mxu0 0
    %2832 = vmatpush1.bf16.msra.mxu0 0
    %2833 = vmatprep.subr.bf16.mxu0 0
    %2834 = vmatpush1.bf16.msra.mxu0 0
    %2835 = vmatprep.subr.bf16.mxu0 0
    %2836 = vmatpush1.bf16.msra.mxu0 0
    %2837 = vmatprep.subr.bf16.mxu0 0
    %2838 = vmatpush1.bf16.msra.mxu0 0
    %2839 = vmatprep.subr.bf16.mxu0 0
    %2840 = vmatpush1.bf16.msra.mxu0 0
    %2841 = vmatprep.mubr.bf16.mxu0 0
    %2842 = vmatmul.mubr.bf16.gmra.mrb[0].mxu0 %v2605
    %v2843 = vpop.f32.mrb[0].mxu0
    %v2844 = vadd.f32 0.0, %v2843
    %v2845 = vpop.f32.mrb[0].mxu0
    %v2846 = vadd.f32 0.0, %v2845
    %v2847 = vpop.f32.mrb[0].mxu0
    %v2848 = vadd.f32 0.0, %v2847
    %v2849 = vpop.f32.mrb[0].mxu0
    %v2850 = vadd.f32 0.0, %v2849
    %2851 = vdwg.mxu0
    %v2852 = vadd.f32 %v2597, %v2801
    %v2853 = vadd.f32 %v2598, %v2803
    %v2854 = vadd.f32 %v2599, %v2844
    %v2855 = vadd.f32 %v2600, %v2846
    %v2856 = vadd.f32 %v2601, %v2805
    %v2857 = vadd.f32 %v2602, %v2807
    %v2858 = vadd.f32 %v2603, %v2848
    %v2859 = vadd.f32 %v2604, %v2850
    %v2860 = vxor.u32 %v2852, 2147483648
    %v2861 = vxor.u32 %v2856, 2147483648
    %v2862 = vmul.f32 %v2860, 1.442695
    %v2863 = vpow.pop %v2862
    %v2864 = vmul.f32 %v2861, 1.442695
    %v2865 = vpow.pop %v2864
    %v2866 = vadd.f32 %v2863, 1.0
    %v2867 = vadd.f32 %v2865, 1.0
    %v2868 = vrcp.pop %v2866
    %v2869 = vmul.f32 1.0, %v2868
    %v2870 = vrcp.pop %v2867
    %v2871 = vmul.f32 1.0, %v2870
    %v2872 = vxor.u32 %v2853, 2147483648
    %v2873 = vxor.u32 %v2857, 2147483648
    %v2874 = vmul.f32 %v2872, 1.442695
    %v2875 = vpow.pop %v2874
    %v2876 = vmul.f32 %v2873, 1.442695
    %v2877 = vpow.pop %v2876
    %v2878 = vadd.f32 %v2875, 1.0
    %v2879 = vadd.f32 %v2877, 1.0
    %v2880 = vrcp.pop %v2878
    %v2881 = vmul.f32 1.0, %v2880
    %v2882 = vrcp.pop %v2879
    %v2883 = vmul.f32 1.0, %v2882
    %v2884 = vtanh.pop %v2854
    %v2885 = vtanh.pop %v2858
    %v2886 = vxor.u32 %v2855, 2147483648
    %v2887 = vxor.u32 %v2859, 2147483648
    %v2888 = vmul.f32 %v2886, 1.442695
    %v2889 = vpow.pop %v2888
    %v2890 = vmul.f32 %v2887, 1.442695
    %v2891 = vpow.pop %v2890
    %v2892 = vadd.f32 %v2889, 1.0
    %v2893 = vadd.f32 %v2891, 1.0
    %v2894 = vrcp.pop %v2892
    %v2895 = vmul.f32 1.0, %v2894
    %v2896 = vrcp.pop %v2893
    %v2897 = vmul.f32 1.0, %v2896
    %v2898 = vmul.f32 %v2881, %v2595
    %v2899 = vmul.f32 %v2883, %v2596
    %v2900 = vmul.f32 %v2869, %v2884
    %v2901 = vmul.f32 %v2871, %v2885
    %v2902 = vadd.f32 %v2898, %v2900
    %v2903 = vadd.f32 %v2899, %v2901
    %v2904 = vtanh.pop %v2902
    %v2905 = vtanh.pop %v2903
    %v2906 = vmul.f32 %v2895, %v2904
    %v2907 = vmul.f32 %v2897, %v2905
    %v2908 = vld [vmem:[#allocation4 + $0x40] sm:$0xff]
    %v2909 = vld [vmem:[#allocation4 + $0x48] sm:$0xff]
    %v2910 = vld [vmem:[#allocation4 + $0x50] sm:$0xff]
    %v2911 = vld [vmem:[#allocation4 + $0x58] sm:$0xff]
    %v2912 = vld [vmem:[#allocation4 + $0x60] sm:$0xff]
    %v2913 = vld [vmem:[#allocation4 + $0x68] sm:$0xff]
    %v2914 = vld [vmem:[#allocation4 + $0x70] sm:$0xff]
    %v2915 = vld [vmem:[#allocation4 + $0x78] sm:$0xff]
    %v2916 = vpack.c.bf16 %v2907, %v2906
    %2917 = vmatprep.subr.bf16.mxu0 %v2703
    %2918 = vmatpush1.bf16.msra.mxu0 %v2702
    %2919 = vmatprep.subr.bf16.mxu0 %v2707
    %2920 = vmatpush1.bf16.msra.mxu0 %v2706
    %2921 = vmatprep.subr.bf16.mxu0 %v2711
    %2922 = vmatpush1.bf16.msra.mxu0 %v2710
    %2923 = vmatprep.subr.bf16.mxu0 %v2715
    %2924 = vmatpush1.bf16.msra.mxu0 %v2714
    %2925 = vmatprep.subr.bf16.mxu0 %v2719
    %2926 = vmatpush1.bf16.msra.mxu0 %v2718
    %2927 = vmatprep.subr.bf16.mxu0 %v2723
    %2928 = vmatpush1.bf16.msra.mxu0 %v2722
    %2929 = vmatprep.subr.bf16.mxu0 %v2727
    %2930 = vmatpush1.bf16.msra.mxu0 %v2726
    %2931 = vmatprep.subr.bf16.mxu0 %v2731
    %2932 = vmatpush1.bf16.msra.mxu0 %v2730
    %2933 = vmatprep.subr.bf16.mxu0 0
    %2934 = vmatpush1.bf16.msra.mxu0 0
    %2935 = vmatprep.subr.bf16.mxu0 0
    %2936 = vmatpush1.bf16.msra.mxu0 0
    %2937 = vmatprep.subr.bf16.mxu0 0
    %2938 = vmatpush1.bf16.msra.mxu0 0
    %2939 = vmatprep.subr.bf16.mxu0 0
    %2940 = vmatpush1.bf16.msra.mxu0 0
    %2941 = vmatprep.subr.bf16.mxu0 0
    %2942 = vmatpush1.bf16.msra.mxu0 0
    %2943 = vmatprep.subr.bf16.mxu0 0
    %2944 = vmatpush1.bf16.msra.mxu0 0
    %2945 = vmatprep.subr.bf16.mxu0 0
    %2946 = vmatpush1.bf16.msra.mxu0 0
    %2947 = vmatprep.subr.bf16.mxu0 0
    %2948 = vmatpush1.bf16.msra.mxu0 0
    %2949 = vmatprep.mubr.bf16.mxu0 0
    %2950 = vmatmul.mubr.bf16.gmra.mrb[0].mxu0 %v2916
    %v2951 = vpop.f32.mrb[0].mxu0
    %v2952 = vadd.f32 0.0, %v2951
    %v2953 = vpop.f32.mrb[0].mxu0
    %v2954 = vadd.f32 0.0, %v2953
    %v2955 = vpop.f32.mrb[0].mxu0
    %v2956 = vadd.f32 0.0, %v2955
    %v2957 = vpop.f32.mrb[0].mxu0
    %v2958 = vadd.f32 0.0, %v2957
    %2959 = vdwg.mxu0
    %2960 = vmatprep.subr.bf16.mxu0 %v2705
    %2961 = vmatpush1.bf16.msra.mxu0 %v2704
    %2962 = vmatprep.subr.bf16.mxu0 %v2709
    %2963 = vmatpush1.bf16.msra.mxu0 %v2708
    %2964 = vmatprep.subr.bf16.mxu0 %v2713
    %2965 = vmatpush1.bf16.msra.mxu0 %v2712
    %2966 = vmatprep.subr.bf16.mxu0 %v2717
    %2967 = vmatpush1.bf16.msra.mxu0 %v2716
    %2968 = vmatprep.subr.bf16.mxu0 %v2721
    %2969 = vmatpush1.bf16.msra.mxu0 %v2720
    %2970 = vmatprep.subr.bf16.mxu0 %v2725
    %2971 = vmatpush1.bf16.msra.mxu0 %v2724
    %2972 = vmatprep.subr.bf16.mxu0 %v2729
    %2973 = vmatpush1.bf16.msra.mxu0 %v2728
    %2974 = vmatprep.subr.bf16.mxu0 %v2733
    %2975 = vmatpush1.bf16.msra.mxu0 %v2732
    %2976 = vmatprep.subr.bf16.mxu0 0
    %2977 = vmatpush1.bf16.msra.mxu0 0
    %2978 = vmatprep.subr.bf16.mxu0 0
    %2979 = vmatpush1.bf16.msra.mxu0 0
    %2980 = vmatprep.subr.bf16.mxu0 0
    %2981 = vmatpush1.bf16.msra.mxu0 0
    %2982 = vmatprep.subr.bf16.mxu0 0
    %2983 = vmatpush1.bf16.msra.mxu0 0
    %2984 = vmatprep.subr.bf16.mxu0 0
    %2985 = vmatpush1.bf16.msra.mxu0 0
    %2986 = vmatprep.subr.bf16.mxu0 0
    %2987 = vmatpush1.bf16.msra.mxu0 0
    %2988 = vmatprep.subr.bf16.mxu0 0
    %2989 = vmatpush1.bf16.msra.mxu0 0
    %2990 = vmatprep.subr.bf16.mxu0 0
    %2991 = vmatpush1.bf16.msra.mxu0 0
    %2992 = vmatprep.mubr.bf16.mxu0 0
    %2993 = vmatmul.mubr.bf16.gmra.mrb[0].mxu0 %v2916
    %v2994 = vpop.f32.mrb[0].mxu0
    %v2995 = vadd.f32 0.0, %v2994
    %v2996 = vpop.f32.mrb[0].mxu0
    %v2997 = vadd.f32 0.0, %v2996
    %v2998 = vpop.f32.mrb[0].mxu0
    %v2999 = vadd.f32 0.0, %v2998
    %v3000 = vpop.f32.mrb[0].mxu0
    %v3001 = vadd.f32 0.0, %v3000
    %3002 = vdwg.mxu0
    %v3003 = vadd.f32 %v2908, %v2952
    %v3004 = vadd.f32 %v2909, %v2954
    %v3005 = vadd.f32 %v2910, %v2995
    %v3006 = vadd.f32 %v2911, %v2997
    %v3007 = vadd.f32 %v2912, %v2956
    %v3008 = vadd.f32 %v2913, %v2958
    %v3009 = vadd.f32 %v2914, %v2999
    %v3010 = vadd.f32 %v2915, %v3001
    %v3011 = vxor.u32 %v3003, 2147483648
    %v3012 = vxor.u32 %v3007, 2147483648
    %v3013 = vmul.f32 %v3011, 1.442695
    %v3014 = vpow.pop %v3013
    %v3015 = vmul.f32 %v3012, 1.442695
    %v3016 = vpow.pop %v3015
    %v3017 = vadd.f32 %v3014, 1.0
    %v3018 = vadd.f32 %v3016, 1.0
    %v3019 = vrcp.pop %v3017
    %v3020 = vmul.f32 1.0, %v3019
    %v3021 = vrcp.pop %v3018
    %v3022 = vmul.f32 1.0, %v3021
    %v3023 = vxor.u32 %v3004, 2147483648
    %v3024 = vxor.u32 %v3008, 2147483648
    %v3025 = vmul.f32 %v3023, 1.442695
    %v3026 = vpow.pop %v3025
    %v3027 = vmul.f32 %v3024, 1.442695
    %v3028 = vpow.pop %v3027
    %v3029 = vadd.f32 %v3026, 1.0
    %v3030 = vadd.f32 %v3028, 1.0
    %v3031 = vrcp.pop %v3029
    %v3032 = vmul.f32 1.0, %v3031
    %v3033 = vrcp.pop %v3030
    %v3034 = vmul.f32 1.0, %v3033
    %v3035 = vtanh.pop %v3005
    %v3036 = vtanh.pop %v3009
    %v3037 = vxor.u32 %v3006, 2147483648
    %v3038 = vxor.u32 %v3010, 2147483648
    %v3039 = vmul.f32 %v3037, 1.442695
    %v3040 = vpow.pop %v3039
    %v3041 = vmul.f32 %v3038, 1.442695
    %v3042 = vpow.pop %v3041
    %v3043 = vadd.f32 %v3040, 1.0
    %v3044 = vadd.f32 %v3042, 1.0
    %v3045 = vrcp.pop %v3043
    %v3046 = vmul.f32 1.0, %v3045
    %v3047 = vrcp.pop %v3044
    %v3048 = vmul.f32 1.0, %v3047
    %v3049 = vmul.f32 %v3032, %v2902
    %v3050 = vmul.f32 %v3034, %v2903
    %v3051 = vmul.f32 %v3020, %v3035
    %v3052 = vmul.f32 %v3022, %v3036
    %v3053 = vadd.f32 %v3049, %v3051
    %v3054 = vadd.f32 %v3050, %v3052
    %v3055 = vtanh.pop %v3053
    %v3056 = vtanh.pop %v3054
    %v3057 = vmul.f32 %v3046, %v3055
    %v3058 = vmul.f32 %v3048, %v3056
    %v3059 = vld [vmem:[#allocation4 + $0x80] sm:$0xff]
    %v3060 = vld [vmem:[#allocation4 + $0x88] sm:$0xff]
    %v3061 = vld [vmem:[#allocation4 + $0x90] sm:$0xff]
    %v3062 = vld [vmem:[#allocation4 + $0x98] sm:$0xff]
    %v3063 = vld [vmem:[#allocation4 + $0xa0] sm:$0xff]
    %v3064 = vld [vmem:[#allocation4 + $0xa8] sm:$0xff]
    %v3065 = vld [vmem:[#allocation4 + $0xb0] sm:$0xff]
    %v3066 = vld [vmem:[#allocation4 + $0xb8] sm:$0xff]
    %v3067 = vpack.c.bf16 %v3058, %v3057
    %3068 = vmatprep.subr.bf16.mxu0 %v2703
    %3069 = vmatpush1.bf16.msra.mxu0 %v2702
    %3070 = vmatprep.subr.bf16.mxu0 %v2707
    %3071 = vmatpush1.bf16.msra.mxu0 %v2706
    %3072 = vmatprep.subr.bf16.mxu0 %v2711
    %3073 = vmatpush1.bf16.msra.mxu0 %v2710
    %3074 = vmatprep.subr.bf16.mxu0 %v2715
    %3075 = vmatpush1.bf16.msra.mxu0 %v2714
    %3076 = vmatprep.subr.bf16.mxu0 %v2719
    %3077 = vmatpush1.bf16.msra.mxu0 %v2718
    %3078 = vmatprep.subr.bf16.mxu0 %v2723
    %3079 = vmatpush1.bf16.msra.mxu0 %v2722
    %3080 = vmatprep.subr.bf16.mxu0 %v2727
    %3081 = vmatpush1.bf16.msra.mxu0 %v2726
    %3082 = vmatprep.subr.bf16.mxu0 %v2731
    %3083 = vmatpush1.bf16.msra.mxu0 %v2730
    %3084 = vmatprep.subr.bf16.mxu0 0
    %3085 = vmatpush1.bf16.msra.mxu0 0
    %3086 = vmatprep.subr.bf16.mxu0 0
    %3087 = vmatpush1.bf16.msra.mxu0 0
    %3088 = vmatprep.subr.bf16.mxu0 0
    %3089 = vmatpush1.bf16.msra.mxu0 0
    %3090 = vmatprep.subr.bf16.mxu0 0
    %3091 = vmatpush1.bf16.msra.mxu0 0
    %3092 = vmatprep.subr.bf16.mxu0 0
    %3093 = vmatpush1.bf16.msra.mxu0 0
    %3094 = vmatprep.subr.bf16.mxu0 0
    %3095 = vmatpush1.bf16.msra.mxu0 0
    %3096 = vmatprep.subr.bf16.mxu0 0
    %3097 = vmatpush1.bf16.msra.mxu0 0
    %3098 = vmatprep.subr.bf16.mxu0 0
    %3099 = vmatpush1.bf16.msra.mxu0 0
    %3100 = vmatprep.mubr.bf16.mxu0 0
    %3101 = vmatmul.mubr.bf16.gmra.mrb[0].mxu0 %v3067
    %v3102 = vpop.f32.mrb[0].mxu0
    %v3103 = vadd.f32 0.0, %v3102
    %v3104 = vpop.f32.mrb[0].mxu0
    %v3105 = vadd.f32 0.0, %v3104
    %v3106 = vpop.f32.mrb[0].mxu0
    %v3107 = vadd.f32 0.0, %v3106
    %v3108 = vpop.f32.mrb[0].mxu0
    %v3109 = vadd.f32 0.0, %v3108
    %3110 = vdwg.mxu0
    %3111 = vmatprep.subr.bf16.mxu0 %v2705
    %3112 = vmatpush1.bf16.msra.mxu0 %v2704
    %3113 = vmatprep.subr.bf16.mxu0 %v2709
    %3114 = vmatpush1.bf16.msra.mxu0 %v2708
    %3115 = vmatprep.subr.bf16.mxu0 %v2713
    %3116 = vmatpush1.bf16.msra.mxu0 %v2712
    %3117 = vmatprep.subr.bf16.mxu0 %v2717
    %3118 = vmatpush1.bf16.msra.mxu0 %v2716
    %3119 = vmatprep.subr.bf16.mxu0 %v2721
    %3120 = vmatpush1.bf16.msra.mxu0 %v2720
    %3121 = vmatprep.subr.bf16.mxu0 %v2725
    %3122 = vmatpush1.bf16.msra.mxu0 %v2724
    %3123 = vmatprep.subr.bf16.mxu0 %v2729
    %3124 = vmatpush1.bf16.msra.mxu0 %v2728
    %3125 = vmatprep.subr.bf16.mxu0 %v2733
    %3126 = vmatpush1.bf16.msra.mxu0 %v2732
    %3127 = vmatprep.subr.bf16.mxu0 0
    %3128 = vmatpush1.bf16.msra.mxu0 0
    %3129 = vmatprep.subr.bf16.mxu0 0
    %3130 = vmatpush1.bf16.msra.mxu0 0
    %3131 = vmatprep.subr.bf16.mxu0 0
    %3132 = vmatpush1.bf16.msra.mxu0 0
    %3133 = vmatprep.subr.bf16.mxu0 0
    %3134 = vmatpush1.bf16.msra.mxu0 0
    %3135 = vmatprep.subr.bf16.mxu0 0
    %3136 = vmatpush1.bf16.msra.mxu0 0
    %3137 = vmatprep.subr.bf16.mxu0 0
    %3138 = vmatpush1.bf16.msra.mxu0 0
    %3139 = vmatprep.subr.bf16.mxu0 0
    %3140 = vmatpush1.bf16.msra.mxu0 0
    %3141 = vmatprep.subr.bf16.mxu0 0
    %3142 = vmatpush1.bf16.msra.mxu0 0
    %3143 = vmatprep.mubr.bf16.mxu0 0
    %3144 = vmatmul.mubr.bf16.gmra.mrb[0].mxu0 %v3067
    %v3145 = vpop.f32.mrb[0].mxu0
    %v3146 = vadd.f32 0.0, %v3145
    %v3147 = vpop.f32.mrb[0].mxu0
    %v3148 = vadd.f32 0.0, %v3147
    %v3149 = vpop.f32.mrb[0].mxu0
    %v3150 = vadd.f32 0.0, %v3149
    %v3151 = vpop.f32.mrb[0].mxu0
    %v3152 = vadd.f32 0.0, %v3151
    %3153 = vdwg.mxu0
    %v3154 = vadd.f32 %v3059, %v3103
    %v3155 = vadd.f32 %v3060, %v3105
    %v3156 = vadd.f32 %v3061, %v3146
    %v3157 = vadd.f32 %v3062, %v3148
    %v3158 = vadd.f32 %v3063, %v3107
    %v3159 = vadd.f32 %v3064, %v3109
    %v3160 = vadd.f32 %v3065, %v3150
    %v3161 = vadd.f32 %v3066, %v3152
    %v3162 = vxor.u32 %v3154, 2147483648
    %v3163 = vxor.u32 %v3158, 2147483648
    %v3164 = vmul.f32 %v3162, 1.442695
    %v3165 = vpow.pop %v3164
    %v3166 = vmul.f32 %v3163, 1.442695
    %v3167 = vpow.pop %v3166
    %v3168 = vadd.f32 %v3165, 1.0
    %v3169 = vadd.f32 %v3167, 1.0
    %v3170 = vrcp.pop %v3168
    %v3171 = vmul.f32 1.0, %v3170
    %v3172 = vrcp.pop %v3169
    %v3173 = vmul.f32 1.0, %v3172
    %v3174 = vxor.u32 %v3155, 2147483648
    %v3175 = vxor.u32 %v3159, 2147483648
    %v3176 = vmul.f32 %v3174, 1.442695
    %v3177 = vpow.pop %v3176
    %v3178 = vmul.f32 %v3175, 1.442695
    %v3179 = vpow.pop %v3178
    %v3180 = vadd.f32 %v3177, 1.0
    %v3181 = vadd.f32 %v3179, 1.0
    %v3182 = vrcp.pop %v3180
    %v3183 = vmul.f32 1.0, %v3182
    %v3184 = vrcp.pop %v3181
    %v3185 = vmul.f32 1.0, %v3184
    %v3186 = vtanh.pop %v3156
    %v3187 = vtanh.pop %v3160
    %v3188 = vxor.u32 %v3157, 2147483648
    %v3189 = vxor.u32 %v3161, 2147483648
    %v3190 = vmul.f32 %v3188, 1.442695
    %v3191 = vpow.pop %v3190
    %v3192 = vmul.f32 %v3189, 1.442695
    %v3193 = vpow.pop %v3192
    %v3194 = vadd.f32 %v3191, 1.0
    %v3195 = vadd.f32 %v3193, 1.0
    %v3196 = vrcp.pop %v3194
    %v3197 = vmul.f32 1.0, %v3196
    %v3198 = vrcp.pop %v3195
    %v3199 = vmul.f32 1.0, %v3198
    %v3200 = vmul.f32 %v3183, %v3053
    %v3201 = vmul.f32 %v3185, %v3054
    %v3202 = vmul.f32 %v3171, %v3186
    %v3203 = vmul.f32 %v3173, %v3187
    %v3204 = vadd.f32 %v3200, %v3202
    %v3205 = vadd.f32 %v3201, %v3203
    %v3206 = vtanh.pop %v3204
    %v3207 = vtanh.pop %v3205
    %v3208 = vmul.f32 %v3197, %v3206
    %v3209 = vmul.f32 %v3199, %v3207
    %v3210 = vld [vmem:[#allocation4 + $0xc0] sm:$0xff]
    %v3211 = vld [vmem:[#allocation4 + $0xc8] sm:$0xff]
    %v3212 = vld [vmem:[#allocation4 + $0xd0] sm:$0xff]
    %v3213 = vld [vmem:[#allocation4 + $0xd8] sm:$0xff]
    %v3214 = vld [vmem:[#allocation4 + $0xe0] sm:$0xff]
    %v3215 = vld [vmem:[#allocation4 + $0xe8] sm:$0xff]
    %v3216 = vld [vmem:[#allocation4 + $0xf0] sm:$0xff]
    %v3217 = vld [vmem:[#allocation4 + $0xf8] sm:$0xff]
    %v3218 = vpack.c.bf16 %v3209, %v3208
    %3219 = vmatprep.subr.bf16.mxu0 %v2703
    %3220 = vmatpush1.bf16.msra.mxu0 %v2702
    %3221 = vmatprep.subr.bf16.mxu0 %v2707
    %3222 = vmatpush1.bf16.msra.mxu0 %v2706
    %3223 = vmatprep.subr.bf16.mxu0 %v2711
    %3224 = vmatpush1.bf16.msra.mxu0 %v2710
    %3225 = vmatprep.subr.bf16.mxu0 %v2715
    %3226 = vmatpush1.bf16.msra.mxu0 %v2714
    %3227 = vmatprep.subr.bf16.mxu0 %v2719
    %3228 = vmatpush1.bf16.msra.mxu0 %v2718
    %3229 = vmatprep.subr.bf16.mxu0 %v2723
    %3230 = vmatpush1.bf16.msra.mxu0 %v2722
    %3231 = vmatprep.subr.bf16.mxu0 %v2727
    %3232 = vmatpush1.bf16.msra.mxu0 %v2726
    %3233 = vmatprep.subr.bf16.mxu0 %v2731
    %3234 = vmatpush1.bf16.msra.mxu0 %v2730
    %3235 = vmatprep.subr.bf16.mxu0 0
    %3236 = vmatpush1.bf16.msra.mxu0 0
    %3237 = vmatprep.subr.bf16.mxu0 0
    %3238 = vmatpush1.bf16.msra.mxu0 0
    %3239 = vmatprep.subr.bf16.mxu0 0
    %3240 = vmatpush1.bf16.msra.mxu0 0
    %3241 = vmatprep.subr.bf16.mxu0 0
    %3242 = vmatpush1.bf16.msra.mxu0 0
    %3243 = vmatprep.subr.bf16.mxu0 0
    %3244 = vmatpush1.bf16.msra.mxu0 0
    %3245 = vmatprep.subr.bf16.mxu0 0
    %3246 = vmatpush1.bf16.msra.mxu0 0
    %3247 = vmatprep.subr.bf16.mxu0 0
    %3248 = vmatpush1.bf16.msra.mxu0 0
    %3249 = vmatprep.subr.bf16.mxu0 0
    %3250 = vmatpush1.bf16.msra.mxu0 0
    %3251 = vmatprep.mubr.bf16.mxu0 0
    %3252 = vmatmul.mubr.bf16.gmra.mrb[0].mxu0 %v3218
    %v3253 = vpop.f32.mrb[0].mxu0
    %v3254 = vadd.f32 0.0, %v3253
    %v3255 = vpop.f32.mrb[0].mxu0
    %v3256 = vadd.f32 0.0, %v3255
    %v3257 = vpop.f32.mrb[0].mxu0
    %v3258 = vadd.f32 0.0, %v3257
    %v3259 = vpop.f32.mrb[0].mxu0
    %v3260 = vadd.f32 0.0, %v3259
    %3261 = vdwg.mxu0
    %3262 = vmatprep.subr.bf16.mxu0 %v2705
    %3263 = vmatpush1.bf16.msra.mxu0 %v2704
    %3264 = vmatprep.subr.bf16.mxu0 %v2709
    %3265 = vmatpush1.bf16.msra.mxu0 %v2708
    %3266 = vmatprep.subr.bf16.mxu0 %v2713
    %3267 = vmatpush1.bf16.msra.mxu0 %v2712
    %3268 = vmatprep.subr.bf16.mxu0 %v2717
    %3269 = vmatpush1.bf16.msra.mxu0 %v2716
    %3270 = vmatprep.subr.bf16.mxu0 %v2721
    %3271 = vmatpush1.bf16.msra.mxu0 %v2720
    %3272 = vmatprep.subr.bf16.mxu0 %v2725
    %3273 = vmatpush1.bf16.msra.mxu0 %v2724
    %3274 = vmatprep.subr.bf16.mxu0 %v2729
    %3275 = vmatpush1.bf16.msra.mxu0 %v2728
    %3276 = vmatprep.subr.bf16.mxu0 %v2733
    %3277 = vmatpush1.bf16.msra.mxu0 %v2732
    %3278 = vmatprep.subr.bf16.mxu0 0
    %3279 = vmatpush1.bf16.msra.mxu0 0
    %3280 = vmatprep.subr.bf16.mxu0 0
    %3281 = vmatpush1.bf16.msra.mxu0 0
    %3282 = vmatprep.subr.bf16.mxu0 0
    %3283 = vmatpush1.bf16.msra.mxu0 0
    %3284 = vmatprep.subr.bf16.mxu0 0
    %3285 = vmatpush1.bf16.msra.mxu0 0
    %3286 = vmatprep.subr.bf16.mxu0 0
    %3287 = vmatpush1.bf16.msra.mxu0 0
    %3288 = vmatprep.subr.bf16.mxu0 0
    %3289 = vmatpush1.bf16.msra.mxu0 0
    %3290 = vmatprep.subr.bf16.mxu0 0
    %3291 = vmatpush1.bf16.msra.mxu0 0
    %3292 = vmatprep.subr.bf16.mxu0 0
    %3293 = vmatpush1.bf16.msra.mxu0 0
    %3294 = vmatprep.mubr.bf16.mxu0 0
    %3295 = vmatmul.mubr.bf16.gmra.mrb[0].mxu0 %v3218
    %v3296 = vpop.f32.mrb[0].mxu0
    %v3297 = vadd.f32 0.0, %v3296
    %v3298 = vpop.f32.mrb[0].mxu0
    %v3299 = vadd.f32 0.0, %v3298
    %v3300 = vpop.f32.mrb[0].mxu0
    %v3301 = vadd.f32 0.0, %v3300
    %v3302 = vpop.f32.mrb[0].mxu0
    %v3303 = vadd.f32 0.0, %v3302
    %3304 = vdwg.mxu0
    %v3305 = vadd.f32 %v3210, %v3254
    %v3306 = vadd.f32 %v3211, %v3256
    %v3307 = vadd.f32 %v3212, %v3297
    %v3308 = vadd.f32 %v3213, %v3299
    %v3309 = vadd.f32 %v3214, %v3258
    %v3310 = vadd.f32 %v3215, %v3260
    %v3311 = vadd.f32 %v3216, %v3301
    %v3312 = vadd.f32 %v3217, %v3303
    %v3313 = vxor.u32 %v3305, 2147483648
    %v3314 = vxor.u32 %v3309, 2147483648
    %v3315 = vmul.f32 %v3313, 1.442695
    %v3316 = vpow.pop %v3315
    %v3317 = vmul.f32 %v3314, 1.442695
    %v3318 = vpow.pop %v3317
    %v3319 = vadd.f32 %v3316, 1.0
    %v3320 = vadd.f32 %v3318, 1.0
    %v3321 = vrcp.pop %v3319
    %v3322 = vmul.f32 1.0, %v3321
    %v3323 = vrcp.pop %v3320
    %v3324 = vmul.f32 1.0, %v3323
    %v3325 = vxor.u32 %v3306, 2147483648
    %v3326 = vxor.u32 %v3310, 2147483648
    %v3327 = vmul.f32 %v3325, 1.442695
    %v3328 = vpow.pop %v3327
    %v3329 = vmul.f32 %v3326, 1.442695
    %v3330 = vpow.pop %v3329
    %v3331 = vadd.f32 %v3328, 1.0
    %v3332 = vadd.f32 %v3330, 1.0
    %v3333 = vrcp.pop %v3331
    %v3334 = vmul.f32 1.0, %v3333
    %v3335 = vrcp.pop %v3332
    %v3336 = vmul.f32 1.0, %v3335
    %v3337 = vtanh.pop %v3307
    %v3338 = vtanh.pop %v3311
    %v3339 = vxor.u32 %v3308, 2147483648
    %v3340 = vxor.u32 %v3312, 2147483648
    %v3341 = vmul.f32 %v3339, 1.442695
    %v3342 = vpow.pop %v3341
    %v3343 = vmul.f32 %v3340, 1.442695
    %v3344 = vpow.pop %v3343
    %v3345 = vadd.f32 %v3342, 1.0
    %v3346 = vadd.f32 %v3344, 1.0
    %v3347 = vrcp.pop %v3345
    %v3348 = vmul.f32 1.0, %v3347
    %v3349 = vrcp.pop %v3346
    %v3350 = vmul.f32 1.0, %v3349
    %v3351 = vmul.f32 %v3334, %v3204
    %v3352 = vmul.f32 %v3336, %v3205
    %v3353 = vmul.f32 %v3322, %v3337
    %v3354 = vmul.f32 %v3324, %v3338
    %v3355 = vadd.f32 %v3351, %v3353
    %v3356 = vadd.f32 %v3352, %v3354
    %v3357 = vtanh.pop %v3355
    %v3358 = vtanh.pop %v3356
    %v3359 = vmul.f32 %v3348, %v3357
    %v3360 = vmul.f32 %v3350, %v3358
    %v3361 = vld [vmem:[#allocation4 + $0x100] sm:$0xff]
    %v3362 = vld [vmem:[#allocation4 + $0x108] sm:$0xff]
    %v3363 = vld [vmem:[#allocation4 + $0x110] sm:$0xff]
    %v3364 = vld [vmem:[#allocation4 + $0x118] sm:$0xff]
    %v3365 = vld [vmem:[#allocation4 + $0x120] sm:$0xff]
    %v3366 = vld [vmem:[#allocation4 + $0x128] sm:$0xff]
    %v3367 = vld [vmem:[#allocation4 + $0x130] sm:$0xff]
    %v3368 = vld [vmem:[#allocation4 + $0x138] sm:$0xff]
    %v3369 = vpack.c.bf16 %v3360, %v3359
    %3370 = vmatprep.subr.bf16.mxu0 %v2703
    %3371 = vmatpush1.bf16.msra.mxu0 %v2702
    %3372 = vmatprep.subr.bf16.mxu0 %v2707
    %3373 = vmatpush1.bf16.msra.mxu0 %v2706
    %3374 = vmatprep.subr.bf16.mxu0 %v2711
    %3375 = vmatpush1.bf16.msra.mxu0 %v2710
    %3376 = vmatprep.subr.bf16.mxu0 %v2715
    %3377 = vmatpush1.bf16.msra.mxu0 %v2714
    %3378 = vmatprep.subr.bf16.mxu0 %v2719
    %3379 = vmatpush1.bf16.msra.mxu0 %v2718
    %3380 = vmatprep.subr.bf16.mxu0 %v2723
    %3381 = vmatpush1.bf16.msra.mxu0 %v2722
    %3382 = vmatprep.subr.bf16.mxu0 %v2727
    %3383 = vmatpush1.bf16.msra.mxu0 %v2726
    %3384 = vmatprep.subr.bf16.mxu0 %v2731
    %3385 = vmatpush1.bf16.msra.mxu0 %v2730
    %3386 = vmatprep.subr.bf16.mxu0 0
    %3387 = vmatpush1.bf16.msra.mxu0 0
    %3388 = vmatprep.subr.bf16.mxu0 0
    %3389 = vmatpush1.bf16.msra.mxu0 0
    %3390 = vmatprep.subr.bf16.mxu0 0
    %3391 = vmatpush1.bf16.msra.mxu0 0
    %3392 = vmatprep.subr.bf16.mxu0 0
    %3393 = vmatpush1.bf16.msra.mxu0 0
    %3394 = vmatprep.subr.bf16.mxu0 0
    %3395 = vmatpush1.bf16.msra.mxu0 0
    %3396 = vmatprep.subr.bf16.mxu0 0
    %3397 = vmatpush1.bf16.msra.mxu0 0
    %3398 = vmatprep.subr.bf16.mxu0 0
    %3399 = vmatpush1.bf16.msra.mxu0 0
    %3400 = vmatprep.subr.bf16.mxu0 0
    %3401 = vmatpush1.bf16.msra.mxu0 0
    %3402 = vmatprep.mubr.bf16.mxu0 0
    %3403 = vmatmul.mubr.bf16.gmra.mrb[0].mxu0 %v3369
    %v3404 = vpop.f32.mrb[0].mxu0
    %v3405 = vadd.f32 0.0, %v3404
    %v3406 = vpop.f32.mrb[0].mxu0
    %v3407 = vadd.f32 0.0, %v3406
    %v3408 = vpop.f32.mrb[0].mxu0
    %v3409 = vadd.f32 0.0, %v3408
    %v3410 = vpop.f32.mrb[0].mxu0
    %v3411 = vadd.f32 0.0, %v3410
    %3412 = vdwg.mxu0
    %3413 = vmatprep.subr.bf16.mxu0 %v2705
    %3414 = vmatpush1.bf16.msra.mxu0 %v2704
    %3415 = vmatprep.subr.bf16.mxu0 %v2709
    %3416 = vmatpush1.bf16.msra.mxu0 %v2708
    %3417 = vmatprep.subr.bf16.mxu0 %v2713
    %3418 = vmatpush1.bf16.msra.mxu0 %v2712
    %3419 = vmatprep.subr.bf16.mxu0 %v2717
    %3420 = vmatpush1.bf16.msra.mxu0 %v2716
    %3421 = vmatprep.subr.bf16.mxu0 %v2721
    %3422 = vmatpush1.bf16.msra.mxu0 %v2720
    %3423 = vmatprep.subr.bf16.mxu0 %v2725
    %3424 = vmatpush1.bf16.msra.mxu0 %v2724
    %3425 = vmatprep.subr.bf16.mxu0 %v2729
    %3426 = vmatpush1.bf16.msra.mxu0 %v2728
    %3427 = vmatprep.subr.bf16.mxu0 %v2733
    %3428 = vmatpush1.bf16.msra.mxu0 %v2732
    %3429 = vmatprep.subr.bf16.mxu0 0
    %3430 = vmatpush1.bf16.msra.mxu0 0
    %3431 = vmatprep.subr.bf16.mxu0 0
    %3432 = vmatpush1.bf16.msra.mxu0 0
    %3433 = vmatprep.subr.bf16.mxu0 0
    %3434 = vmatpush1.bf16.msra.mxu0 0
    %3435 = vmatprep.subr.bf16.mxu0 0
    %3436 = vmatpush1.bf16.msra.mxu0 0
    %3437 = vmatprep.subr.bf16.mxu0 0
    %3438 = vmatpush1.bf16.msra.mxu0 0
    %3439 = vmatprep.subr.bf16.mxu0 0
    %3440 = vmatpush1.bf16.msra.mxu0 0
    %3441 = vmatprep.subr.bf16.mxu0 0
    %3442 = vmatpush1.bf16.msra.mxu0 0
    %3443 = vmatprep.subr.bf16.mxu0 0
    %3444 = vmatpush1.bf16.msra.mxu0 0
    %3445 = vmatprep.mubr.bf16.mxu0 0
    %3446 = vmatmul.mubr.bf16.gmra.mrb[0].mxu0 %v3369
    %v3447 = vpop.f32.mrb[0].mxu0
    %v3448 = vadd.f32 0.0, %v3447
    %v3449 = vpop.f32.mrb[0].mxu0
    %v3450 = vadd.f32 0.0, %v3449
    %v3451 = vpop.f32.mrb[0].mxu0
    %v3452 = vadd.f32 0.0, %v3451
    %v3453 = vpop.f32.mrb[0].mxu0
    %v3454 = vadd.f32 0.0, %v3453
    %3455 = vdwg.mxu0
    %v3456 = vadd.f32 %v3361, %v3405
    %v3457 = vadd.f32 %v3362, %v3407
    %v3458 = vadd.f32 %v3363, %v3448
    %v3459 = vadd.f32 %v3364, %v3450
    %v3460 = vadd.f32 %v3365, %v3409
    %v3461 = vadd.f32 %v3366, %v3411
    %v3462 = vadd.f32 %v3367, %v3452
    %v3463 = vadd.f32 %v3368, %v3454
    %v3464 = vxor.u32 %v3456, 2147483648
    %v3465 = vxor.u32 %v3460, 2147483648
    %v3466 = vmul.f32 %v3464, 1.442695
    %v3467 = vpow.pop %v3466
    %v3468 = vmul.f32 %v3465, 1.442695
    %v3469 = vpow.pop %v3468
    %v3470 = vadd.f32 %v3467, 1.0
    %v3471 = vadd.f32 %v3469, 1.0
    %v3472 = vrcp.pop %v3470
    %v3473 = vmul.f32 1.0, %v3472
    %v3474 = vrcp.pop %v3471
    %v3475 = vmul.f32 1.0, %v3474
    %v3476 = vxor.u32 %v3457, 2147483648
    %v3477 = vxor.u32 %v3461, 2147483648
    %v3478 = vmul.f32 %v3476, 1.442695
    %v3479 = vpow.pop %v3478
    %v3480 = vmul.f32 %v3477, 1.442695
    %v3481 = vpow.pop %v3480
    %v3482 = vadd.f32 %v3479, 1.0
    %v3483 = vadd.f32 %v3481, 1.0
    %v3484 = vrcp.pop %v3482
    %v3485 = vmul.f32 1.0, %v3484
    %v3486 = vrcp.pop %v3483
    %v3487 = vmul.f32 1.0, %v3486
    %v3488 = vtanh.pop %v3458
    %v3489 = vtanh.pop %v3462
    %v3490 = vxor.u32 %v3459, 2147483648
    %v3491 = vxor.u32 %v3463, 2147483648
    %v3492 = vmul.f32 %v3490, 1.442695
    %v3493 = vpow.pop %v3492
    %v3494 = vmul.f32 %v3491, 1.442695
    %v3495 = vpow.pop %v3494
    %v3496 = vadd.f32 %v3493, 1.0
    %v3497 = vadd.f32 %v3495, 1.0
    %v3498 = vrcp.pop %v3496
    %v3499 = vmul.f32 1.0, %v3498
    %v3500 = vrcp.pop %v3497
    %v3501 = vmul.f32 1.0, %v3500
    %v3502 = vmul.f32 %v3485, %v3355
    %v3503 = vmul.f32 %v3487, %v3356
    %v3504 = vmul.f32 %v3473, %v3488
    %v3505 = vmul.f32 %v3475, %v3489
    %v3506 = vadd.f32 %v3502, %v3504
    %v3507 = vadd.f32 %v3503, %v3505
    %v3508 = vtanh.pop %v3506
    %v3509 = vtanh.pop %v3507
    %v3510 = vmul.f32 %v3499, %v3508
    %v3511 = vmul.f32 %v3501, %v3509
    %v3512 = vld [vmem:[#allocation4 + $0x140] sm:$0xff]
    %v3513 = vld [vmem:[#allocation4 + $0x148] sm:$0xff]
    %v3514 = vld [vmem:[#allocation4 + $0x150] sm:$0xff]
    %v3515 = vld [vmem:[#allocation4 + $0x158] sm:$0xff]
    %v3516 = vld [vmem:[#allocation4 + $0x160] sm:$0xff]
    %v3517 = vld [vmem:[#allocation4 + $0x168] sm:$0xff]
    %v3518 = vld [vmem:[#allocation4 + $0x170] sm:$0xff]
    %v3519 = vld [vmem:[#allocation4 + $0x178] sm:$0xff]
    %v3520 = vpack.c.bf16 %v3511, %v3510
    %3521 = vmatprep.subr.bf16.mxu0 %v2703
    %3522 = vmatpush1.bf16.msra.mxu0 %v2702
    %3523 = vmatprep.subr.bf16.mxu0 %v2707
    %3524 = vmatpush1.bf16.msra.mxu0 %v2706
    %3525 = vmatprep.subr.bf16.mxu0 %v2711
    %3526 = vmatpush1.bf16.msra.mxu0 %v2710
    %3527 = vmatprep.subr.bf16.mxu0 %v2715
    %3528 = vmatpush1.bf16.msra.mxu0 %v2714
    %3529 = vmatprep.subr.bf16.mxu0 %v2719
    %3530 = vmatpush1.bf16.msra.mxu0 %v2718
    %3531 = vmatprep.subr.bf16.mxu0 %v2723
    %3532 = vmatpush1.bf16.msra.mxu0 %v2722
    %3533 = vmatprep.subr.bf16.mxu0 %v2727
    %3534 = vmatpush1.bf16.msra.mxu0 %v2726
    %3535 = vmatprep.subr.bf16.mxu0 %v2731
    %3536 = vmatpush1.bf16.msra.mxu0 %v2730
    %3537 = vmatprep.subr.bf16.mxu0 0
    %3538 = vmatpush1.bf16.msra.mxu0 0
    %3539 = vmatprep.subr.bf16.mxu0 0
    %3540 = vmatpush1.bf16.msra.mxu0 0
    %3541 = vmatprep.subr.bf16.mxu0 0
    %3542 = vmatpush1.bf16.msra.mxu0 0
    %3543 = vmatprep.subr.bf16.mxu0 0
    %3544 = vmatpush1.bf16.msra.mxu0 0
    %3545 = vmatprep.subr.bf16.mxu0 0
    %3546 = vmatpush1.bf16.msra.mxu0 0
    %3547 = vmatprep.subr.bf16.mxu0 0
    %3548 = vmatpush1.bf16.msra.mxu0 0
    %3549 = vmatprep.subr.bf16.mxu0 0
    %3550 = vmatpush1.bf16.msra.mxu0 0
    %3551 = vmatprep.subr.bf16.mxu0 0
    %3552 = vmatpush1.bf16.msra.mxu0 0
    %3553 = vmatprep.mubr.bf16.mxu0 0
    %3554 = vmatmul.mubr.bf16.gmra.mrb[0].mxu0 %v3520
    %v3555 = vpop.f32.mrb[0].mxu0
    %v3556 = vadd.f32 0.0, %v3555
    %v3557 = vpop.f32.mrb[0].mxu0
    %v3558 = vadd.f32 0.0, %v3557
    %v3559 = vpop.f32.mrb[0].mxu0
    %v3560 = vadd.f32 0.0, %v3559
    %v3561 = vpop.f32.mrb[0].mxu0
    %v3562 = vadd.f32 0.0, %v3561
    %3563 = vdwg.mxu0
    %3564 = vmatprep.subr.bf16.mxu0 %v2705
    %3565 = vmatpush1.bf16.msra.mxu0 %v2704
    %3566 = vmatprep.subr.bf16.mxu0 %v2709
    %3567 = vmatpush1.bf16.msra.mxu0 %v2708
    %3568 = vmatprep.subr.bf16.mxu0 %v2713
    %3569 = vmatpush1.bf16.msra.mxu0 %v2712
    %3570 = vmatprep.subr.bf16.mxu0 %v2717
    %3571 = vmatpush1.bf16.msra.mxu0 %v2716
    %3572 = vmatprep.subr.bf16.mxu0 %v2721
    %3573 = vmatpush1.bf16.msra.mxu0 %v2720
    %3574 = vmatprep.subr.bf16.mxu0 %v2725
    %3575 = vmatpush1.bf16.msra.mxu0 %v2724
    %3576 = vmatprep.subr.bf16.mxu0 %v2729
    %3577 = vmatpush1.bf16.msra.mxu0 %v2728
    %3578 = vmatprep.subr.bf16.mxu0 %v2733
    %3579 = vmatpush1.bf16.msra.mxu0 %v2732
    %3580 = vmatprep.subr.bf16.mxu0 0
    %3581 = vmatpush1.bf16.msra.mxu0 0
    %3582 = vmatprep.subr.bf16.mxu0 0
    %3583 = vmatpush1.bf16.msra.mxu0 0
    %3584 = vmatprep.subr.bf16.mxu0 0
    %3585 = vmatpush1.bf16.msra.mxu0 0
    %3586 = vmatprep.subr.bf16.mxu0 0
    %3587 = vmatpush1.bf16.msra.mxu0 0
    %3588 = vmatprep.subr.bf16.mxu0 0
    %3589 = vmatpush1.bf16.msra.mxu0 0
    %3590 = vmatprep.subr.bf16.mxu0 0
    %3591 = vmatpush1.bf16.msra.mxu0 0
    %3592 = vmatprep.subr.bf16.mxu0 0
    %3593 = vmatpush1.bf16.msra.mxu0 0
    %3594 = vmatprep.subr.bf16.mxu0 0
    %3595 = vmatpush1.bf16.msra.mxu0 0
    %3596 = vmatprep.mubr.bf16.mxu0 0
    %3597 = vmatmul.mubr.bf16.gmra.mrb[0].mxu0 %v3520
    %v3598 = vpop.f32.mrb[0].mxu0
    %v3599 = vadd.f32 0.0, %v3598
    %v3600 = vpop.f32.mrb[0].mxu0
    %v3601 = vadd.f32 0.0, %v3600
    %v3602 = vpop.f32.mrb[0].mxu0
    %v3603 = vadd.f32 0.0, %v3602
    %v3604 = vpop.f32.mrb[0].mxu0
    %v3605 = vadd.f32 0.0, %v3604
    %3606 = vdwg.mxu0
    %v3607 = vadd.f32 %v3512, %v3556
    %v3608 = vadd.f32 %v3513, %v3558
    %v3609 = vadd.f32 %v3514, %v3599
    %v3610 = vadd.f32 %v3515, %v3601
    %v3611 = vadd.f32 %v3516, %v3560
    %v3612 = vadd.f32 %v3517, %v3562
    %v3613 = vadd.f32 %v3518, %v3603
    %v3614 = vadd.f32 %v3519, %v3605
    %v3615 = vxor.u32 %v3607, 2147483648
    %v3616 = vxor.u32 %v3611, 2147483648
    %v3617 = vmul.f32 %v3615, 1.442695
    %v3618 = vpow.pop %v3617
    %v3619 = vmul.f32 %v3616, 1.442695
    %v3620 = vpow.pop %v3619
    %v3621 = vadd.f32 %v3618, 1.0
    %v3622 = vadd.f32 %v3620, 1.0
    %v3623 = vrcp.pop %v3621
    %v3624 = vmul.f32 1.0, %v3623
    %v3625 = vrcp.pop %v3622
    %v3626 = vmul.f32 1.0, %v3625
    %v3627 = vxor.u32 %v3608, 2147483648
    %v3628 = vxor.u32 %v3612, 2147483648
    %v3629 = vmul.f32 %v3627, 1.442695
    %v3630 = vpow.pop %v3629
    %v3631 = vmul.f32 %v3628, 1.442695
    %v3632 = vpow.pop %v3631
    %v3633 = vadd.f32 %v3630, 1.0
    %v3634 = vadd.f32 %v3632, 1.0
    %v3635 = vrcp.pop %v3633
    %v3636 = vmul.f32 1.0, %v3635
    %v3637 = vrcp.pop %v3634
    %v3638 = vmul.f32 1.0, %v3637
    %v3639 = vtanh.pop %v3609
    %v3640 = vtanh.pop %v3613
    %v3641 = vxor.u32 %v3610, 2147483648
    %v3642 = vxor.u32 %v3614, 2147483648
    %v3643 = vmul.f32 %v3641, 1.442695
    %v3644 = vpow.pop %v3643
    %v3645 = vmul.f32 %v3642, 1.442695
    %v3646 = vpow.pop %v3645
    %v3647 = vadd.f32 %v3644, 1.0
    %v3648 = vadd.f32 %v3646, 1.0
    %v3649 = vrcp.pop %v3647
    %v3650 = vmul.f32 1.0, %v3649
    %v3651 = vrcp.pop %v3648
    %v3652 = vmul.f32 1.0, %v3651
    %v3653 = vmul.f32 %v3636, %v3506
    %v3654 = vmul.f32 %v3638, %v3507
    %v3655 = vmul.f32 %v3624, %v3639
    %v3656 = vmul.f32 %v3626, %v3640
    %v3657 = vadd.f32 %v3653, %v3655
    %v3658 = vadd.f32 %v3654, %v3656
    %v3659 = vtanh.pop %v3657
    %v3660 = vtanh.pop %v3658
    %v3661 = vmul.f32 %v3650, %v3659
    %v3662 = vmul.f32 %v3652, %v3660
    %v3663 = vld [vmem:[#allocation4 + $0x180] sm:$0xff]
    %v3664 = vld [vmem:[#allocation4 + $0x188] sm:$0xff]
    %v3665 = vld [vmem:[#allocation4 + $0x190] sm:$0xff]
    %v3666 = vld [vmem:[#allocation4 + $0x198] sm:$0xff]
    %v3667 = vld [vmem:[#allocation4 + $0x1a0] sm:$0xff]
    %v3668 = vld [vmem:[#allocation4 + $0x1a8] sm:$0xff]
    %v3669 = vld [vmem:[#allocation4 + $0x1b0] sm:$0xff]
    %v3670 = vld [vmem:[#allocation4 + $0x1b8] sm:$0xff]
    %v3671 = vpack.c.bf16 %v3662, %v3661
    %3672 = vmatprep.subr.bf16.mxu0 %v2703
    %3673 = vmatpush1.bf16.msra.mxu0 %v2702
    %3674 = vmatprep.subr.bf16.mxu0 %v2707
    %3675 = vmatpush1.bf16.msra.mxu0 %v2706
    %3676 = vmatprep.subr.bf16.mxu0 %v2711
    %3677 = vmatpush1.bf16.msra.mxu0 %v2710
    %3678 = vmatprep.subr.bf16.mxu0 %v2715
    %3679 = vmatpush1.bf16.msra.mxu0 %v2714
    %3680 = vmatprep.subr.bf16.mxu0 %v2719
    %3681 = vmatpush1.bf16.msra.mxu0 %v2718
    %3682 = vmatprep.subr.bf16.mxu0 %v2723
    %3683 = vmatpush1.bf16.msra.mxu0 %v2722
    %3684 = vmatprep.subr.bf16.mxu0 %v2727
    %3685 = vmatpush1.bf16.msra.mxu0 %v2726
    %3686 = vmatprep.subr.bf16.mxu0 %v2731
    %3687 = vmatpush1.bf16.msra.mxu0 %v2730
    %3688 = vmatprep.subr.bf16.mxu0 0
    %3689 = vmatpush1.bf16.msra.mxu0 0
    %3690 = vmatprep.subr.bf16.mxu0 0
    %3691 = vmatpush1.bf16.msra.mxu0 0
    %3692 = vmatprep.subr.bf16.mxu0 0
    %3693 = vmatpush1.bf16.msra.mxu0 0
    %3694 = vmatprep.subr.bf16.mxu0 0
    %3695 = vmatpush1.bf16.msra.mxu0 0
    %3696 = vmatprep.subr.bf16.mxu0 0
    %3697 = vmatpush1.bf16.msra.mxu0 0
    %3698 = vmatprep.subr.bf16.mxu0 0
    %3699 = vmatpush1.bf16.msra.mxu0 0
    %3700 = vmatprep.subr.bf16.mxu0 0
    %3701 = vmatpush1.bf16.msra.mxu0 0
    %3702 = vmatprep.subr.bf16.mxu0 0
    %3703 = vmatpush1.bf16.msra.mxu0 0
    %3704 = vmatprep.mubr.bf16.mxu0 0
    %3705 = vmatmul.mubr.bf16.gmra.mrb[0].mxu0 %v3671
    %v3706 = vpop.f32.mrb[0].mxu0
    %v3707 = vadd.f32 0.0, %v3706
    %v3708 = vpop.f32.mrb[0].mxu0
    %v3709 = vadd.f32 0.0, %v3708
    %v3710 = vpop.f32.mrb[0].mxu0
    %v3711 = vadd.f32 0.0, %v3710
    %v3712 = vpop.f32.mrb[0].mxu0
    %v3713 = vadd.f32 0.0, %v3712
    %3714 = vdwg.mxu0
    %3715 = vmatprep.subr.bf16.mxu0 %v2705
    %3716 = vmatpush1.bf16.msra.mxu0 %v2704
    %3717 = vmatprep.subr.bf16.mxu0 %v2709
    %3718 = vmatpush1.bf16.msra.mxu0 %v2708
    %3719 = vmatprep.subr.bf16.mxu0 %v2713
    %3720 = vmatpush1.bf16.msra.mxu0 %v2712
    %3721 = vmatprep.subr.bf16.mxu0 %v2717
    %3722 = vmatpush1.bf16.msra.mxu0 %v2716
    %3723 = vmatprep.subr.bf16.mxu0 %v2721
    %3724 = vmatpush1.bf16.msra.mxu0 %v2720
    %3725 = vmatprep.subr.bf16.mxu0 %v2725
    %3726 = vmatpush1.bf16.msra.mxu0 %v2724
    %3727 = vmatprep.subr.bf16.mxu0 %v2729
    %3728 = vmatpush1.bf16.msra.mxu0 %v2728
    %3729 = vmatprep.subr.bf16.mxu0 %v2733
    %3730 = vmatpush1.bf16.msra.mxu0 %v2732
    %3731 = vmatprep.subr.bf16.mxu0 0
    %3732 = vmatpush1.bf16.msra.mxu0 0
    %3733 = vmatprep.subr.bf16.mxu0 0
    %3734 = vmatpush1.bf16.msra.mxu0 0
    %3735 = vmatprep.subr.bf16.mxu0 0
    %3736 = vmatpush1.bf16.msra.mxu0 0
    %3737 = vmatprep.subr.bf16.mxu0 0
    %3738 = vmatpush1.bf16.msra.mxu0 0
    %3739 = vmatprep.subr.bf16.mxu0 0
    %3740 = vmatpush1.bf16.msra.mxu0 0
    %3741 = vmatprep.subr.bf16.mxu0 0
    %3742 = vmatpush1.bf16.msra.mxu0 0
    %3743 = vmatprep.subr.bf16.mxu0 0
    %3744 = vmatpush1.bf16.msra.mxu0 0
    %3745 = vmatprep.subr.bf16.mxu0 0
    %3746 = vmatpush1.bf16.msra.mxu0 0
    %3747 = vmatprep.mubr.bf16.mxu0 0
    %3748 = vmatmul.mubr.bf16.gmra.mrb[0].mxu0 %v3671
    %v3749 = vpop.f32.mrb[0].mxu0
    %v3750 = vadd.f32 0.0, %v3749
    %v3751 = vpop.f32.mrb[0].mxu0
    %v3752 = vadd.f32 0.0, %v3751
    %v3753 = vpop.f32.mrb[0].mxu0
    %v3754 = vadd.f32 0.0, %v3753
    %v3755 = vpop.f32.mrb[0].mxu0
    %v3756 = vadd.f32 0.0, %v3755
    %3757 = vdwg.mxu0
    %v3758 = vadd.f32 %v3663, %v3707
    %v3759 = vadd.f32 %v3664, %v3709
    %v3760 = vadd.f32 %v3665, %v3750
    %v3761 = vadd.f32 %v3666, %v3752
    %v3762 = vadd.f32 %v3667, %v3711
    %v3763 = vadd.f32 %v3668, %v3713
    %v3764 = vadd.f32 %v3669, %v3754
    %v3765 = vadd.f32 %v3670, %v3756
    %v3766 = vxor.u32 %v3758, 2147483648
    %v3767 = vxor.u32 %v3762, 2147483648
    %v3768 = vmul.f32 %v3766, 1.442695
    %v3769 = vpow.pop %v3768
    %v3770 = vmul.f32 %v3767, 1.442695
    %v3771 = vpow.pop %v3770
    %v3772 = vadd.f32 %v3769, 1.0
    %v3773 = vadd.f32 %v3771, 1.0
    %v3774 = vrcp.pop %v3772
    %v3775 = vmul.f32 1.0, %v3774
    %v3776 = vrcp.pop %v3773
    %v3777 = vmul.f32 1.0, %v3776
    %v3778 = vxor.u32 %v3759, 2147483648
    %v3779 = vxor.u32 %v3763, 2147483648
    %v3780 = vmul.f32 %v3778, 1.442695
    %v3781 = vpow.pop %v3780
    %v3782 = vmul.f32 %v3779, 1.442695
    %v3783 = vpow.pop %v3782
    %v3784 = vadd.f32 %v3781, 1.0
    %v3785 = vadd.f32 %v3783, 1.0
    %v3786 = vrcp.pop %v3784
    %v3787 = vmul.f32 1.0, %v3786
    %v3788 = vrcp.pop %v3785
    %v3789 = vmul.f32 1.0, %v3788
    %v3790 = vtanh.pop %v3760
    %v3791 = vtanh.pop %v3764
    %v3792 = vxor.u32 %v3761, 2147483648
    %v3793 = vxor.u32 %v3765, 2147483648
    %v3794 = vmul.f32 %v3792, 1.442695
    %v3795 = vpow.pop %v3794
    %v3796 = vmul.f32 %v3793, 1.442695
    %v3797 = vpow.pop %v3796
    %v3798 = vadd.f32 %v3795, 1.0
    %v3799 = vadd.f32 %v3797, 1.0
    %v3800 = vrcp.pop %v3798
    %v3801 = vmul.f32 1.0, %v3800
    %v3802 = vrcp.pop %v3799
    %v3803 = vmul.f32 1.0, %v3802
    %v3804 = vmul.f32 %v3787, %v3657
    %v3805 = vmul.f32 %v3789, %v3658
    %v3806 = vmul.f32 %v3775, %v3790
    %v3807 = vmul.f32 %v3777, %v3791
    %v3808 = vadd.f32 %v3804, %v3806
    %v3809 = vadd.f32 %v3805, %v3807
    %v3810 = vtanh.pop %v3808
    %v3811 = vtanh.pop %v3809
    %v3812 = vmul.f32 %v3801, %v3810
    %v3813 = vmul.f32 %v3803, %v3811
    %v3814 = vld [vmem:[#allocation4 + $0x1c0] sm:$0xff]
    %v3815 = vld [vmem:[#allocation4 + $0x1c8] sm:$0xff]
    %v3816 = vld [vmem:[#allocation4 + $0x1d0] sm:$0xff]
    %v3817 = vld [vmem:[#allocation4 + $0x1d8] sm:$0xff]
    %v3818 = vld [vmem:[#allocation4 + $0x1e0] sm:$0xff]
    %v3819 = vld [vmem:[#allocation4 + $0x1e8] sm:$0xff]
    %v3820 = vld [vmem:[#allocation4 + $0x1f0] sm:$0xff]
    %v3821 = vld [vmem:[#allocation4 + $0x1f8] sm:$0xff]
    %v3822 = vpack.c.bf16 %v3813, %v3812
    %3823 = vmatprep.subr.bf16.mxu0 %v2703
    %3824 = vmatpush1.bf16.msra.mxu0 %v2702
    %3825 = vmatprep.subr.bf16.mxu0 %v2707
    %3826 = vmatpush1.bf16.msra.mxu0 %v2706
    %3827 = vmatprep.subr.bf16.mxu0 %v2711
    %3828 = vmatpush1.bf16.msra.mxu0 %v2710
    %3829 = vmatprep.subr.bf16.mxu0 %v2715
    %3830 = vmatpush1.bf16.msra.mxu0 %v2714
    %3831 = vmatprep.subr.bf16.mxu0 %v2719
    %3832 = vmatpush1.bf16.msra.mxu0 %v2718
    %3833 = vmatprep.subr.bf16.mxu0 %v2723
    %3834 = vmatpush1.bf16.msra.mxu0 %v2722
    %3835 = vmatprep.subr.bf16.mxu0 %v2727
    %3836 = vmatpush1.bf16.msra.mxu0 %v2726
    %3837 = vmatprep.subr.bf16.mxu0 %v2731
    %3838 = vmatpush1.bf16.msra.mxu0 %v2730
    %3839 = vmatprep.subr.bf16.mxu0 0
    %3840 = vmatpush1.bf16.msra.mxu0 0
    %3841 = vmatprep.subr.bf16.mxu0 0
    %3842 = vmatpush1.bf16.msra.mxu0 0
    %3843 = vmatprep.subr.bf16.mxu0 0
    %3844 = vmatpush1.bf16.msra.mxu0 0
    %3845 = vmatprep.subr.bf16.mxu0 0
    %3846 = vmatpush1.bf16.msra.mxu0 0
    %3847 = vmatprep.subr.bf16.mxu0 0
    %3848 = vmatpush1.bf16.msra.mxu0 0
    %3849 = vmatprep.subr.bf16.mxu0 0
    %3850 = vmatpush1.bf16.msra.mxu0 0
    %3851 = vmatprep.subr.bf16.mxu0 0
    %3852 = vmatpush1.bf16.msra.mxu0 0
    %3853 = vmatprep.subr.bf16.mxu0 0
    %3854 = vmatpush1.bf16.msra.mxu0 0
    %3855 = vmatprep.mubr.bf16.mxu0 0
    %3856 = vmatmul.mubr.bf16.gmra.mrb[0].mxu0 %v3822
    %v3857 = vpop.f32.mrb[0].mxu0
    %v3858 = vadd.f32 0.0, %v3857
    %v3859 = vpop.f32.mrb[0].mxu0
    %v3860 = vadd.f32 0.0, %v3859
    %v3861 = vpop.f32.mrb[0].mxu0
    %v3862 = vadd.f32 0.0, %v3861
    %v3863 = vpop.f32.mrb[0].mxu0
    %v3864 = vadd.f32 0.0, %v3863
    %3865 = vdwg.mxu0
    %3866 = vmatprep.subr.bf16.mxu0 %v2705
    %3867 = vmatpush1.bf16.msra.mxu0 %v2704
    %3868 = vmatprep.subr.bf16.mxu0 %v2709
    %3869 = vmatpush1.bf16.msra.mxu0 %v2708
    %3870 = vmatprep.subr.bf16.mxu0 %v2713
    %3871 = vmatpush1.bf16.msra.mxu0 %v2712
    %3872 = vmatprep.subr.bf16.mxu0 %v2717
    %3873 = vmatpush1.bf16.msra.mxu0 %v2716
    %3874 = vmatprep.subr.bf16.mxu0 %v2721
    %3875 = vmatpush1.bf16.msra.mxu0 %v2720
    %3876 = vmatprep.subr.bf16.mxu0 %v2725
    %3877 = vmatpush1.bf16.msra.mxu0 %v2724
    %3878 = vmatprep.subr.bf16.mxu0 %v2729
    %3879 = vmatpush1.bf16.msra.mxu0 %v2728
    %3880 = vmatprep.subr.bf16.mxu0 %v2733
    %3881 = vmatpush1.bf16.msra.mxu0 %v2732
    %3882 = vmatprep.subr.bf16.mxu0 0
    %3883 = vmatpush1.bf16.msra.mxu0 0
    %3884 = vmatprep.subr.bf16.mxu0 0
    %3885 = vmatpush1.bf16.msra.mxu0 0
    %3886 = vmatprep.subr.bf16.mxu0 0
    %3887 = vmatpush1.bf16.msra.mxu0 0
    %3888 = vmatprep.subr.bf16.mxu0 0
    %3889 = vmatpush1.bf16.msra.mxu0 0
    %3890 = vmatprep.subr.bf16.mxu0 0
    %3891 = vmatpush1.bf16.msra.mxu0 0
    %3892 = vmatprep.subr.bf16.mxu0 0
    %3893 = vmatpush1.bf16.msra.mxu0 0
    %3894 = vmatprep.subr.bf16.mxu0 0
    %3895 = vmatpush1.bf16.msra.mxu0 0
    %3896 = vmatprep.subr.bf16.mxu0 0
    %3897 = vmatpush1.bf16.msra.mxu0 0
    %3898 = vmatprep.mubr.bf16.mxu0 0
    %3899 = vmatmul.mubr.bf16.gmra.mrb[0].mxu0 %v3822
    %v3900 = vpop.f32.mrb[0].mxu0
    %v3901 = vadd.f32 0.0, %v3900
    %v3902 = vpop.f32.mrb[0].mxu0
    %v3903 = vadd.f32 0.0, %v3902
    %v3904 = vpop.f32.mrb[0].mxu0
    %v3905 = vadd.f32 0.0, %v3904
    %v3906 = vpop.f32.mrb[0].mxu0
    %v3907 = vadd.f32 0.0, %v3906
    %3908 = vdwg.mxu0
    %v3909 = vadd.f32 %v3814, %v3858
    %v3910 = vadd.f32 %v3815, %v3860
    %v3911 = vadd.f32 %v3816, %v3901
    %v3912 = vadd.f32 %v3817, %v3903
    %v3913 = vadd.f32 %v3818, %v3862
    %v3914 = vadd.f32 %v3819, %v3864
    %v3915 = vadd.f32 %v3820, %v3905
    %v3916 = vadd.f32 %v3821, %v3907
    %v3917 = vxor.u32 %v3909, 2147483648
    %v3918 = vxor.u32 %v3913, 2147483648
    %v3919 = vmul.f32 %v3917, 1.442695
    %v3920 = vpow.pop %v3919
    %v3921 = vmul.f32 %v3918, 1.442695
    %v3922 = vpow.pop %v3921
    %v3923 = vadd.f32 %v3920, 1.0
    %v3924 = vadd.f32 %v3922, 1.0
    %v3925 = vrcp.pop %v3923
    %v3926 = vmul.f32 1.0, %v3925
    %v3927 = vrcp.pop %v3924
    %v3928 = vmul.f32 1.0, %v3927
    %v3929 = vxor.u32 %v3910, 2147483648
    %v3930 = vxor.u32 %v3914, 2147483648
    %v3931 = vmul.f32 %v3929, 1.442695
    %v3932 = vpow.pop %v3931
    %v3933 = vmul.f32 %v3930, 1.442695
    %v3934 = vpow.pop %v3933
    %v3935 = vadd.f32 %v3932, 1.0
    %v3936 = vadd.f32 %v3934, 1.0
    %v3937 = vrcp.pop %v3935
    %v3938 = vmul.f32 1.0, %v3937
    %v3939 = vrcp.pop %v3936
    %v3940 = vmul.f32 1.0, %v3939
    %v3941 = vtanh.pop %v3911
    %v3942 = vtanh.pop %v3915
    %v3943 = vxor.u32 %v3912, 2147483648
    %v3944 = vxor.u32 %v3916, 2147483648
    %v3945 = vmul.f32 %v3943, 1.442695
    %v3946 = vpow.pop %v3945
    %v3947 = vmul.f32 %v3944, 1.442695
    %v3948 = vpow.pop %v3947
    %v3949 = vadd.f32 %v3946, 1.0
    %v3950 = vadd.f32 %v3948, 1.0
    %v3951 = vrcp.pop %v3949
    %v3952 = vmul.f32 1.0, %v3951
    %v3953 = vrcp.pop %v3950
    %v3954 = vmul.f32 1.0, %v3953
    %v3955 = vmul.f32 %v3938, %v3808
    %v3956 = vmul.f32 %v3940, %v3809
    %v3957 = vmul.f32 %v3926, %v3941
    %v3958 = vmul.f32 %v3928, %v3942
    %v3959 = vadd.f32 %v3955, %v3957
    %v3960 = vadd.f32 %v3956, %v3958
    %v3961 = vtanh.pop %v3959
    %v3962 = vtanh.pop %v3960
    %v3963 = vmul.f32 %v3952, %v3961
    %v3964 = vmul.f32 %v3954, %v3962
    %3965 = vst [vmem:[%s2591] sm:$0xff] %v3963
    %3966 = vst [vmem:[%s2591 + $0x8] sm:$0xff] %v3964
    %3967 = vst [vmem:[%s2594] sm:$0xff] %v3959
    %3968 = vst [vmem:[%s2594 + $0x8] sm:$0xff] %v3960
    // Predicated region
    $region54: #{sentiment_rnn_forward.1} parent=1 // pred_check
      %p3969 = pneg %p58
    $region55: #{sentiment_rnn_forward.1} parent=1 // pred_check_branch
      %3971 = sbr.rel (%p3969) target = $region57
    $region56: #{sentiment_rnn_forward.1} parent=1 // pred_region
      %v3972 = vld [vmem:[#allocation2] sm:$0xff]
      %v3973 = vld [vmem:[#allocation2 + $0x8] sm:$0xff]
      %v3974 = vld [vmem:[#allocation2 + $0x10] sm:$0xff]
      %v3975 = vld [vmem:[#allocation2 + $0x18] sm:$0xff]
      %3976 = vst [vmem:[%s12] sm:$0xff] %v3972
      %3977 = vst [vmem:[%s12 + $0x8] sm:$0xff] %v3973
      %3978 = vst [vmem:[%s12 + $0x10] sm:$0xff] %v3974
      %3979 = vst [vmem:[%s12 + $0x18] sm:$0xff] %v3975
      %v3980 = vld [vmem:[#allocation3] sm:$0xff]
      %v3981 = vld [vmem:[#allocation3 + $0x8] sm:$0xff]
      %v3982 = vld [vmem:[#allocation3 + $0x10] sm:$0xff]
      %v3983 = vld [vmem:[#allocation3 + $0x18] sm:$0xff]
      %3984 = vst [vmem:[%s13] sm:$0xff] %v3980
      %3985 = vst [vmem:[%s13 + $0x8] sm:$0xff] %v3981
      %3986 = vst [vmem:[%s13 + $0x10] sm:$0xff] %v3982
      %3987 = vst [vmem:[%s13 + $0x18] sm:$0xff] %v3983
      %v3988 = vld [vmem:[%s2591] sm:$0xff]
      %v3989 = vld [vmem:[%s2591 + $0x8] sm:$0xff]
      %v3990 = vpack.c.bf16 %v3989, %v3988
      %v3991 = vld [vmem:[%s9] sm:$0xf]
      %v3992 = vld [vmem:[%s9 + $0x4] sm:$0xf]
      %v3993 = vld [vmem:[%s9 + $0x8] sm:$0xf]
      %v3994 = vld [vmem:[%s9 + $0xc] sm:$0xf]
      %v3995 = vld [vmem:[%s9 + $0x10] sm:$0xf]
      %v3996 = vld [vmem:[%s9 + $0x14] sm:$0xf]
      %v3997 = vld [vmem:[%s9 + $0x18] sm:$0xf]
      %v3998 = vld [vmem:[%s9 + $0x1c] sm:$0xf]
      %v3999 = vld [vmem:[%s9 + $0x20] sm:$0xf]
      %v4000 = vld [vmem:[%s9 + $0x24] sm:$0xf]
      %v4001 = vld [vmem:[%s9 + $0x28] sm:$0xf]
      %v4002 = vld [vmem:[%s9 + $0x2c] sm:$0xf]
      %v4003 = vld [vmem:[%s9 + $0x30] sm:$0xf]
      %v4004 = vld [vmem:[%s9 + $0x34] sm:$0xf]
      %v4005 = vld [vmem:[%s9 + $0x38] sm:$0xf]
      %v4006 = vld [vmem:[%s9 + $0x3c] sm:$0xf]
      %v4007 = vld [vmem:[#allocation5] sm:$0x1]
      %v4009 = vlaneseq
      %v4010 = vshrl.u32 %v4009, 7
      %v4011 = vsub.s32 0, %v4010
      %v4012 = vrot.slane %v4007, %v4011
      %v4030 = vunpack.c.l.b16 %v3991
      %v4031 = vunpack.c.l.b16 %v3992
      %v4032 = vunpack.c.l.b16 %v3993
      %v4033 = vunpack.c.l.b16 %v3994
      %v4034 = vunpack.c.l.b16 %v3995
      %v4035 = vunpack.c.l.b16 %v3996
      %v4036 = vunpack.c.l.b16 %v3997
      %v4037 = vunpack.c.l.b16 %v3998
      %v4038 = vunpack.c.l.b16 %v3999
      %v4039 = vunpack.c.l.b16 %v4000
      %v4040 = vunpack.c.l.b16 %v4001
      %v4041 = vunpack.c.l.b16 %v4002
      %v4042 = vunpack.c.l.b16 %v4003
      %v4043 = vunpack.c.l.b16 %v4004
      %v4044 = vunpack.c.l.b16 %v4005
      %v4045 = vunpack.c.l.b16 %v4006
      %v4046 = vpack.c.b16 %v4031, %v4030
      %v4047 = vpack.c.b16 %v4033, %v4032
      %v4048 = vpack.c.b16 %v4035, %v4034
      %v4049 = vpack.c.b16 %v4037, %v4036
      %v4050 = vpack.c.b16 %v4039, %v4038
      %v4051 = vpack.c.b16 %v4041, %v4040
      %v4052 = vpack.c.b16 %v4043, %v4042
      %v4053 = vpack.c.b16 %v4045, %v4044
      %4062 = vmatprep.subr.bf16.mxu0 0
      %4063 = vmatpush1.bf16.msra.mxu0 %v4046
      %4064 = vmatprep.subr.bf16.mxu0 0
      %4065 = vmatpush1.bf16.msra.mxu0 %v4047
      %4066 = vmatprep.subr.bf16.mxu0 0
      %4067 = vmatpush1.bf16.msra.mxu0 %v4048
      %4068 = vmatprep.subr.bf16.mxu0 0
      %4069 = vmatpush1.bf16.msra.mxu0 %v4049
      %4070 = vmatprep.subr.bf16.mxu0 0
      %4071 = vmatpush1.bf16.msra.mxu0 %v4050
      %4072 = vmatprep.subr.bf16.mxu0 0
      %4073 = vmatpush1.bf16.msra.mxu0 %v4051
      %4074 = vmatprep.subr.bf16.mxu0 0
      %4075 = vmatpush1.bf16.msra.mxu0 %v4052
      %4076 = vmatprep.subr.bf16.mxu0 0
      %4077 = vmatpush1.bf16.msra.mxu0 %v4053
      %4078 = vmatprep.subr.bf16.mxu0 0
      %4079 = vmatpush1.bf16.msra.mxu0 0
      %4080 = vmatprep.subr.bf16.mxu0 0
      %4081 = vmatpush1.bf16.msra.mxu0 0
      %4082 = vmatprep.subr.bf16.mxu0 0
      %4083 = vmatpush1.bf16.msra.mxu0 0
      %4084 = vmatprep.subr.bf16.mxu0 0
      %4085 = vmatpush1.bf16.msra.mxu0 0
      %4086 = vmatprep.subr.bf16.mxu0 0
      %4087 = vmatpush1.bf16.msra.mxu0 0
      %4088 = vmatprep.subr.bf16.mxu0 0
      %4089 = vmatpush1.bf16.msra.mxu0 0
      %4090 = vmatprep.subr.bf16.mxu0 0
      %4091 = vmatpush1.bf16.msra.mxu0 0
      %4092 = vmatprep.subr.bf16.mxu0 0
      %4093 = vmatpush1.bf16.msra.mxu0 0
      %4094 = vmatprep.mubr.bf16.mxu0 0
      %4095 = vmatmul.mubr.bf16.gmra.mrb[0].mxu0 %v3990
      %v4096 = vpop.f32.mrb[0].mxu0
      %v4097 = vadd.f32 %v4012, %v4096
      %v4098 = vpop.f32.mrb[0].mxu0
      %v4099 = vpop.f32.mrb[0].mxu0
      %v4100 = vadd.f32 %v4012, %v4099
      %v4101 = vpop.f32.mrb[0].mxu0
      %4102 = vdwg.mxu0
      %v4103 = vxor.u32 %v4097, 2147483648
      %v4104 = vxor.u32 %v4100, 2147483648
      %v4105 = vmul.f32 %v4103, 1.442695
      %v4106 = vpow.pop %v4105
      %v4107 = vmul.f32 %v4104, 1.442695
      %v4108 = vpow.pop %v4107
      %v4109 = vadd.f32 %v4106, 1.0
      %v4110 = vadd.f32 %v4108, 1.0
      %v4111 = vrcp.pop %v4109
      %v4112 = vmul.f32 1.0, %v4111
      %v4113 = vrcp.pop %v4110
      %v4114 = vmul.f32 1.0, %v4113
      %vm4115 = vcmask 7168
      %4116 = vst.msk [vmem:[%s11] sm:$0xff] %vm4115, %v4112
      %4117 = vst.msk [vmem:[%s11 + $0x8] sm:$0xff] %vm4115, %v4114
    $region57: #{sentiment_rnn_forward.1} parent=1 // pred_fallthru
      _
    // Predicated region
    $region58: #{sentiment_rnn_forward.1} parent=1 // pred_check
      _
    $region59: #{sentiment_rnn_forward.1} parent=1 // pred_check_branch
      %4119 = sbr.rel (0) target = $region61
    $region60: #{sentiment_rnn_forward.1} parent=1 // pred_region
      _
    $region61: #{sentiment_rnn_forward.1} parent=1 // pred_fallthru
      _
    // Predicated region
    $region62: #{sentiment_rnn_forward.1} parent=1 // pred_check
      _
    $region63: #{sentiment_rnn_forward.1} parent=1 // pred_check_branch
      %4121 = sbr.rel (0) target = $region65
    $region64: #{sentiment_rnn_forward.1} parent=1 // pred_region
      _
    $region65: #{sentiment_rnn_forward.1} parent=1 // pred_fallthru
      _
    // Predicated region
    $region66: #{sentiment_rnn_forward.1} parent=1 // pred_check
      _
    $region67: #{sentiment_rnn_forward.1} parent=1 // pred_check_branch
      %4123 = sbr.rel (0) target = $region69
    $region68: #{sentiment_rnn_forward.1} parent=1 // pred_region
      _
    $region69: #{sentiment_rnn_forward.1} parent=1 // pred_fallthru
      _
    // Predicated region
    $region70: #{sentiment_rnn_forward.1} parent=1 // pred_check
      _
    $region71: #{sentiment_rnn_forward.1} parent=1 // pred_check_branch
      %4125 = sbr.rel (0) target = $region73
    $region72: #{sentiment_rnn_forward.1} parent=1 // pred_region
      _
    $region73: #{sentiment_rnn_forward.1} parent=1 // pred_fallthru
      _
    // Predicated region
    $region74: #{sentiment_rnn_forward.1} parent=1 // pred_check
      _
    $region75: #{sentiment_rnn_forward.1} parent=1 // pred_check_branch
      %4127 = sbr.rel (0) target = $region77
    $region76: #{sentiment_rnn_forward.1} parent=1 // pred_region
      _
    $region77: #{sentiment_rnn_forward.1} parent=1 // pred_fallthru
      _
    // Predicated region
    $region78: #{sentiment_rnn_forward.1} parent=1 // pred_check
      _
    $region79: #{sentiment_rnn_forward.1} parent=1 // pred_check_branch
      %4129 = sbr.rel (0) target = $region81
    $region80: #{sentiment_rnn_forward.1} parent=1 // pred_region
      _
    $region81: #{sentiment_rnn_forward.1} parent=1 // pred_fallthru
      _
    %4130 = vsyncpa [#allocation7], 1

</llo_original>
